<compile_context>
chip_gen: v7x
topology: tpu7x:2x2x1
jax: 0.10.0
libtpu: 0.0.40
codegen_flags: <defaults>
</compile_context>

<pallas_src>
import math
import numpy as np
import jax
import jax.numpy as jnp
from jax import lax
from jax.experimental import pallas as pl
from jax.experimental.pallas import tpu as pltpu

# ---- small, module-consistent shapes -------------------------------------------------------------
B = 2            # batch
L = 16           # win_size == sequence length
D_MODEL = 32     # d_model
N_HEADS = 4      # n_heads
E_HEAD = D_MODEL // N_HEADS
D_FF = 64        # d_ff
N_LAYERS = 2     # e_layers
LN_EPS = 1e-5
PROJ_W = 128     # packed projection width (3*D_MODEL + N_HEADS = 100, zero-padded to a full lane tile)


def _layernorm(x, gamma, beta):
    mu = jnp.mean(x, axis=-1, keepdims=True)
    var = jnp.mean((x - mu) ** 2, axis=-1, keepdims=True)
    return (x - mu) / jnp.sqrt(var + LN_EPS) * gamma + beta


# ---- fused Pallas kernel: full Encoder (N_LAYERS EncoderLayers + final LayerNorm) -----------------
def encoder_kernel(x_ref, wproj_ref, wo_ref, w1_ref, w2_ref, vecp_ref, fgb_ref,
                   xo_ref, series_ref, prior_ref, sigma_ref):
    Lk, Dk = x_ref.shape                     # batch dim squeezed out by BlockSpec
    NLk, Hk = series_ref.shape[0], series_ref.shape[1]
    Ek = Dk // Hk
    DFFk = w1_ref.shape[2]
    scale = 1.0 / math.sqrt(Ek)
    inv_sqrt_2pi = 1.0 / math.sqrt(2.0 * math.pi)
    log3 = math.log(3.0)

    # |i - j|^2 generated in-kernel, hoisted out of the layer/head loops.
    rows = lax.broadcasted_iota(jnp.int32, (Lk, Lk), 0)
    cols = lax.broadcasted_iota(jnp.int32, (Lk, Lk), 1)
    diff = (rows - cols).astype(jnp.float32)
    neg_half_dist2 = -0.5 * (diff * diff)

    # TODO(synk): TriangularCausalMask branch (mask_flag=True) not implemented; config uses mask_flag=False.
    x = x_ref[...]                           # (L, D)
    for l in range(NLk):                     # static unroll over encoder layers
        vec = vecp_ref[l]                    # (8, 128): packed biases + LayerNorm params
        # single packed projection: [q | k | v | sigma | pad]  -> one MXU matmul
        proj = jnp.dot(x, wproj_ref[l], preferred_element_type=jnp.float32) + vec[0:1, :]
        q = proj[:, 0:Dk] * scale            # fold 1/sqrt(E) into q once per layer
        k = proj[:, Dk:2 * Dk]
        v = proj[:, 2 * Dk:3 * Dk]
        sgm = jax.nn.sigmoid(proj[:, 3 * Dk:3 * Dk + Hk] * 5.0) + 1e-5
        sgm = jnp.exp(sgm * log3) - 1.0      # == 3**sigma - 1, shape (L, H)
        inv_s = pl.reciprocal(sgm, approx=True)   # EUP
        coef = inv_sqrt_2pi * inv_s          # (L, H)
        inv_s2 = inv_s * inv_s               # (L, H)

        new_x = None
        for h in range(Hk):                  # static unroll over heads (2-D MXU ops only)
            qh = q[:, h * Ek:(h + 1) * Ek]
            kh = k[:, h * Ek:(h + 1) * Ek]
            vh = v[:, h * Ek:(h + 1) * Ek]

            scores = lax.dot_general(qh, kh, (((1,), (1,)), ((), ())),
                                     preferred_element_type=jnp.float32)   # (L, L)
            m = jnp.max(scores, axis=-1, keepdims=True)
            e = jnp.exp(scores - m)
            series_h = e / jnp.sum(e, axis=-1, keepdims=True)

            prior_h = coef[:, h:h + 1] * jnp.exp(neg_half_dist2 * inv_s2[:, h:h + 1])

            series_ref[l, h] = series_h
            prior_ref[l, h] = prior_h
            sigma_ref[l, h] = jnp.broadcast_to(sgm[:, h:h + 1], (Lk, Lk))

            # concat-free, scratch-free head merge:
            #   concat_h(series_h @ v_h) @ wo  ==  sum_h (series_h @ v_h) @ wo[h*E:(h+1)*E, :]
            oh = jnp.dot(series_h, vh, preferred_element_type=jnp.float32)          # (L, E)
            contrib = jnp.dot(oh, wo_ref[l, h * Ek:(h + 1) * Ek, :],
                              preferred_element_type=jnp.float32)                    # (L, D)
            new_x = contrib if new_x is None else new_x + contrib

        new_x = new_x + vec[1:2, 0:Dk]
        # dropout omitted (eval-mode identity)
        x1 = _layernorm(x + new_x, vec[4:5, 0:Dk], vec[5:6, 0:Dk])               # norm1
        y = jnp.maximum(jnp.dot(x1, w1_ref[l], preferred_element_type=jnp.float32)
                        + vec[2:3, 0:DFFk], 0.0)                                 # conv1 (k=1) + relu
        y = jnp.dot(y, w2_ref[l], preferred_element_type=jnp.float32) + vec[3:4, 0:Dk]  # conv2 (k=1)
        x = _layernorm(x1 + y, vec[6:7, 0:Dk], vec[7:8, 0:Dk])                   # norm2

    xo_ref[...] = _layernorm(x, fgb_ref[0:1, :], fgb_ref[1:2, :])                # Encoder.norm


# ---- weight packing + wrapper ---------------------------------------------------------------------
def _pad_cols(a, width):
    return jnp.pad(a, ((0, 0), (0, width - a.shape[1])))


def pack_params(layer_params, final_g, final_b):
    wproj, wo, w1, w2, vecp = [], [], [], [], []
    for p in layer_params:
        wproj.append(_pad_cols(jnp.concatenate([p["wq"], p["wk"], p["wv"], p["wsig"]], axis=1), PROJ_W))
        bproj = _pad_cols(jnp.concatenate([p["bq"], p["bk"], p["bv"], p["bsig"]], axis=1), PROJ_W)
        vecp.append(jnp.concatenate([
            bproj,
            _pad_cols(p["bo"], PROJ_W), _pad_cols(p["b1"], PROJ_W), _pad_cols(p["b2"], PROJ_W),
            _pad_cols(p["g1"], PROJ_W), _pad_cols(p["be1"], PROJ_W),
            _pad_cols(p["g2"], PROJ_W), _pad_cols(p["be2"], PROJ_W)], axis=0))     # (8, 128)
        wo.append(p["wo"]); w1.append(p["w1"]); w2.append(p["w2"])
    return (jnp.stack(wproj), jnp.stack(wo), jnp.stack(w1), jnp.stack(w2),
            jnp.stack(vecp), jnp.concatenate([final_g, final_b], axis=0))


def encoder_pallas(x, wproj, wo, w1, w2, vecp, fgb, n_heads):
    Bx, Lx, Dx = x.shape
    NL = wproj.shape[0]
    H = n_heads

    def full_spec(a):                         # full-array block, replicated across the batch grid
        nd = a.ndim
        return pl.BlockSpec(a.shape, lambda b, _nd=nd: (0,) * _nd)

    in_specs = [pl.BlockSpec((None, Lx, Dx), lambda b: (b, 0, 0))]
    in_specs += [full_spec(w) for w in (wproj, wo, w1, w2, vecp, fgb)]

    attn_out_spec = pl.BlockSpec((NL, None, H, Lx, Lx), lambda b: (0, b, 0, 0, 0))
    out_specs = (
        pl.BlockSpec((None, Lx, Dx), lambda b: (b, 0, 0)),
        attn_out_spec, attn_out_spec, attn_out_spec,
    )
    out_shape = (
        jax.ShapeDtypeStruct((Bx, Lx, Dx), jnp.float32),
        jax.ShapeDtypeStruct((NL, Bx, H, Lx, Lx), jnp.float32),
        jax.ShapeDtypeStruct((NL, Bx, H, Lx, Lx), jnp.float32),
        jax.ShapeDtypeStruct((NL, Bx, H, Lx, Lx), jnp.float32),
    )
    return pl.pallas_call(
        encoder_kernel,
        grid=(Bx,),
        in_specs=in_specs,
        out_specs=out_specs,
        out_shape=out_shape,
        compiler_params=pltpu.CompilerParams(dimension_semantics=("parallel",)),
    )(x, wproj, wo, w1, w2, vecp, fgb)


def encoder_forward(x, layer_params, final_g, final_b, attn_mask=None):
    # mirrors Encoder.forward: loop over attn_layers, collect series/prior/sigma, final norm
    # (the whole thing runs as one fused pallas_call; packing is folded into the jitted graph)
    n_heads = layer_params[0]["wsig"].shape[1]

    @jax.jit
    def _run(x, layer_params, final_g, final_b):
        packed = pack_params(layer_params, final_g, final_b)
        return encoder_pallas(x, *packed, n_heads=n_heads)

    x_out, series_all, prior_all, sigma_all = _run(x, layer_params, final_g, final_b)
    nl = len(layer_params)
    series_list = [series_all[l] for l in range(nl)]
    prior_list = [prior_all[l] for l in range(nl)]
    sigma_list = [sigma_all[l] for l in range(nl)]
    return x_out, series_list, prior_list, sigma_list


# ---- pure-JAX reference (same math, standard ops) for a correctness check -------------------------
def encoder_forward_ref(x, layer_params, dist, final_g, final_b):
    H, E = N_HEADS, E_HEAD
    series_list, prior_list, sigma_list = [], [], []
    for p in layer_params:
        Bx, Lx, Dx = x.shape
        q = (x @ p["wq"] + p["bq"]).reshape(Bx, Lx, H, E)
        k = (x @ p["wk"] + p["bk"]).reshape(Bx, Lx, H, E)
        v = (x @ p["wv"] + p["bv"]).reshape(Bx, Lx, H, E)
        sig = x @ p["wsig"] + p["bsig"]                      # (B, L, H)
        scale = 1.0 / math.sqrt(E)
        attn = scale * jnp.einsum("blhe,bshe->bhls", q, k)
        sig = jnp.transpose(sig, (0, 2, 1))                  # (B, H, L)
        sig = jax.nn.sigmoid(sig * 5.0) + 1e-5
        sig = jnp.exp(sig * math.log(3.0)) - 1.0
        sig_full = jnp.broadcast_to(sig[..., None], (Bx, H, Lx, Lx))
        prior = (1.0 / (math.sqrt(2.0 * math.pi) * sig_full)) * jnp.exp(
            -(dist ** 2) / (2.0 * sig_full ** 2))
        series = jax.nn.softmax(attn, axis=-1)
        V = jnp.einsum("bhls,bshd->blhd", series, v).reshape(Bx, Lx, Dx)
        new_x = V @ p["wo"] + p["bo"]
        x1 = _layernorm(x + new_x, p["g1"], p["be1"])
        y = jnp.maximum(x1 @ p["w1"] + p["b1"], 0.0) @ p["w2"] + p["b2"]
        x = _layernorm(x1 + y, p["g2"], p["be2"])
        series_list.append(series)
        prior_list.append(prior)
        sigma_list.append(sig_full)
    x = _layernorm(x, final_g, final_b)
    return x, series_list, prior_list, sigma_list


# ---- deterministic parameter init ------------------------------------------------------------------
def _dense(key, fan_in, fan_out):
    return jax.random.normal(key, (fan_in, fan_out), jnp.float32) / math.sqrt(fan_in)


def init_layer_params(key):
    ks = jax.random.split(key, 12)
    return dict(
        wq=_dense(ks[0], D_MODEL, D_MODEL), bq=0.02 * jax.random.normal(ks[1], (1, D_MODEL), jnp.float32),
        wk=_dense(ks[2], D_MODEL, D_MODEL), bk=0.02 * jax.random.normal(ks[3], (1, D_MODEL), jnp.float32),
        wv=_dense(ks[4], D_MODEL, D_MODEL), bv=0.02 * jax.random.normal(ks[5], (1, D_MODEL), jnp.float32),
        wsig=_dense(ks[6], D_MODEL, N_HEADS), bsig=0.02 * jax.random.normal(ks[7], (1, N_HEADS), jnp.float32),
        wo=_dense(ks[8], D_MODEL, D_MODEL), bo=0.02 * jax.random.normal(ks[9], (1, D_MODEL), jnp.float32),
        w1=_dense(ks[10], D_MODEL, D_FF), b1=jnp.zeros((1, D_FF), jnp.float32),
        w2=_dense(ks[11], D_FF, D_MODEL), b2=jnp.zeros((1, D_MODEL), jnp.float32),
        g1=jnp.ones((1, D_MODEL), jnp.float32), be1=jnp.zeros((1, D_MODEL), jnp.float32),
        g2=jnp.ones((1, D_MODEL), jnp.float32), be2=jnp.zeros((1, D_MODEL), jnp.float32),
    )


if __name__ == "__main__":
    key = jax.random.PRNGKey(0)
    k_x, k_p = jax.random.split(key)
    x = jax.random.normal(k_x, (B, L, D_MODEL), jnp.float32)
    layer_params = [init_layer_params(k) for k in jax.random.split(k_p, N_LAYERS)]
    final_g = jnp.ones((1, D_MODEL), jnp.float32)
    final_b = jnp.zeros((1, D_MODEL), jnp.float32)

    x_out, series_list, prior_list, sigma_list = encoder_forward(
        x, layer_params, final_g, final_b, attn_mask=None)
    jax.block_until_ready(x_out)

    # correctness check against a pure-JAX reference
    idx = jnp.arange(L, dtype=jnp.float32)
    dist = jnp.abs(idx[:, None] - idx[None, :])              # AnomalyAttention.distances
    xr, sr, pr, gr = encoder_forward_ref(x, layer_params, dist, final_g, final_b)
    np.testing.assert_allclose(np.asarray(x_out), np.asarray(xr), rtol=5e-3, atol=5e-3)
    for a, b_ in zip(series_list, sr):
        np.testing.assert_allclose(np.asarray(a), np.asarray(b_), rtol=5e-3, atol=5e-3)
    for a, b_ in zip(prior_list, pr):
        np.testing.assert_allclose(np.asarray(a), np.asarray(b_), rtol=5e-3, atol=5e-3)
    for a, b_ in zip(sigma_list, gr):
        np.testing.assert_allclose(np.asarray(a), np.asarray(b_), rtol=5e-3, atol=5e-3)

    print("KERNEL_OK")
</pallas_src>

<mosaic_0001>
module attributes {stable_mosaic.version = 11 : i64} {
  func.func @encoder_kernel(%arg0: i32, %arg1: memref<1x16x32xf32, #tpu.memory_space<vmem>>, %arg2: memref<2x32x128xf32, #tpu.memory_space<vmem>>, %arg3: memref<2x32x32xf32, #tpu.memory_space<vmem>>, %arg4: memref<2x32x64xf32, #tpu.memory_space<vmem>>, %arg5: memref<2x64x32xf32, #tpu.memory_space<vmem>>, %arg6: memref<2x8x128xf32, #tpu.memory_space<vmem>>, %arg7: memref<2x32xf32, #tpu.memory_space<vmem>>, %arg8: memref<1x16x32xf32, #tpu.memory_space<vmem>>, %arg9: memref<2x1x4x16x16xf32, #tpu.memory_space<vmem>>, %arg10: memref<2x1x4x16x16xf32, #tpu.memory_space<vmem>>, %arg11: memref<2x1x4x16x16xf32, #tpu.memory_space<vmem>>) attributes {dimension_semantics = [#tpu.dimension_semantics<parallel>], iteration_bounds = array<i64: 2>, scalar_prefetch = 0 : i64, scratch_operands = 0 : i64, tpu.core_type = #tpu.core_type<tc>, window_params = [{transform_indices = @transform_0, window_bounds = array<i64: 1, 16, 32>}, {pipeline_mode = #tpu.pipeline_mode<synchronous>, transform_indices = @transform_1, window_bounds = array<i64: 2, 32, 128>}, {pipeline_mode = #tpu.pipeline_mode<synchronous>, transform_indices = @transform_2, window_bounds = array<i64: 2, 32, 32>}, {pipeline_mode = #tpu.pipeline_mode<synchronous>, transform_indices = @transform_3, window_bounds = array<i64: 2, 32, 64>}, {pipeline_mode = #tpu.pipeline_mode<synchronous>, transform_indices = @transform_4, window_bounds = array<i64: 2, 64, 32>}, {pipeline_mode = #tpu.pipeline_mode<synchronous>, transform_indices = @transform_5, window_bounds = array<i64: 2, 8, 128>}, {pipeline_mode = #tpu.pipeline_mode<synchronous>, transform_indices = @transform_6, window_bounds = array<i64: 2, 32>}, {transform_indices = @transform_7, window_bounds = array<i64: 1, 16, 32>}, {transform_indices = @transform_8, window_bounds = array<i64: 2, 1, 4, 16, 16>}, {transform_indices = @transform_9, window_bounds = array<i64: 2, 1, 4, 16, 16>}, {transform_indices = @transform_10, window_bounds = array<i64: 2, 1, 4, 16, 16>}]} {
    %0 = tpu.iota {dimensions = array<i32: 0>} : vector<16x16xi32>
    %1 = tpu.iota {dimensions = array<i32: 1>} : vector<16x16xi32>
    %2 = arith.subi %0, %1 : vector<16x16xi32>
    %3 = arith.sitofp %2 : vector<16x16xi32> to vector<16x16xf32>
    %4 = arith.mulf %3, %3 : vector<16x16xf32>
    %cst = arith.constant -5.000000e-01 : f32
    %5 = vector.broadcast %cst : f32 to vector<16x16xf32>
    %6 = arith.mulf %5, %4 : vector<16x16xf32>
    %c0 = arith.constant 0 : index
    %c0_0 = arith.constant 0 : index
    %c0_1 = arith.constant 0 : index
    %7 = vector.load %arg1[%c0, %c0_0, %c0_1] : memref<1x16x32xf32, #tpu.memory_space<vmem>>, vector<1x16x32xf32>
    %8 = vector.shape_cast %7 : vector<1x16x32xf32> to vector<16x32xf32>
    %c0_2 = arith.constant 0 : index
    %c0_3 = arith.constant 0 : index
    %c0_4 = arith.constant 0 : index
    %9 = vector.load %arg6[%c0_2, %c0_3, %c0_4] : memref<2x8x128xf32, #tpu.memory_space<vmem>>, vector<1x8x128xf32>
    %10 = vector.shape_cast %9 : vector<1x8x128xf32> to vector<8x128xf32>
    %c0_5 = arith.constant 0 : index
    %c0_6 = arith.constant 0 : index
    %c0_7 = arith.constant 0 : index
    %11 = vector.load %arg2[%c0_5, %c0_6, %c0_7] : memref<2x32x128xf32, #tpu.memory_space<vmem>>, vector<1x32x128xf32>
    %12 = vector.shape_cast %11 : vector<1x32x128xf32> to vector<32x128xf32>
    %cst_8 = arith.constant dense<0.000000e+00> : vector<16x128xf32>
    %13 = tpu.matmul %8, %12, %cst_8 {dimension_numbers = #tpu.dot_dimension_numbers<[1], [0], [0], [1], [0, 0, 1, 1], [], []>} : vector<16x32xf32>, vector<32x128xf32>, vector<16x128xf32> -> vector<16x128xf32>
    %14 = vector.extract_strided_slice %10 {offsets = [0, 0], sizes = [1, 128], strides = [1, 1]} : vector<8x128xf32> to vector<1x128xf32>
    %15 = vector.broadcast %14 : vector<1x128xf32> to vector<16x128xf32>
    %16 = arith.addf %13, %15 : vector<16x128xf32>
    %17 = vector.extract_strided_slice %16 {offsets = [0, 0], sizes = [16, 32], strides = [1, 1]} : vector<16x128xf32> to vector<16x32xf32>
    %cst_9 = arith.constant 0.353553385 : f32
    %18 = vector.broadcast %cst_9 : f32 to vector<16x32xf32>
    %19 = arith.mulf %17, %18 : vector<16x32xf32>
    %20 = vector.extract_strided_slice %16 {offsets = [0, 32], sizes = [16, 32], strides = [1, 1]} : vector<16x128xf32> to vector<16x32xf32>
    %21 = vector.extract_strided_slice %16 {offsets = [0, 64], sizes = [16, 32], strides = [1, 1]} : vector<16x128xf32> to vector<16x32xf32>
    %22 = vector.extract_strided_slice %16 {offsets = [0, 96], sizes = [16, 4], strides = [1, 1]} : vector<16x128xf32> to vector<16x4xf32>
    %cst_10 = arith.constant 5.000000e+00 : f32
    %23 = vector.broadcast %cst_10 : f32 to vector<16x4xf32>
    %24 = arith.mulf %22, %23 : vector<16x4xf32>
    %25 = arith.negf %24 : vector<16x4xf32>
    %26 = math.exp %25 : vector<16x4xf32>
    %cst_11 = arith.constant 1.000000e+00 : f32
    %27 = vector.broadcast %cst_11 : f32 to vector<16x4xf32>
    %28 = arith.addf %27, %26 : vector<16x4xf32>
    %29 = arith.divf %27, %28 : vector<16x4xf32>
    %cst_12 = arith.constant 9.99999974E-6 : f32
    %30 = vector.broadcast %cst_12 : f32 to vector<16x4xf32>
    %31 = arith.addf %29, %30 : vector<16x4xf32>
    %cst_13 = arith.constant 1.09861231 : f32
    %32 = vector.broadcast %cst_13 : f32 to vector<16x4xf32>
    %33 = arith.mulf %31, %32 : vector<16x4xf32>
    %34 = math.exp %33 : vector<16x4xf32>
    %cst_14 = arith.constant 1.000000e+00 : f32
    %35 = vector.broadcast %cst_14 : f32 to vector<16x4xf32>
    %36 = arith.subf %34, %35 : vector<16x4xf32>
    %37 = tpu.reciprocal %36 {approx = true} : vector<16x4xf32> -> vector<16x4xf32>
    %cst_15 = arith.constant 0.398942292 : f32
    %38 = vector.broadcast %cst_15 : f32 to vector<16x4xf32>
    %39 = arith.mulf %38, %37 : vector<16x4xf32>
    %40 = arith.mulf %37, %37 : vector<16x4xf32>
    %41 = vector.extract_strided_slice %19 {offsets = [0, 0], sizes = [16, 8], strides = [1, 1]} : vector<16x32xf32> to vector<16x8xf32>
    %42 = vector.extract_strided_slice %20 {offsets = [0, 0], sizes = [16, 8], strides = [1, 1]} : vector<16x32xf32> to vector<16x8xf32>
    %43 = vector.extract_strided_slice %21 {offsets = [0, 0], sizes = [16, 8], strides = [1, 1]} : vector<16x32xf32> to vector<16x8xf32>
    %cst_16 = arith.constant dense<0.000000e+00> : vector<16x16xf32>
    %44 = tpu.matmul %41, %42, %cst_16 {dimension_numbers = #tpu.dot_dimension_numbers<[1], [1], [0], [0], [0, 0, 1, 0], [], []>} : vector<16x8xf32>, vector<16x8xf32>, vector<16x16xf32> -> vector<16x16xf32>
    %cst_17 = arith.constant dense<0xFF800000> : vector<16xf32>
    %45 = vector.multi_reduction <maximumf>, %44, %cst_17 [1] : vector<16x16xf32> to vector<16xf32>
    %46 = vector.shape_cast %45 : vector<16xf32> to vector<16x1xf32>
    %47 = vector.broadcast %46 : vector<16x1xf32> to vector<16x16xf32>
    %48 = arith.subf %44, %47 : vector<16x16xf32>
    %49 = math.exp %48 : vector<16x16xf32>
    %cst_18 = arith.constant dense<0.000000e+00> : vector<16xf32>
    %50 = vector.multi_reduction <add>, %49, %cst_18 [1] : vector<16x16xf32> to vector<16xf32>
    %51 = vector.shape_cast %50 : vector<16xf32> to vector<16x1xf32>
    %52 = vector.broadcast %51 : vector<16x1xf32> to vector<16x16xf32>
    %53 = arith.divf %49, %52 : vector<16x16xf32>
    %54 = vector.extract_strided_slice %39 {offsets = [0, 0], sizes = [16, 1], strides = [1, 1]} : vector<16x4xf32> to vector<16x1xf32>
    %55 = vector.extract_strided_slice %40 {offsets = [0, 0], sizes = [16, 1], strides = [1, 1]} : vector<16x4xf32> to vector<16x1xf32>
    %56 = vector.broadcast %55 : vector<16x1xf32> to vector<16x16xf32>
    %57 = arith.mulf %6, %56 : vector<16x16xf32>
    %58 = math.exp %57 : vector<16x16xf32>
    %59 = vector.broadcast %54 : vector<16x1xf32> to vector<16x16xf32>
    %60 = arith.mulf %59, %58 : vector<16x16xf32>
    %c0_19 = arith.constant 0 : index
    %c0_20 = arith.constant 0 : index
    %c0_21 = arith.constant 0 : index
    %c0_22 = arith.constant 0 : index
    %c0_23 = arith.constant 0 : index
    %61 = vector.load %arg9[%c0_19, %c0_20, %c0_21, %c0_22, %c0_23] : memref<2x1x4x16x16xf32, #tpu.memory_space<vmem>>, vector<1x1x1x16x16xf32>
    %62 = vector.shape_cast %61 : vector<1x1x1x16x16xf32> to vector<16x16xf32>
    %63 = vector.shape_cast %53 : vector<16x16xf32> to vector<1x1x1x16x16xf32>
    tpu.vector_store %arg9[%c0_19, %c0_20, %c0_21, %c0_22, %c0_23], %63 {strides = array<i32>} : memref<2x1x4x16x16xf32, #tpu.memory_space<vmem>>, vector<1x1x1x16x16xf32>,
    %c0_24 = arith.constant 0 : index
    %c0_25 = arith.constant 0 : index
    %c0_26 = arith.constant 0 : index
    %c0_27 = arith.constant 0 : index
    %c0_28 = arith.constant 0 : index
    %64 = vector.load %arg10[%c0_24, %c0_25, %c0_26, %c0_27, %c0_28] : memref<2x1x4x16x16xf32, #tpu.memory_space<vmem>>, vector<1x1x1x16x16xf32>
    %65 = vector.shape_cast %64 : vector<1x1x1x16x16xf32> to vector<16x16xf32>
    %66 = vector.shape_cast %60 : vector<16x16xf32> to vector<1x1x1x16x16xf32>
    tpu.vector_store %arg10[%c0_24, %c0_25, %c0_26, %c0_27, %c0_28], %66 {strides = array<i32>} : memref<2x1x4x16x16xf32, #tpu.memory_space<vmem>>, vector<1x1x1x16x16xf32>,
    %67 = vector.extract_strided_slice %36 {offsets = [0, 0], sizes = [16, 1], strides = [1, 1]} : vector<16x4xf32> to vector<16x1xf32>
    %68 = vector.shape_cast %67 : vector<16x1xf32> to vector<16x1xf32>
    %69 = vector.broadcast %68 : vector<16x1xf32> to vector<16x16xf32>
    %c0_29 = arith.constant 0 : index
    %c0_30 = arith.constant 0 : index
    %c0_31 = arith.constant 0 : index
    %c0_32 = arith.constant 0 : index
    %c0_33 = arith.constant 0 : index
    %70 = vector.load %arg11[%c0_29, %c0_30, %c0_31, %c0_32, %c0_33] : memref<2x1x4x16x16xf32, #tpu.memory_space<vmem>>, vector<1x1x1x16x16xf32>
    %71 = vector.shape_cast %70 : vector<1x1x1x16x16xf32> to vector<16x16xf32>
    %72 = vector.shape_cast %69 : vector<16x16xf32> to vector<1x1x1x16x16xf32>
    tpu.vector_store %arg11[%c0_29, %c0_30, %c0_31, %c0_32, %c0_33], %72 {strides = array<i32>} : memref<2x1x4x16x16xf32, #tpu.memory_space<vmem>>, vector<1x1x1x16x16xf32>,
    %cst_34 = arith.constant dense<0.000000e+00> : vector<16x8xf32>
    %73 = tpu.matmul %53, %43, %cst_34 {dimension_numbers = #tpu.dot_dimension_numbers<[1], [0], [0], [1], [0, 0, 1, 1], [], []>} : vector<16x16xf32>, vector<16x8xf32>, vector<16x8xf32> -> vector<16x8xf32>
    %c0_35 = arith.constant 0 : index
    %c0_36 = arith.constant 0 : index
    %c0_37 = arith.constant 0 : index
    %74 = vector.load %arg3[%c0_35, %c0_36, %c0_37] : memref<2x32x32xf32, #tpu.memory_space<vmem>>, vector<1x8x32xf32>
    %75 = vector.shape_cast %74 : vector<1x8x32xf32> to vector<8x32xf32>
    %cst_38 = arith.constant dense<0.000000e+00> : vector<16x32xf32>
    %76 = tpu.matmul %73, %75, %cst_38 {dimension_numbers = #tpu.dot_dimension_numbers<[1], [0], [0], [1], [0, 0, 1, 1], [], []>} : vector<16x8xf32>, vector<8x32xf32>, vector<16x32xf32> -> vector<16x32xf32>
    %77 = vector.extract_strided_slice %19 {offsets = [0, 8], sizes = [16, 8], strides = [1, 1]} : vector<16x32xf32> to vector<16x8xf32>
    %78 = vector.extract_strided_slice %20 {offsets = [0, 8], sizes = [16, 8], strides = [1, 1]} : vector<16x32xf32> to vector<16x8xf32>
    %79 = vector.extract_strided_slice %21 {offsets = [0, 8], sizes = [16, 8], strides = [1, 1]} : vector<16x32xf32> to vector<16x8xf32>
    %cst_39 = arith.constant dense<0.000000e+00> : vector<16x16xf32>
    %80 = tpu.matmul %77, %78, %cst_39 {dimension_numbers = #tpu.dot_dimension_numbers<[1], [1], [0], [0], [0, 0, 1, 0], [], []>} : vector<16x8xf32>, vector<16x8xf32>, vector<16x16xf32> -> vector<16x16xf32>
    %cst_40 = arith.constant dense<0xFF800000> : vector<16xf32>
    %81 = vector.multi_reduction <maximumf>, %80, %cst_40 [1] : vector<16x16xf32> to vector<16xf32>
    %82 = vector.shape_cast %81 : vector<16xf32> to vector<16x1xf32>
    %83 = vector.broadcast %82 : vector<16x1xf32> to vector<16x16xf32>
    %84 = arith.subf %80, %83 : vector<16x16xf32>
    %85 = math.exp %84 : vector<16x16xf32>
    %cst_41 = arith.constant dense<0.000000e+00> : vector<16xf32>
    %86 = vector.multi_reduction <add>, %85, %cst_41 [1] : vector<16x16xf32> to vector<16xf32>
    %87 = vector.shape_cast %86 : vector<16xf32> to vector<16x1xf32>
    %88 = vector.broadcast %87 : vector<16x1xf32> to vector<16x16xf32>
    %89 = arith.divf %85, %88 : vector<16x16xf32>
    %90 = vector.extract_strided_slice %39 {offsets = [0, 1], sizes = [16, 1], strides = [1, 1]} : vector<16x4xf32> to vector<16x1xf32>
    %91 = vector.extract_strided_slice %40 {offsets = [0, 1], sizes = [16, 1], strides = [1, 1]} : vector<16x4xf32> to vector<16x1xf32>
    %92 = vector.broadcast %91 : vector<16x1xf32> to vector<16x16xf32>
    %93 = arith.mulf %6, %92 : vector<16x16xf32>
    %94 = math.exp %93 : vector<16x16xf32>
    %95 = vector.broadcast %90 : vector<16x1xf32> to vector<16x16xf32>
    %96 = arith.mulf %95, %94 : vector<16x16xf32>
    %c0_42 = arith.constant 0 : index
    %c0_43 = arith.constant 0 : index
    %c1 = arith.constant 1 : index
    %c0_44 = arith.constant 0 : index
    %c0_45 = arith.constant 0 : index
    %97 = vector.load %arg9[%c0_42, %c0_43, %c1, %c0_44, %c0_45] : memref<2x1x4x16x16xf32, #tpu.memory_space<vmem>>, vector<1x1x1x16x16xf32>
    %98 = vector.shape_cast %97 : vector<1x1x1x16x16xf32> to vector<16x16xf32>
    %99 = vector.shape_cast %89 : vector<16x16xf32> to vector<1x1x1x16x16xf32>
    tpu.vector_store %arg9[%c0_42, %c0_43, %c1, %c0_44, %c0_45], %99 {strides = array<i32>} : memref<2x1x4x16x16xf32, #tpu.memory_space<vmem>>, vector<1x1x1x16x16xf32>,
    %c0_46 = arith.constant 0 : index
    %c0_47 = arith.constant 0 : index
    %c1_48 = arith.constant 1 : index
    %c0_49 = arith.constant 0 : index
    %c0_50 = arith.constant 0 : index
    %100 = vector.load %arg10[%c0_46, %c0_47, %c1_48, %c0_49, %c0_50] : memref<2x1x4x16x16xf32, #tpu.memory_space<vmem>>, vector<1x1x1x16x16xf32>
    %101 = vector.shape_cast %100 : vector<1x1x1x16x16xf32> to vector<16x16xf32>
    %102 = vector.shape_cast %96 : vector<16x16xf32> to vector<1x1x1x16x16xf32>
    tpu.vector_store %arg10[%c0_46, %c0_47, %c1_48, %c0_49, %c0_50], %102 {strides = array<i32>} : memref<2x1x4x16x16xf32, #tpu.memory_space<vmem>>, vector<1x1x1x16x16xf32>,
    %103 = vector.extract_strided_slice %36 {offsets = [0, 1], sizes = [16, 1], strides = [1, 1]} : vector<16x4xf32> to vector<16x1xf32>
    %104 = vector.shape_cast %103 : vector<16x1xf32> to vector<16x1xf32>
    %105 = vector.broadcast %104 : vector<16x1xf32> to vector<16x16xf32>
    %c0_51 = arith.constant 0 : index
    %c0_52 = arith.constant 0 : index
    %c1_53 = arith.constant 1 : index
    %c0_54 = arith.constant 0 : index
    %c0_55 = arith.constant 0 : index
    %106 = vector.load %arg11[%c0_51, %c0_52, %c1_53, %c0_54, %c0_55] : memref<2x1x4x16x16xf32, #tpu.memory_space<vmem>>, vector<1x1x1x16x16xf32>
    %107 = vector.shape_cast %106 : vector<1x1x1x16x16xf32> to vector<16x16xf32>
    %108 = vector.shape_cast %105 : vector<16x16xf32> to vector<1x1x1x16x16xf32>
    tpu.vector_store %arg11[%c0_51, %c0_52, %c1_53, %c0_54, %c0_55], %108 {strides = array<i32>} : memref<2x1x4x16x16xf32, #tpu.memory_space<vmem>>, vector<1x1x1x16x16xf32>,
    %cst_56 = arith.constant dense<0.000000e+00> : vector<16x8xf32>
    %109 = tpu.matmul %89, %79, %cst_56 {dimension_numbers = #tpu.dot_dimension_numbers<[1], [0], [0], [1], [0, 0, 1, 1], [], []>} : vector<16x16xf32>, vector<16x8xf32>, vector<16x8xf32> -> vector<16x8xf32>
    %c0_57 = arith.constant 0 : index
    %c8 = arith.constant 8 : index
    %c0_58 = arith.constant 0 : index
    %110 = vector.load %arg3[%c0_57, %c8, %c0_58] : memref<2x32x32xf32, #tpu.memory_space<vmem>>, vector<1x8x32xf32>
    %111 = vector.shape_cast %110 : vector<1x8x32xf32> to vector<8x32xf32>
    %cst_59 = arith.constant dense<0.000000e+00> : vector<16x32xf32>
    %112 = tpu.matmul %109, %111, %cst_59 {dimension_numbers = #tpu.dot_dimension_numbers<[1], [0], [0], [1], [0, 0, 1, 1], [], []>} : vector<16x8xf32>, vector<8x32xf32>, vector<16x32xf32> -> vector<16x32xf32>
    %113 = arith.addf %76, %112 : vector<16x32xf32>
    %114 = vector.extract_strided_slice %19 {offsets = [0, 16], sizes = [16, 8], strides = [1, 1]} : vector<16x32xf32> to vector<16x8xf32>
    %115 = vector.extract_strided_slice %20 {offsets = [0, 16], sizes = [16, 8], strides = [1, 1]} : vector<16x32xf32> to vector<16x8xf32>
    %116 = vector.extract_strided_slice %21 {offsets = [0, 16], sizes = [16, 8], strides = [1, 1]} : vector<16x32xf32> to vector<16x8xf32>
    %cst_60 = arith.constant dense<0.000000e+00> : vector<16x16xf32>
    %117 = tpu.matmul %114, %115, %cst_60 {dimension_numbers = #tpu.dot_dimension_numbers<[1], [1], [0], [0], [0, 0, 1, 0], [], []>} : vector<16x8xf32>, vector<16x8xf32>, vector<16x16xf32> -> vector<16x16xf32>
    %cst_61 = arith.constant dense<0xFF800000> : vector<16xf32>
    %118 = vector.multi_reduction <maximumf>, %117, %cst_61 [1] : vector<16x16xf32> to vector<16xf32>
    %119 = vector.shape_cast %118 : vector<16xf32> to vector<16x1xf32>
    %120 = vector.broadcast %119 : vector<16x1xf32> to vector<16x16xf32>
    %121 = arith.subf %117, %120 : vector<16x16xf32>
    %122 = math.exp %121 : vector<16x16xf32>
    %cst_62 = arith.constant dense<0.000000e+00> : vector<16xf32>
    %123 = vector.multi_reduction <add>, %122, %cst_62 [1] : vector<16x16xf32> to vector<16xf32>
    %124 = vector.shape_cast %123 : vector<16xf32> to vector<16x1xf32>
    %125 = vector.broadcast %124 : vector<16x1xf32> to vector<16x16xf32>
    %126 = arith.divf %122, %125 : vector<16x16xf32>
    %127 = vector.extract_strided_slice %39 {offsets = [0, 2], sizes = [16, 1], strides = [1, 1]} : vector<16x4xf32> to vector<16x1xf32>
    %128 = vector.extract_strided_slice %40 {offsets = [0, 2], sizes = [16, 1], strides = [1, 1]} : vector<16x4xf32> to vector<16x1xf32>
    %129 = vector.broadcast %128 : vector<16x1xf32> to vector<16x16xf32>
    %130 = arith.mulf %6, %129 : vector<16x16xf32>
    %131 = math.exp %130 : vector<16x16xf32>
    %132 = vector.broadcast %127 : vector<16x1xf32> to vector<16x16xf32>
    %133 = arith.mulf %132, %131 : vector<16x16xf32>
    %c0_63 = arith.constant 0 : index
    %c0_64 = arith.constant 0 : index
    %c2 = arith.constant 2 : index
    %c0_65 = arith.constant 0 : index
    %c0_66 = arith.constant 0 : index
    %134 = vector.load %arg9[%c0_63, %c0_64, %c2, %c0_65, %c0_66] : memref<2x1x4x16x16xf32, #tpu.memory_space<vmem>>, vector<1x1x1x16x16xf32>
    %135 = vector.shape_cast %134 : vector<1x1x1x16x16xf32> to vector<16x16xf32>
    %136 = vector.shape_cast %126 : vector<16x16xf32> to vector<1x1x1x16x16xf32>
    tpu.vector_store %arg9[%c0_63, %c0_64, %c2, %c0_65, %c0_66], %136 {strides = array<i32>} : memref<2x1x4x16x16xf32, #tpu.memory_space<vmem>>, vector<1x1x1x16x16xf32>,
    %c0_67 = arith.constant 0 : index
    %c0_68 = arith.constant 0 : index
    %c2_69 = arith.constant 2 : index
    %c0_70 = arith.constant 0 : index
    %c0_71 = arith.constant 0 : index
    %137 = vector.load %arg10[%c0_67, %c0_68, %c2_69, %c0_70, %c0_71] : memref<2x1x4x16x16xf32, #tpu.memory_space<vmem>>, vector<1x1x1x16x16xf32>
    %138 = vector.shape_cast %137 : vector<1x1x1x16x16xf32> to vector<16x16xf32>
    %139 = vector.shape_cast %133 : vector<16x16xf32> to vector<1x1x1x16x16xf32>
    tpu.vector_store %arg10[%c0_67, %c0_68, %c2_69, %c0_70, %c0_71], %139 {strides = array<i32>} : memref<2x1x4x16x16xf32, #tpu.memory_space<vmem>>, vector<1x1x1x16x16xf32>,
    %140 = vector.extract_strided_slice %36 {offsets = [0, 2], sizes = [16, 1], strides = [1, 1]} : vector<16x4xf32> to vector<16x1xf32>
    %141 = vector.shape_cast %140 : vector<16x1xf32> to vector<16x1xf32>
    %142 = vector.broadcast %141 : vector<16x1xf32> to vector<16x16xf32>
    %c0_72 = arith.constant 0 : index
    %c0_73 = arith.constant 0 : index
    %c2_74 = arith.constant 2 : index
    %c0_75 = arith.constant 0 : index
    %c0_76 = arith.constant 0 : index
    %143 = vector.load %arg11[%c0_72, %c0_73, %c2_74, %c0_75, %c0_76] : memref<2x1x4x16x16xf32, #tpu.memory_space<vmem>>, vector<1x1x1x16x16xf32>
    %144 = vector.shape_cast %143 : vector<1x1x1x16x16xf32> to vector<16x16xf32>
    %145 = vector.shape_cast %142 : vector<16x16xf32> to vector<1x1x1x16x16xf32>
    tpu.vector_store %arg11[%c0_72, %c0_73, %c2_74, %c0_75, %c0_76], %145 {strides = array<i32>} : memref<2x1x4x16x16xf32, #tpu.memory_space<vmem>>, vector<1x1x1x16x16xf32>,
    %cst_77 = arith.constant dense<0.000000e+00> : vector<16x8xf32>
    %146 = tpu.matmul %126, %116, %cst_77 {dimension_numbers = #tpu.dot_dimension_numbers<[1], [0], [0], [1], [0, 0, 1, 1], [], []>} : vector<16x16xf32>, vector<16x8xf32>, vector<16x8xf32> -> vector<16x8xf32>
    %c0_78 = arith.constant 0 : index
    %c16 = arith.constant 16 : index
    %c0_79 = arith.constant 0 : index
    %147 = vector.load %arg3[%c0_78, %c16, %c0_79] : memref<2x32x32xf32, #tpu.memory_space<vmem>>, vector<1x8x32xf32>
    %148 = vector.shape_cast %147 : vector<1x8x32xf32> to vector<8x32xf32>
    %cst_80 = arith.constant dense<0.000000e+00> : vector<16x32xf32>
    %149 = tpu.matmul %146, %148, %cst_80 {dimension_numbers = #tpu.dot_dimension_numbers<[1], [0], [0], [1], [0, 0, 1, 1], [], []>} : vector<16x8xf32>, vector<8x32xf32>, vector<16x32xf32> -> vector<16x32xf32>
    %150 = arith.addf %113, %149 : vector<16x32xf32>
    %151 = vector.extract_strided_slice %19 {offsets = [0, 24], sizes = [16, 8], strides = [1, 1]} : vector<16x32xf32> to vector<16x8xf32>
    %152 = vector.extract_strided_slice %20 {offsets = [0, 24], sizes = [16, 8], strides = [1, 1]} : vector<16x32xf32> to vector<16x8xf32>
    %153 = vector.extract_strided_slice %21 {offsets = [0, 24], sizes = [16, 8], strides = [1, 1]} : vector<16x32xf32> to vector<16x8xf32>
    %cst_81 = arith.constant dense<0.000000e+00> : vector<16x16xf32>
    %154 = tpu.matmul %151, %152, %cst_81 {dimension_numbers = #tpu.dot_dimension_numbers<[1], [1], [0], [0], [0, 0, 1, 0], [], []>} : vector<16x8xf32>, vector<16x8xf32>, vector<16x16xf32> -> vector<16x16xf32>
    %cst_82 = arith.constant dense<0xFF800000> : vector<16xf32>
    %155 = vector.multi_reduction <maximumf>, %154, %cst_82 [1] : vector<16x16xf32> to vector<16xf32>
    %156 = vector.shape_cast %155 : vector<16xf32> to vector<16x1xf32>
    %157 = vector.broadcast %156 : vector<16x1xf32> to vector<16x16xf32>
    %158 = arith.subf %154, %157 : vector<16x16xf32>
    %159 = math.exp %158 : vector<16x16xf32>
    %cst_83 = arith.constant dense<0.000000e+00> : vector<16xf32>
    %160 = vector.multi_reduction <add>, %159, %cst_83 [1] : vector<16x16xf32> to vector<16xf32>
    %161 = vector.shape_cast %160 : vector<16xf32> to vector<16x1xf32>
    %162 = vector.broadcast %161 : vector<16x1xf32> to vector<16x16xf32>
    %163 = arith.divf %159, %162 : vector<16x16xf32>
    %164 = vector.extract_strided_slice %39 {offsets = [0, 3], sizes = [16, 1], strides = [1, 1]} : vector<16x4xf32> to vector<16x1xf32>
    %165 = vector.extract_strided_slice %40 {offsets = [0, 3], sizes = [16, 1], strides = [1, 1]} : vector<16x4xf32> to vector<16x1xf32>
    %166 = vector.broadcast %165 : vector<16x1xf32> to vector<16x16xf32>
    %167 = arith.mulf %6, %166 : vector<16x16xf32>
    %168 = math.exp %167 : vector<16x16xf32>
    %169 = vector.broadcast %164 : vector<16x1xf32> to vector<16x16xf32>
    %170 = arith.mulf %169, %168 : vector<16x16xf32>
    %c0_84 = arith.constant 0 : index
    %c0_85 = arith.constant 0 : index
    %c3 = arith.constant 3 : index
    %c0_86 = arith.constant 0 : index
    %c0_87 = arith.constant 0 : index
    %171 = vector.load %arg9[%c0_84, %c0_85, %c3, %c0_86, %c0_87] : memref<2x1x4x16x16xf32, #tpu.memory_space<vmem>>, vector<1x1x1x16x16xf32>
    %172 = vector.shape_cast %171 : vector<1x1x1x16x16xf32> to vector<16x16xf32>
    %173 = vector.shape_cast %163 : vector<16x16xf32> to vector<1x1x1x16x16xf32>
    tpu.vector_store %arg9[%c0_84, %c0_85, %c3, %c0_86, %c0_87], %173 {strides = array<i32>} : memref<2x1x4x16x16xf32, #tpu.memory_space<vmem>>, vector<1x1x1x16x16xf32>,
    %c0_88 = arith.constant 0 : index
    %c0_89 = arith.constant 0 : index
    %c3_90 = arith.constant 3 : index
    %c0_91 = arith.constant 0 : index
    %c0_92 = arith.constant 0 : index
    %174 = vector.load %arg10[%c0_88, %c0_89, %c3_90, %c0_91, %c0_92] : memref<2x1x4x16x16xf32, #tpu.memory_space<vmem>>, vector<1x1x1x16x16xf32>
    %175 = vector.shape_cast %174 : vector<1x1x1x16x16xf32> to vector<16x16xf32>
    %176 = vector.shape_cast %170 : vector<16x16xf32> to vector<1x1x1x16x16xf32>
    tpu.vector_store %arg10[%c0_88, %c0_89, %c3_90, %c0_91, %c0_92], %176 {strides = array<i32>} : memref<2x1x4x16x16xf32, #tpu.memory_space<vmem>>, vector<1x1x1x16x16xf32>,
    %177 = vector.extract_strided_slice %36 {offsets = [0, 3], sizes = [16, 1], strides = [1, 1]} : vector<16x4xf32> to vector<16x1xf32>
    %178 = vector.shape_cast %177 : vector<16x1xf32> to vector<16x1xf32>
    %179 = vector.broadcast %178 : vector<16x1xf32> to vector<16x16xf32>
    %c0_93 = arith.constant 0 : index
    %c0_94 = arith.constant 0 : index
    %c3_95 = arith.constant 3 : index
    %c0_96 = arith.constant 0 : index
    %c0_97 = arith.constant 0 : index
    %180 = vector.load %arg11[%c0_93, %c0_94, %c3_95, %c0_96, %c0_97] : memref<2x1x4x16x16xf32, #tpu.memory_space<vmem>>, vector<1x1x1x16x16xf32>
    %181 = vector.shape_cast %180 : vector<1x1x1x16x16xf32> to vector<16x16xf32>
    %182 = vector.shape_cast %179 : vector<16x16xf32> to vector<1x1x1x16x16xf32>
    tpu.vector_store %arg11[%c0_93, %c0_94, %c3_95, %c0_96, %c0_97], %182 {strides = array<i32>} : memref<2x1x4x16x16xf32, #tpu.memory_space<vmem>>, vector<1x1x1x16x16xf32>,
    %cst_98 = arith.constant dense<0.000000e+00> : vector<16x8xf32>
    %183 = tpu.matmul %163, %153, %cst_98 {dimension_numbers = #tpu.dot_dimension_numbers<[1], [0], [0], [1], [0, 0, 1, 1], [], []>} : vector<16x16xf32>, vector<16x8xf32>, vector<16x8xf32> -> vector<16x8xf32>
    %c0_99 = arith.constant 0 : index
    %c24 = arith.constant 24 : index
    %c0_100 = arith.constant 0 : index
    %184 = vector.load %arg3[%c0_99, %c24, %c0_100] : memref<2x32x32xf32, #tpu.memory_space<vmem>>, vector<1x8x32xf32>
    %185 = vector.shape_cast %184 : vector<1x8x32xf32> to vector<8x32xf32>
    %cst_101 = arith.constant dense<0.000000e+00> : vector<16x32xf32>
    %186 = tpu.matmul %183, %185, %cst_101 {dimension_numbers = #tpu.dot_dimension_numbers<[1], [0], [0], [1], [0, 0, 1, 1], [], []>} : vector<16x8xf32>, vector<8x32xf32>, vector<16x32xf32> -> vector<16x32xf32>
    %187 = arith.addf %150, %186 : vector<16x32xf32>
    %188 = vector.extract_strided_slice %10 {offsets = [1, 0], sizes = [1, 32], strides = [1, 1]} : vector<8x128xf32> to vector<1x32xf32>
    %189 = vector.broadcast %188 : vector<1x32xf32> to vector<16x32xf32>
    %190 = arith.addf %187, %189 : vector<16x32xf32>
    %191 = arith.addf %8, %190 : vector<16x32xf32>
    %192 = vector.extract_strided_slice %10 {offsets = [4, 0], sizes = [1, 32], strides = [1, 1]} : vector<8x128xf32> to vector<1x32xf32>
    %193 = vector.extract_strided_slice %10 {offsets = [5, 0], sizes = [1, 32], strides = [1, 1]} : vector<8x128xf32> to vector<1x32xf32>
    %cst_102 = arith.constant dense<0.000000e+00> : vector<16xf32>
    %194 = vector.multi_reduction <add>, %191, %cst_102 [1] : vector<16x32xf32> to vector<16xf32>
    %195 = vector.shape_cast %194 : vector<16xf32> to vector<16x1xf32>
    %cst_103 = arith.constant 3.200000e+01 : f32
    %196 = vector.broadcast %cst_103 : f32 to vector<16x1xf32>
    %197 = arith.divf %195, %196 : vector<16x1xf32>
    %198 = vector.broadcast %197 : vector<16x1xf32> to vector<16x32xf32>
    %199 = arith.subf %191, %198 : vector<16x32xf32>
    %200 = arith.mulf %199, %199 : vector<16x32xf32>
    %cst_104 = arith.constant dense<0.000000e+00> : vector<16xf32>
    %201 = vector.multi_reduction <add>, %200, %cst_104 [1] : vector<16x32xf32> to vector<16xf32>
    %202 = vector.shape_cast %201 : vector<16xf32> to vector<16x1xf32>
    %cst_105 = arith.constant 3.200000e+01 : f32
    %203 = vector.broadcast %cst_105 : f32 to vector<16x1xf32>
    %204 = arith.divf %202, %203 : vector<16x1xf32>
    %205 = vector.broadcast %197 : vector<16x1xf32> to vector<16x32xf32>
    %206 = arith.subf %191, %205 : vector<16x32xf32>
    %cst_106 = arith.constant 9.99999974E-6 : f32
    %207 = vector.broadcast %cst_106 : f32 to vector<16x1xf32>
    %208 = arith.addf %204, %207 : vector<16x1xf32>
    %209 = math.sqrt %208 : vector<16x1xf32>
    %210 = vector.broadcast %209 : vector<16x1xf32> to vector<16x32xf32>
    %211 = arith.divf %206, %210 : vector<16x32xf32>
    %212 = vector.broadcast %192 : vector<1x32xf32> to vector<16x32xf32>
    %213 = arith.mulf %211, %212 : vector<16x32xf32>
    %214 = vector.broadcast %193 : vector<1x32xf32> to vector<16x32xf32>
    %215 = arith.addf %213, %214 : vector<16x32xf32>
    %c0_107 = arith.constant 0 : index
    %c0_108 = arith.constant 0 : index
    %c0_109 = arith.constant 0 : index
    %216 = vector.load %arg4[%c0_107, %c0_108, %c0_109] : memref<2x32x64xf32, #tpu.memory_space<vmem>>, vector<1x32x64xf32>
    %217 = vector.shape_cast %216 : vector<1x32x64xf32> to vector<32x64xf32>
    %cst_110 = arith.constant dense<0.000000e+00> : vector<16x64xf32>
    %218 = tpu.matmul %215, %217, %cst_110 {dimension_numbers = #tpu.dot_dimension_numbers<[1], [0], [0], [1], [0, 0, 1, 1], [], []>} : vector<16x32xf32>, vector<32x64xf32>, vector<16x64xf32> -> vector<16x64xf32>
    %219 = vector.extract_strided_slice %10 {offsets = [2, 0], sizes = [1, 64], strides = [1, 1]} : vector<8x128xf32> to vector<1x64xf32>
    %220 = vector.broadcast %219 : vector<1x64xf32> to vector<16x64xf32>
    %221 = arith.addf %218, %220 : vector<16x64xf32>
    %cst_111 = arith.constant 0.000000e+00 : f32
    %222 = vector.broadcast %cst_111 : f32 to vector<16x64xf32>
    %223 = arith.maximumf %221, %222 : vector<16x64xf32>
    %c0_112 = arith.constant 0 : index
    %c0_113 = arith.constant 0 : index
    %c0_114 = arith.constant 0 : index
    %224 = vector.load %arg5[%c0_112, %c0_113, %c0_114] : memref<2x64x32xf32, #tpu.memory_space<vmem>>, vector<1x64x32xf32>
    %225 = vector.shape_cast %224 : vector<1x64x32xf32> to vector<64x32xf32>
    %cst_115 = arith.constant dense<0.000000e+00> : vector<16x32xf32>
    %226 = tpu.matmul %223, %225, %cst_115 {dimension_numbers = #tpu.dot_dimension_numbers<[1], [0], [0], [1], [0, 0, 1, 1], [], []>} : vector<16x64xf32>, vector<64x32xf32>, vector<16x32xf32> -> vector<16x32xf32>
    %227 = vector.extract_strided_slice %10 {offsets = [3, 0], sizes = [1, 32], strides = [1, 1]} : vector<8x128xf32> to vector<1x32xf32>
    %228 = vector.broadcast %227 : vector<1x32xf32> to vector<16x32xf32>
    %229 = arith.addf %226, %228 : vector<16x32xf32>
    %230 = arith.addf %215, %229 : vector<16x32xf32>
    %231 = vector.extract_strided_slice %10 {offsets = [6, 0], sizes = [1, 32], strides = [1, 1]} : vector<8x128xf32> to vector<1x32xf32>
    %232 = vector.extract_strided_slice %10 {offsets = [7, 0], sizes = [1, 32], strides = [1, 1]} : vector<8x128xf32> to vector<1x32xf32>
    %cst_116 = arith.constant dense<0.000000e+00> : vector<16xf32>
    %233 = vector.multi_reduction <add>, %230, %cst_116 [1] : vector<16x32xf32> to vector<16xf32>
    %234 = vector.shape_cast %233 : vector<16xf32> to vector<16x1xf32>
    %cst_117 = arith.constant 3.200000e+01 : f32
    %235 = vector.broadcast %cst_117 : f32 to vector<16x1xf32>
    %236 = arith.divf %234, %235 : vector<16x1xf32>
    %237 = vector.broadcast %236 : vector<16x1xf32> to vector<16x32xf32>
    %238 = arith.subf %230, %237 : vector<16x32xf32>
    %239 = arith.mulf %238, %238 : vector<16x32xf32>
    %cst_118 = arith.constant dense<0.000000e+00> : vector<16xf32>
    %240 = vector.multi_reduction <add>, %239, %cst_118 [1] : vector<16x32xf32> to vector<16xf32>
    %241 = vector.shape_cast %240 : vector<16xf32> to vector<16x1xf32>
    %cst_119 = arith.constant 3.200000e+01 : f32
    %242 = vector.broadcast %cst_119 : f32 to vector<16x1xf32>
    %243 = arith.divf %241, %242 : vector<16x1xf32>
    %244 = vector.broadcast %236 : vector<16x1xf32> to vector<16x32xf32>
    %245 = arith.subf %230, %244 : vector<16x32xf32>
    %cst_120 = arith.constant 9.99999974E-6 : f32
    %246 = vector.broadcast %cst_120 : f32 to vector<16x1xf32>
    %247 = arith.addf %243, %246 : vector<16x1xf32>
    %248 = math.sqrt %247 : vector<16x1xf32>
    %249 = vector.broadcast %248 : vector<16x1xf32> to vector<16x32xf32>
    %250 = arith.divf %245, %249 : vector<16x32xf32>
    %251 = vector.broadcast %231 : vector<1x32xf32> to vector<16x32xf32>
    %252 = arith.mulf %250, %251 : vector<16x32xf32>
    %253 = vector.broadcast %232 : vector<1x32xf32> to vector<16x32xf32>
    %254 = arith.addf %252, %253 : vector<16x32xf32>
    %c1_121 = arith.constant 1 : index
    %c0_122 = arith.constant 0 : index
    %c0_123 = arith.constant 0 : index
    %255 = vector.load %arg6[%c1_121, %c0_122, %c0_123] : memref<2x8x128xf32, #tpu.memory_space<vmem>>, vector<1x8x128xf32>
    %256 = vector.shape_cast %255 : vector<1x8x128xf32> to vector<8x128xf32>
    %c1_124 = arith.constant 1 : index
    %c0_125 = arith.constant 0 : index
    %c0_126 = arith.constant 0 : index
    %257 = vector.load %arg2[%c1_124, %c0_125, %c0_126] : memref<2x32x128xf32, #tpu.memory_space<vmem>>, vector<1x32x128xf32>
    %258 = vector.shape_cast %257 : vector<1x32x128xf32> to vector<32x128xf32>
    %cst_127 = arith.constant dense<0.000000e+00> : vector<16x128xf32>
    %259 = tpu.matmul %254, %258, %cst_127 {dimension_numbers = #tpu.dot_dimension_numbers<[1], [0], [0], [1], [0, 0, 1, 1], [], []>} : vector<16x32xf32>, vector<32x128xf32>, vector<16x128xf32> -> vector<16x128xf32>
    %260 = vector.extract_strided_slice %256 {offsets = [0, 0], sizes = [1, 128], strides = [1, 1]} : vector<8x128xf32> to vector<1x128xf32>
    %261 = vector.broadcast %260 : vector<1x128xf32> to vector<16x128xf32>
    %262 = arith.addf %259, %261 : vector<16x128xf32>
    %263 = vector.extract_strided_slice %262 {offsets = [0, 0], sizes = [16, 32], strides = [1, 1]} : vector<16x128xf32> to vector<16x32xf32>
    %cst_128 = arith.constant 0.353553385 : f32
    %264 = vector.broadcast %cst_128 : f32 to vector<16x32xf32>
    %265 = arith.mulf %263, %264 : vector<16x32xf32>
    %266 = vector.extract_strided_slice %262 {offsets = [0, 32], sizes = [16, 32], strides = [1, 1]} : vector<16x128xf32> to vector<16x32xf32>
    %267 = vector.extract_strided_slice %262 {offsets = [0, 64], sizes = [16, 32], strides = [1, 1]} : vector<16x128xf32> to vector<16x32xf32>
    %268 = vector.extract_strided_slice %262 {offsets = [0, 96], sizes = [16, 4], strides = [1, 1]} : vector<16x128xf32> to vector<16x4xf32>
    %cst_129 = arith.constant 5.000000e+00 : f32
    %269 = vector.broadcast %cst_129 : f32 to vector<16x4xf32>
    %270 = arith.mulf %268, %269 : vector<16x4xf32>
    %271 = arith.negf %270 : vector<16x4xf32>
    %272 = math.exp %271 : vector<16x4xf32>
    %cst_130 = arith.constant 1.000000e+00 : f32
    %273 = vector.broadcast %cst_130 : f32 to vector<16x4xf32>
    %274 = arith.addf %273, %272 : vector<16x4xf32>
    %275 = arith.divf %273, %274 : vector<16x4xf32>
    %cst_131 = arith.constant 9.99999974E-6 : f32
    %276 = vector.broadcast %cst_131 : f32 to vector<16x4xf32>
    %277 = arith.addf %275, %276 : vector<16x4xf32>
    %cst_132 = arith.constant 1.09861231 : f32
    %278 = vector.broadcast %cst_132 : f32 to vector<16x4xf32>
    %279 = arith.mulf %277, %278 : vector<16x4xf32>
    %280 = math.exp %279 : vector<16x4xf32>
    %cst_133 = arith.constant 1.000000e+00 : f32
    %281 = vector.broadcast %cst_133 : f32 to vector<16x4xf32>
    %282 = arith.subf %280, %281 : vector<16x4xf32>
    %283 = tpu.reciprocal %282 {approx = true} : vector<16x4xf32> -> vector<16x4xf32>
    %cst_134 = arith.constant 0.398942292 : f32
    %284 = vector.broadcast %cst_134 : f32 to vector<16x4xf32>
    %285 = arith.mulf %284, %283 : vector<16x4xf32>
    %286 = arith.mulf %283, %283 : vector<16x4xf32>
    %287 = vector.extract_strided_slice %265 {offsets = [0, 0], sizes = [16, 8], strides = [1, 1]} : vector<16x32xf32> to vector<16x8xf32>
    %288 = vector.extract_strided_slice %266 {offsets = [0, 0], sizes = [16, 8], strides = [1, 1]} : vector<16x32xf32> to vector<16x8xf32>
    %289 = vector.extract_strided_slice %267 {offsets = [0, 0], sizes = [16, 8], strides = [1, 1]} : vector<16x32xf32> to vector<16x8xf32>
    %cst_135 = arith.constant dense<0.000000e+00> : vector<16x16xf32>
    %290 = tpu.matmul %287, %288, %cst_135 {dimension_numbers = #tpu.dot_dimension_numbers<[1], [1], [0], [0], [0, 0, 1, 0], [], []>} : vector<16x8xf32>, vector<16x8xf32>, vector<16x16xf32> -> vector<16x16xf32>
    %cst_136 = arith.constant dense<0xFF800000> : vector<16xf32>
    %291 = vector.multi_reduction <maximumf>, %290, %cst_136 [1] : vector<16x16xf32> to vector<16xf32>
    %292 = vector.shape_cast %291 : vector<16xf32> to vector<16x1xf32>
    %293 = vector.broadcast %292 : vector<16x1xf32> to vector<16x16xf32>
    %294 = arith.subf %290, %293 : vector<16x16xf32>
    %295 = math.exp %294 : vector<16x16xf32>
    %cst_137 = arith.constant dense<0.000000e+00> : vector<16xf32>
    %296 = vector.multi_reduction <add>, %295, %cst_137 [1] : vector<16x16xf32> to vector<16xf32>
    %297 = vector.shape_cast %296 : vector<16xf32> to vector<16x1xf32>
    %298 = vector.broadcast %297 : vector<16x1xf32> to vector<16x16xf32>
    %299 = arith.divf %295, %298 : vector<16x16xf32>
    %300 = vector.extract_strided_slice %285 {offsets = [0, 0], sizes = [16, 1], strides = [1, 1]} : vector<16x4xf32> to vector<16x1xf32>
    %301 = vector.extract_strided_slice %286 {offsets = [0, 0], sizes = [16, 1], strides = [1, 1]} : vector<16x4xf32> to vector<16x1xf32>
    %302 = vector.broadcast %301 : vector<16x1xf32> to vector<16x16xf32>
    %303 = arith.mulf %6, %302 : vector<16x16xf32>
    %304 = math.exp %303 : vector<16x16xf32>
    %305 = vector.broadcast %300 : vector<16x1xf32> to vector<16x16xf32>
    %306 = arith.mulf %305, %304 : vector<16x16xf32>
    %c1_138 = arith.constant 1 : index
    %c0_139 = arith.constant 0 : index
    %c0_140 = arith.constant 0 : index
    %c0_141 = arith.constant 0 : index
    %c0_142 = arith.constant 0 : index
    %307 = vector.load %arg9[%c1_138, %c0_139, %c0_140, %c0_141, %c0_142] : memref<2x1x4x16x16xf32, #tpu.memory_space<vmem>>, vector<1x1x1x16x16xf32>
    %308 = vector.shape_cast %307 : vector<1x1x1x16x16xf32> to vector<16x16xf32>
    %309 = vector.shape_cast %299 : vector<16x16xf32> to vector<1x1x1x16x16xf32>
    tpu.vector_store %arg9[%c1_138, %c0_139, %c0_140, %c0_141, %c0_142], %309 {strides = array<i32>} : memref<2x1x4x16x16xf32, #tpu.memory_space<vmem>>, vector<1x1x1x16x16xf32>,
    %c1_143 = arith.constant 1 : index
    %c0_144 = arith.constant 0 : index
    %c0_145 = arith.constant 0 : index
    %c0_146 = arith.constant 0 : index
    %c0_147 = arith.constant 0 : index
    %310 = vector.load %arg10[%c1_143, %c0_144, %c0_145, %c0_146, %c0_147] : memref<2x1x4x16x16xf32, #tpu.memory_space<vmem>>, vector<1x1x1x16x16xf32>
    %311 = vector.shape_cast %310 : vector<1x1x1x16x16xf32> to vector<16x16xf32>
    %312 = vector.shape_cast %306 : vector<16x16xf32> to vector<1x1x1x16x16xf32>
    tpu.vector_store %arg10[%c1_143, %c0_144, %c0_145, %c0_146, %c0_147], %312 {strides = array<i32>} : memref<2x1x4x16x16xf32, #tpu.memory_space<vmem>>, vector<1x1x1x16x16xf32>,
    %313 = vector.extract_strided_slice %282 {offsets = [0, 0], sizes = [16, 1], strides = [1, 1]} : vector<16x4xf32> to vector<16x1xf32>
    %314 = vector.shape_cast %313 : vector<16x1xf32> to vector<16x1xf32>
    %315 = vector.broadcast %314 : vector<16x1xf32> to vector<16x16xf32>
    %c1_148 = arith.constant 1 : index
    %c0_149 = arith.constant 0 : index
    %c0_150 = arith.constant 0 : index
    %c0_151 = arith.constant 0 : index
    %c0_152 = arith.constant 0 : index
    %316 = vector.load %arg11[%c1_148, %c0_149, %c0_150, %c0_151, %c0_152] : memref<2x1x4x16x16xf32, #tpu.memory_space<vmem>>, vector<1x1x1x16x16xf32>
    %317 = vector.shape_cast %316 : vector<1x1x1x16x16xf32> to vector<16x16xf32>
    %318 = vector.shape_cast %315 : vector<16x16xf32> to vector<1x1x1x16x16xf32>
    tpu.vector_store %arg11[%c1_148, %c0_149, %c0_150, %c0_151, %c0_152], %318 {strides = array<i32>} : memref<2x1x4x16x16xf32, #tpu.memory_space<vmem>>, vector<1x1x1x16x16xf32>,
    %cst_153 = arith.constant dense<0.000000e+00> : vector<16x8xf32>
    %319 = tpu.matmul %299, %289, %cst_153 {dimension_numbers = #tpu.dot_dimension_numbers<[1], [0], [0], [1], [0, 0, 1, 1], [], []>} : vector<16x16xf32>, vector<16x8xf32>, vector<16x8xf32> -> vector<16x8xf32>
    %c1_154 = arith.constant 1 : index
    %c0_155 = arith.constant 0 : index
    %c0_156 = arith.constant 0 : index
    %320 = vector.load %arg3[%c1_154, %c0_155, %c0_156] : memref<2x32x32xf32, #tpu.memory_space<vmem>>, vector<1x8x32xf32>
    %321 = vector.shape_cast %320 : vector<1x8x32xf32> to vector<8x32xf32>
    %cst_157 = arith.constant dense<0.000000e+00> : vector<16x32xf32>
    %322 = tpu.matmul %319, %321, %cst_157 {dimension_numbers = #tpu.dot_dimension_numbers<[1], [0], [0], [1], [0, 0, 1, 1], [], []>} : vector<16x8xf32>, vector<8x32xf32>, vector<16x32xf32> -> vector<16x32xf32>
    %323 = vector.extract_strided_slice %265 {offsets = [0, 8], sizes = [16, 8], strides = [1, 1]} : vector<16x32xf32> to vector<16x8xf32>
    %324 = vector.extract_strided_slice %266 {offsets = [0, 8], sizes = [16, 8], strides = [1, 1]} : vector<16x32xf32> to vector<16x8xf32>
    %325 = vector.extract_strided_slice %267 {offsets = [0, 8], sizes = [16, 8], strides = [1, 1]} : vector<16x32xf32> to vector<16x8xf32>
    %cst_158 = arith.constant dense<0.000000e+00> : vector<16x16xf32>
    %326 = tpu.matmul %323, %324, %cst_158 {dimension_numbers = #tpu.dot_dimension_numbers<[1], [1], [0], [0], [0, 0, 1, 0], [], []>} : vector<16x8xf32>, vector<16x8xf32>, vector<16x16xf32> -> vector<16x16xf32>
    %cst_159 = arith.constant dense<0xFF800000> : vector<16xf32>
    %327 = vector.multi_reduction <maximumf>, %326, %cst_159 [1] : vector<16x16xf32> to vector<16xf32>
    %328 = vector.shape_cast %327 : vector<16xf32> to vector<16x1xf32>
    %329 = vector.broadcast %328 : vector<16x1xf32> to vector<16x16xf32>
    %330 = arith.subf %326, %329 : vector<16x16xf32>
    %331 = math.exp %330 : vector<16x16xf32>
    %cst_160 = arith.constant dense<0.000000e+00> : vector<16xf32>
    %332 = vector.multi_reduction <add>, %331, %cst_160 [1] : vector<16x16xf32> to vector<16xf32>
    %333 = vector.shape_cast %332 : vector<16xf32> to vector<16x1xf32>
    %334 = vector.broadcast %333 : vector<16x1xf32> to vector<16x16xf32>
    %335 = arith.divf %331, %334 : vector<16x16xf32>
    %336 = vector.extract_strided_slice %285 {offsets = [0, 1], sizes = [16, 1], strides = [1, 1]} : vector<16x4xf32> to vector<16x1xf32>
    %337 = vector.extract_strided_slice %286 {offsets = [0, 1], sizes = [16, 1], strides = [1, 1]} : vector<16x4xf32> to vector<16x1xf32>
    %338 = vector.broadcast %337 : vector<16x1xf32> to vector<16x16xf32>
    %339 = arith.mulf %6, %338 : vector<16x16xf32>
    %340 = math.exp %339 : vector<16x16xf32>
    %341 = vector.broadcast %336 : vector<16x1xf32> to vector<16x16xf32>
    %342 = arith.mulf %341, %340 : vector<16x16xf32>
    %c1_161 = arith.constant 1 : index
    %c0_162 = arith.constant 0 : index
    %c1_163 = arith.constant 1 : index
    %c0_164 = arith.constant 0 : index
    %c0_165 = arith.constant 0 : index
    %343 = vector.load %arg9[%c1_161, %c0_162, %c1_163, %c0_164, %c0_165] : memref<2x1x4x16x16xf32, #tpu.memory_space<vmem>>, vector<1x1x1x16x16xf32>
    %344 = vector.shape_cast %343 : vector<1x1x1x16x16xf32> to vector<16x16xf32>
    %345 = vector.shape_cast %335 : vector<16x16xf32> to vector<1x1x1x16x16xf32>
    tpu.vector_store %arg9[%c1_161, %c0_162, %c1_163, %c0_164, %c0_165], %345 {strides = array<i32>} : memref<2x1x4x16x16xf32, #tpu.memory_space<vmem>>, vector<1x1x1x16x16xf32>,
    %c1_166 = arith.constant 1 : index
    %c0_167 = arith.constant 0 : index
    %c1_168 = arith.constant 1 : index
    %c0_169 = arith.constant 0 : index
    %c0_170 = arith.constant 0 : index
    %346 = vector.load %arg10[%c1_166, %c0_167, %c1_168, %c0_169, %c0_170] : memref<2x1x4x16x16xf32, #tpu.memory_space<vmem>>, vector<1x1x1x16x16xf32>
    %347 = vector.shape_cast %346 : vector<1x1x1x16x16xf32> to vector<16x16xf32>
    %348 = vector.shape_cast %342 : vector<16x16xf32> to vector<1x1x1x16x16xf32>
    tpu.vector_store %arg10[%c1_166, %c0_167, %c1_168, %c0_169, %c0_170], %348 {strides = array<i32>} : memref<2x1x4x16x16xf32, #tpu.memory_space<vmem>>, vector<1x1x1x16x16xf32>,
    %349 = vector.extract_strided_slice %282 {offsets = [0, 1], sizes = [16, 1], strides = [1, 1]} : vector<16x4xf32> to vector<16x1xf32>
    %350 = vector.shape_cast %349 : vector<16x1xf32> to vector<16x1xf32>
    %351 = vector.broadcast %350 : vector<16x1xf32> to vector<16x16xf32>
    %c1_171 = arith.constant 1 : index
    %c0_172 = arith.constant 0 : index
    %c1_173 = arith.constant 1 : index
    %c0_174 = arith.constant 0 : index
    %c0_175 = arith.constant 0 : index
    %352 = vector.load %arg11[%c1_171, %c0_172, %c1_173, %c0_174, %c0_175] : memref<2x1x4x16x16xf32, #tpu.memory_space<vmem>>, vector<1x1x1x16x16xf32>
    %353 = vector.shape_cast %352 : vector<1x1x1x16x16xf32> to vector<16x16xf32>
    %354 = vector.shape_cast %351 : vector<16x16xf32> to vector<1x1x1x16x16xf32>
    tpu.vector_store %arg11[%c1_171, %c0_172, %c1_173, %c0_174, %c0_175], %354 {strides = array<i32>} : memref<2x1x4x16x16xf32, #tpu.memory_space<vmem>>, vector<1x1x1x16x16xf32>,
    %cst_176 = arith.constant dense<0.000000e+00> : vector<16x8xf32>
    %355 = tpu.matmul %335, %325, %cst_176 {dimension_numbers = #tpu.dot_dimension_numbers<[1], [0], [0], [1], [0, 0, 1, 1], [], []>} : vector<16x16xf32>, vector<16x8xf32>, vector<16x8xf32> -> vector<16x8xf32>
    %c1_177 = arith.constant 1 : index
    %c8_178 = arith.constant 8 : index
    %c0_179 = arith.constant 0 : index
    %356 = vector.load %arg3[%c1_177, %c8_178, %c0_179] : memref<2x32x32xf32, #tpu.memory_space<vmem>>, vector<1x8x32xf32>
    %357 = vector.shape_cast %356 : vector<1x8x32xf32> to vector<8x32xf32>
    %cst_180 = arith.constant dense<0.000000e+00> : vector<16x32xf32>
    %358 = tpu.matmul %355, %357, %cst_180 {dimension_numbers = #tpu.dot_dimension_numbers<[1], [0], [0], [1], [0, 0, 1, 1], [], []>} : vector<16x8xf32>, vector<8x32xf32>, vector<16x32xf32> -> vector<16x32xf32>
    %359 = arith.addf %322, %358 : vector<16x32xf32>
    %360 = vector.extract_strided_slice %265 {offsets = [0, 16], sizes = [16, 8], strides = [1, 1]} : vector<16x32xf32> to vector<16x8xf32>
    %361 = vector.extract_strided_slice %266 {offsets = [0, 16], sizes = [16, 8], strides = [1, 1]} : vector<16x32xf32> to vector<16x8xf32>
    %362 = vector.extract_strided_slice %267 {offsets = [0, 16], sizes = [16, 8], strides = [1, 1]} : vector<16x32xf32> to vector<16x8xf32>
    %cst_181 = arith.constant dense<0.000000e+00> : vector<16x16xf32>
    %363 = tpu.matmul %360, %361, %cst_181 {dimension_numbers = #tpu.dot_dimension_numbers<[1], [1], [0], [0], [0, 0, 1, 0], [], []>} : vector<16x8xf32>, vector<16x8xf32>, vector<16x16xf32> -> vector<16x16xf32>
    %cst_182 = arith.constant dense<0xFF800000> : vector<16xf32>
    %364 = vector.multi_reduction <maximumf>, %363, %cst_182 [1] : vector<16x16xf32> to vector<16xf32>
    %365 = vector.shape_cast %364 : vector<16xf32> to vector<16x1xf32>
    %366 = vector.broadcast %365 : vector<16x1xf32> to vector<16x16xf32>
    %367 = arith.subf %363, %366 : vector<16x16xf32>
    %368 = math.exp %367 : vector<16x16xf32>
    %cst_183 = arith.constant dense<0.000000e+00> : vector<16xf32>
    %369 = vector.multi_reduction <add>, %368, %cst_183 [1] : vector<16x16xf32> to vector<16xf32>
    %370 = vector.shape_cast %369 : vector<16xf32> to vector<16x1xf32>
    %371 = vector.broadcast %370 : vector<16x1xf32> to vector<16x16xf32>
    %372 = arith.divf %368, %371 : vector<16x16xf32>
    %373 = vector.extract_strided_slice %285 {offsets = [0, 2], sizes = [16, 1], strides = [1, 1]} : vector<16x4xf32> to vector<16x1xf32>
    %374 = vector.extract_strided_slice %286 {offsets = [0, 2], sizes = [16, 1], strides = [1, 1]} : vector<16x4xf32> to vector<16x1xf32>
    %375 = vector.broadcast %374 : vector<16x1xf32> to vector<16x16xf32>
    %376 = arith.mulf %6, %375 : vector<16x16xf32>
    %377 = math.exp %376 : vector<16x16xf32>
    %378 = vector.broadcast %373 : vector<16x1xf32> to vector<16x16xf32>
    %379 = arith.mulf %378, %377 : vector<16x16xf32>
    %c1_184 = arith.constant 1 : index
    %c0_185 = arith.constant 0 : index
    %c2_186 = arith.constant 2 : index
    %c0_187 = arith.constant 0 : index
    %c0_188 = arith.constant 0 : index
    %380 = vector.load %arg9[%c1_184, %c0_185, %c2_186, %c0_187, %c0_188] : memref<2x1x4x16x16xf32, #tpu.memory_space<vmem>>, vector<1x1x1x16x16xf32>
    %381 = vector.shape_cast %380 : vector<1x1x1x16x16xf32> to vector<16x16xf32>
    %382 = vector.shape_cast %372 : vector<16x16xf32> to vector<1x1x1x16x16xf32>
    tpu.vector_store %arg9[%c1_184, %c0_185, %c2_186, %c0_187, %c0_188], %382 {strides = array<i32>} : memref<2x1x4x16x16xf32, #tpu.memory_space<vmem>>, vector<1x1x1x16x16xf32>,
    %c1_189 = arith.constant 1 : index
    %c0_190 = arith.constant 0 : index
    %c2_191 = arith.constant 2 : index
    %c0_192 = arith.constant 0 : index
    %c0_193 = arith.constant 0 : index
    %383 = vector.load %arg10[%c1_189, %c0_190, %c2_191, %c0_192, %c0_193] : memref<2x1x4x16x16xf32, #tpu.memory_space<vmem>>, vector<1x1x1x16x16xf32>
    %384 = vector.shape_cast %383 : vector<1x1x1x16x16xf32> to vector<16x16xf32>
    %385 = vector.shape_cast %379 : vector<16x16xf32> to vector<1x1x1x16x16xf32>
    tpu.vector_store %arg10[%c1_189, %c0_190, %c2_191, %c0_192, %c0_193], %385 {strides = array<i32>} : memref<2x1x4x16x16xf32, #tpu.memory_space<vmem>>, vector<1x1x1x16x16xf32>,
    %386 = vector.extract_strided_slice %282 {offsets = [0, 2], sizes = [16, 1], strides = [1, 1]} : vector<16x4xf32> to vector<16x1xf32>
    %387 = vector.shape_cast %386 : vector<16x1xf32> to vector<16x1xf32>
    %388 = vector.broadcast %387 : vector<16x1xf32> to vector<16x16xf32>
    %c1_194 = arith.constant 1 : index
    %c0_195 = arith.constant 0 : index
    %c2_196 = arith.constant 2 : index
    %c0_197 = arith.constant 0 : index
    %c0_198 = arith.constant 0 : index
    %389 = vector.load %arg11[%c1_194, %c0_195, %c2_196, %c0_197, %c0_198] : memref<2x1x4x16x16xf32, #tpu.memory_space<vmem>>, vector<1x1x1x16x16xf32>
    %390 = vector.shape_cast %389 : vector<1x1x1x16x16xf32> to vector<16x16xf32>
    %391 = vector.shape_cast %388 : vector<16x16xf32> to vector<1x1x1x16x16xf32>
    tpu.vector_store %arg11[%c1_194, %c0_195, %c2_196, %c0_197, %c0_198], %391 {strides = array<i32>} : memref<2x1x4x16x16xf32, #tpu.memory_space<vmem>>, vector<1x1x1x16x16xf32>,
    %cst_199 = arith.constant dense<0.000000e+00> : vector<16x8xf32>
    %392 = tpu.matmul %372, %362, %cst_199 {dimension_numbers = #tpu.dot_dimension_numbers<[1], [0], [0], [1], [0, 0, 1, 1], [], []>} : vector<16x16xf32>, vector<16x8xf32>, vector<16x8xf32> -> vector<16x8xf32>
    %c1_200 = arith.constant 1 : index
    %c16_201 = arith.constant 16 : index
    %c0_202 = arith.constant 0 : index
    %393 = vector.load %arg3[%c1_200, %c16_201, %c0_202] : memref<2x32x32xf32, #tpu.memory_space<vmem>>, vector<1x8x32xf32>
    %394 = vector.shape_cast %393 : vector<1x8x32xf32> to vector<8x32xf32>
    %cst_203 = arith.constant dense<0.000000e+00> : vector<16x32xf32>
    %395 = tpu.matmul %392, %394, %cst_203 {dimension_numbers = #tpu.dot_dimension_numbers<[1], [0], [0], [1], [0, 0, 1, 1], [], []>} : vector<16x8xf32>, vector<8x32xf32>, vector<16x32xf32> -> vector<16x32xf32>
    %396 = arith.addf %359, %395 : vector<16x32xf32>
    %397 = vector.extract_strided_slice %265 {offsets = [0, 24], sizes = [16, 8], strides = [1, 1]} : vector<16x32xf32> to vector<16x8xf32>
    %398 = vector.extract_strided_slice %266 {offsets = [0, 24], sizes = [16, 8], strides = [1, 1]} : vector<16x32xf32> to vector<16x8xf32>
    %399 = vector.extract_strided_slice %267 {offsets = [0, 24], sizes = [16, 8], strides = [1, 1]} : vector<16x32xf32> to vector<16x8xf32>
    %cst_204 = arith.constant dense<0.000000e+00> : vector<16x16xf32>
    %400 = tpu.matmul %397, %398, %cst_204 {dimension_numbers = #tpu.dot_dimension_numbers<[1], [1], [0], [0], [0, 0, 1, 0], [], []>} : vector<16x8xf32>, vector<16x8xf32>, vector<16x16xf32> -> vector<16x16xf32>
    %cst_205 = arith.constant dense<0xFF800000> : vector<16xf32>
    %401 = vector.multi_reduction <maximumf>, %400, %cst_205 [1] : vector<16x16xf32> to vector<16xf32>
    %402 = vector.shape_cast %401 : vector<16xf32> to vector<16x1xf32>
    %403 = vector.broadcast %402 : vector<16x1xf32> to vector<16x16xf32>
    %404 = arith.subf %400, %403 : vector<16x16xf32>
    %405 = math.exp %404 : vector<16x16xf32>
    %cst_206 = arith.constant dense<0.000000e+00> : vector<16xf32>
    %406 = vector.multi_reduction <add>, %405, %cst_206 [1] : vector<16x16xf32> to vector<16xf32>
    %407 = vector.shape_cast %406 : vector<16xf32> to vector<16x1xf32>
    %408 = vector.broadcast %407 : vector<16x1xf32> to vector<16x16xf32>
    %409 = arith.divf %405, %408 : vector<16x16xf32>
    %410 = vector.extract_strided_slice %285 {offsets = [0, 3], sizes = [16, 1], strides = [1, 1]} : vector<16x4xf32> to vector<16x1xf32>
    %411 = vector.extract_strided_slice %286 {offsets = [0, 3], sizes = [16, 1], strides = [1, 1]} : vector<16x4xf32> to vector<16x1xf32>
    %412 = vector.broadcast %411 : vector<16x1xf32> to vector<16x16xf32>
    %413 = arith.mulf %6, %412 : vector<16x16xf32>
    %414 = math.exp %413 : vector<16x16xf32>
    %415 = vector.broadcast %410 : vector<16x1xf32> to vector<16x16xf32>
    %416 = arith.mulf %415, %414 : vector<16x16xf32>
    %c1_207 = arith.constant 1 : index
    %c0_208 = arith.constant 0 : index
    %c3_209 = arith.constant 3 : index
    %c0_210 = arith.constant 0 : index
    %c0_211 = arith.constant 0 : index
    %417 = vector.load %arg9[%c1_207, %c0_208, %c3_209, %c0_210, %c0_211] : memref<2x1x4x16x16xf32, #tpu.memory_space<vmem>>, vector<1x1x1x16x16xf32>
    %418 = vector.shape_cast %417 : vector<1x1x1x16x16xf32> to vector<16x16xf32>
    %419 = vector.shape_cast %409 : vector<16x16xf32> to vector<1x1x1x16x16xf32>
    tpu.vector_store %arg9[%c1_207, %c0_208, %c3_209, %c0_210, %c0_211], %419 {strides = array<i32>} : memref<2x1x4x16x16xf32, #tpu.memory_space<vmem>>, vector<1x1x1x16x16xf32>,
    %c1_212 = arith.constant 1 : index
    %c0_213 = arith.constant 0 : index
    %c3_214 = arith.constant 3 : index
    %c0_215 = arith.constant 0 : index
    %c0_216 = arith.constant 0 : index
    %420 = vector.load %arg10[%c1_212, %c0_213, %c3_214, %c0_215, %c0_216] : memref<2x1x4x16x16xf32, #tpu.memory_space<vmem>>, vector<1x1x1x16x16xf32>
    %421 = vector.shape_cast %420 : vector<1x1x1x16x16xf32> to vector<16x16xf32>
    %422 = vector.shape_cast %416 : vector<16x16xf32> to vector<1x1x1x16x16xf32>
    tpu.vector_store %arg10[%c1_212, %c0_213, %c3_214, %c0_215, %c0_216], %422 {strides = array<i32>} : memref<2x1x4x16x16xf32, #tpu.memory_space<vmem>>, vector<1x1x1x16x16xf32>,
    %423 = vector.extract_strided_slice %282 {offsets = [0, 3], sizes = [16, 1], strides = [1, 1]} : vector<16x4xf32> to vector<16x1xf32>
    %424 = vector.shape_cast %423 : vector<16x1xf32> to vector<16x1xf32>
    %425 = vector.broadcast %424 : vector<16x1xf32> to vector<16x16xf32>
    %c1_217 = arith.constant 1 : index
    %c0_218 = arith.constant 0 : index
    %c3_219 = arith.constant 3 : index
    %c0_220 = arith.constant 0 : index
    %c0_221 = arith.constant 0 : index
    %426 = vector.load %arg11[%c1_217, %c0_218, %c3_219, %c0_220, %c0_221] : memref<2x1x4x16x16xf32, #tpu.memory_space<vmem>>, vector<1x1x1x16x16xf32>
    %427 = vector.shape_cast %426 : vector<1x1x1x16x16xf32> to vector<16x16xf32>
    %428 = vector.shape_cast %425 : vector<16x16xf32> to vector<1x1x1x16x16xf32>
    tpu.vector_store %arg11[%c1_217, %c0_218, %c3_219, %c0_220, %c0_221], %428 {strides = array<i32>} : memref<2x1x4x16x16xf32, #tpu.memory_space<vmem>>, vector<1x1x1x16x16xf32>,
    %cst_222 = arith.constant dense<0.000000e+00> : vector<16x8xf32>
    %429 = tpu.matmul %409, %399, %cst_222 {dimension_numbers = #tpu.dot_dimension_numbers<[1], [0], [0], [1], [0, 0, 1, 1], [], []>} : vector<16x16xf32>, vector<16x8xf32>, vector<16x8xf32> -> vector<16x8xf32>
    %c1_223 = arith.constant 1 : index
    %c24_224 = arith.constant 24 : index
    %c0_225 = arith.constant 0 : index
    %430 = vector.load %arg3[%c1_223, %c24_224, %c0_225] : memref<2x32x32xf32, #tpu.memory_space<vmem>>, vector<1x8x32xf32>
    %431 = vector.shape_cast %430 : vector<1x8x32xf32> to vector<8x32xf32>
    %cst_226 = arith.constant dense<0.000000e+00> : vector<16x32xf32>
    %432 = tpu.matmul %429, %431, %cst_226 {dimension_numbers = #tpu.dot_dimension_numbers<[1], [0], [0], [1], [0, 0, 1, 1], [], []>} : vector<16x8xf32>, vector<8x32xf32>, vector<16x32xf32> -> vector<16x32xf32>
    %433 = arith.addf %396, %432 : vector<16x32xf32>
    %434 = vector.extract_strided_slice %256 {offsets = [1, 0], sizes = [1, 32], strides = [1, 1]} : vector<8x128xf32> to vector<1x32xf32>
    %435 = vector.broadcast %434 : vector<1x32xf32> to vector<16x32xf32>
    %436 = arith.addf %433, %435 : vector<16x32xf32>
    %437 = arith.addf %254, %436 : vector<16x32xf32>
    %438 = vector.extract_strided_slice %256 {offsets = [4, 0], sizes = [1, 32], strides = [1, 1]} : vector<8x128xf32> to vector<1x32xf32>
    %439 = vector.extract_strided_slice %256 {offsets = [5, 0], sizes = [1, 32], strides = [1, 1]} : vector<8x128xf32> to vector<1x32xf32>
    %cst_227 = arith.constant dense<0.000000e+00> : vector<16xf32>
    %440 = vector.multi_reduction <add>, %437, %cst_227 [1] : vector<16x32xf32> to vector<16xf32>
    %441 = vector.shape_cast %440 : vector<16xf32> to vector<16x1xf32>
    %cst_228 = arith.constant 3.200000e+01 : f32
    %442 = vector.broadcast %cst_228 : f32 to vector<16x1xf32>
    %443 = arith.divf %441, %442 : vector<16x1xf32>
    %444 = vector.broadcast %443 : vector<16x1xf32> to vector<16x32xf32>
    %445 = arith.subf %437, %444 : vector<16x32xf32>
    %446 = arith.mulf %445, %445 : vector<16x32xf32>
    %cst_229 = arith.constant dense<0.000000e+00> : vector<16xf32>
    %447 = vector.multi_reduction <add>, %446, %cst_229 [1] : vector<16x32xf32> to vector<16xf32>
    %448 = vector.shape_cast %447 : vector<16xf32> to vector<16x1xf32>
    %cst_230 = arith.constant 3.200000e+01 : f32
    %449 = vector.broadcast %cst_230 : f32 to vector<16x1xf32>
    %450 = arith.divf %448, %449 : vector<16x1xf32>
    %451 = vector.broadcast %443 : vector<16x1xf32> to vector<16x32xf32>
    %452 = arith.subf %437, %451 : vector<16x32xf32>
    %cst_231 = arith.constant 9.99999974E-6 : f32
    %453 = vector.broadcast %cst_231 : f32 to vector<16x1xf32>
    %454 = arith.addf %450, %453 : vector<16x1xf32>
    %455 = math.sqrt %454 : vector<16x1xf32>
    %456 = vector.broadcast %455 : vector<16x1xf32> to vector<16x32xf32>
    %457 = arith.divf %452, %456 : vector<16x32xf32>
    %458 = vector.broadcast %438 : vector<1x32xf32> to vector<16x32xf32>
    %459 = arith.mulf %457, %458 : vector<16x32xf32>
    %460 = vector.broadcast %439 : vector<1x32xf32> to vector<16x32xf32>
    %461 = arith.addf %459, %460 : vector<16x32xf32>
    %c1_232 = arith.constant 1 : index
    %c0_233 = arith.constant 0 : index
    %c0_234 = arith.constant 0 : index
    %462 = vector.load %arg4[%c1_232, %c0_233, %c0_234] : memref<2x32x64xf32, #tpu.memory_space<vmem>>, vector<1x32x64xf32>
    %463 = vector.shape_cast %462 : vector<1x32x64xf32> to vector<32x64xf32>
    %cst_235 = arith.constant dense<0.000000e+00> : vector<16x64xf32>
    %464 = tpu.matmul %461, %463, %cst_235 {dimension_numbers = #tpu.dot_dimension_numbers<[1], [0], [0], [1], [0, 0, 1, 1], [], []>} : vector<16x32xf32>, vector<32x64xf32>, vector<16x64xf32> -> vector<16x64xf32>
    %465 = vector.extract_strided_slice %256 {offsets = [2, 0], sizes = [1, 64], strides = [1, 1]} : vector<8x128xf32> to vector<1x64xf32>
    %466 = vector.broadcast %465 : vector<1x64xf32> to vector<16x64xf32>
    %467 = arith.addf %464, %466 : vector<16x64xf32>
    %cst_236 = arith.constant 0.000000e+00 : f32
    %468 = vector.broadcast %cst_236 : f32 to vector<16x64xf32>
    %469 = arith.maximumf %467, %468 : vector<16x64xf32>
    %c1_237 = arith.constant 1 : index
    %c0_238 = arith.constant 0 : index
    %c0_239 = arith.constant 0 : index
    %470 = vector.load %arg5[%c1_237, %c0_238, %c0_239] : memref<2x64x32xf32, #tpu.memory_space<vmem>>, vector<1x64x32xf32>
    %471 = vector.shape_cast %470 : vector<1x64x32xf32> to vector<64x32xf32>
    %cst_240 = arith.constant dense<0.000000e+00> : vector<16x32xf32>
    %472 = tpu.matmul %469, %471, %cst_240 {dimension_numbers = #tpu.dot_dimension_numbers<[1], [0], [0], [1], [0, 0, 1, 1], [], []>} : vector<16x64xf32>, vector<64x32xf32>, vector<16x32xf32> -> vector<16x32xf32>
    %473 = vector.extract_strided_slice %256 {offsets = [3, 0], sizes = [1, 32], strides = [1, 1]} : vector<8x128xf32> to vector<1x32xf32>
    %474 = vector.broadcast %473 : vector<1x32xf32> to vector<16x32xf32>
    %475 = arith.addf %472, %474 : vector<16x32xf32>
    %476 = arith.addf %461, %475 : vector<16x32xf32>
    %477 = vector.extract_strided_slice %256 {offsets = [6, 0], sizes = [1, 32], strides = [1, 1]} : vector<8x128xf32> to vector<1x32xf32>
    %478 = vector.extract_strided_slice %256 {offsets = [7, 0], sizes = [1, 32], strides = [1, 1]} : vector<8x128xf32> to vector<1x32xf32>
    %cst_241 = arith.constant dense<0.000000e+00> : vector<16xf32>
    %479 = vector.multi_reduction <add>, %476, %cst_241 [1] : vector<16x32xf32> to vector<16xf32>
    %480 = vector.shape_cast %479 : vector<16xf32> to vector<16x1xf32>
    %cst_242 = arith.constant 3.200000e+01 : f32
    %481 = vector.broadcast %cst_242 : f32 to vector<16x1xf32>
    %482 = arith.divf %480, %481 : vector<16x1xf32>
    %483 = vector.broadcast %482 : vector<16x1xf32> to vector<16x32xf32>
    %484 = arith.subf %476, %483 : vector<16x32xf32>
    %485 = arith.mulf %484, %484 : vector<16x32xf32>
    %cst_243 = arith.constant dense<0.000000e+00> : vector<16xf32>
    %486 = vector.multi_reduction <add>, %485, %cst_243 [1] : vector<16x32xf32> to vector<16xf32>
    %487 = vector.shape_cast %486 : vector<16xf32> to vector<16x1xf32>
    %cst_244 = arith.constant 3.200000e+01 : f32
    %488 = vector.broadcast %cst_244 : f32 to vector<16x1xf32>
    %489 = arith.divf %487, %488 : vector<16x1xf32>
    %490 = vector.broadcast %482 : vector<16x1xf32> to vector<16x32xf32>
    %491 = arith.subf %476, %490 : vector<16x32xf32>
    %cst_245 = arith.constant 9.99999974E-6 : f32
    %492 = vector.broadcast %cst_245 : f32 to vector<16x1xf32>
    %493 = arith.addf %489, %492 : vector<16x1xf32>
    %494 = math.sqrt %493 : vector<16x1xf32>
    %495 = vector.broadcast %494 : vector<16x1xf32> to vector<16x32xf32>
    %496 = arith.divf %491, %495 : vector<16x32xf32>
    %497 = vector.broadcast %477 : vector<1x32xf32> to vector<16x32xf32>
    %498 = arith.mulf %496, %497 : vector<16x32xf32>
    %499 = vector.broadcast %478 : vector<1x32xf32> to vector<16x32xf32>
    %500 = arith.addf %498, %499 : vector<16x32xf32>
    %c0_246 = arith.constant 0 : index
    %c0_247 = arith.constant 0 : index
    %501 = vector.load %arg7[%c0_246, %c0_247] : memref<2x32xf32, #tpu.memory_space<vmem>>, vector<1x32xf32>
    %c1_248 = arith.constant 1 : index
    %c0_249 = arith.constant 0 : index
    %502 = vector.load %arg7[%c1_248, %c0_249] : memref<2x32xf32, #tpu.memory_space<vmem>>, vector<1x32xf32>
    %cst_250 = arith.constant dense<0.000000e+00> : vector<16xf32>
    %503 = vector.multi_reduction <add>, %500, %cst_250 [1] : vector<16x32xf32> to vector<16xf32>
    %504 = vector.shape_cast %503 : vector<16xf32> to vector<16x1xf32>
    %cst_251 = arith.constant 3.200000e+01 : f32
    %505 = vector.broadcast %cst_251 : f32 to vector<16x1xf32>
    %506 = arith.divf %504, %505 : vector<16x1xf32>
    %507 = vector.broadcast %506 : vector<16x1xf32> to vector<16x32xf32>
    %508 = arith.subf %500, %507 : vector<16x32xf32>
    %509 = arith.mulf %508, %508 : vector<16x32xf32>
    %cst_252 = arith.constant dense<0.000000e+00> : vector<16xf32>
    %510 = vector.multi_reduction <add>, %509, %cst_252 [1] : vector<16x32xf32> to vector<16xf32>
    %511 = vector.shape_cast %510 : vector<16xf32> to vector<16x1xf32>
    %cst_253 = arith.constant 3.200000e+01 : f32
    %512 = vector.broadcast %cst_253 : f32 to vector<16x1xf32>
    %513 = arith.divf %511, %512 : vector<16x1xf32>
    %514 = vector.broadcast %506 : vector<16x1xf32> to vector<16x32xf32>
    %515 = arith.subf %500, %514 : vector<16x32xf32>
    %cst_254 = arith.constant 9.99999974E-6 : f32
    %516 = vector.broadcast %cst_254 : f32 to vector<16x1xf32>
    %517 = arith.addf %513, %516 : vector<16x1xf32>
    %518 = math.sqrt %517 : vector<16x1xf32>
    %519 = vector.broadcast %518 : vector<16x1xf32> to vector<16x32xf32>
    %520 = arith.divf %515, %519 : vector<16x32xf32>
    %521 = vector.broadcast %501 : vector<1x32xf32> to vector<16x32xf32>
    %522 = arith.mulf %520, %521 : vector<16x32xf32>
    %523 = vector.broadcast %502 : vector<1x32xf32> to vector<16x32xf32>
    %524 = arith.addf %522, %523 : vector<16x32xf32>
    %c0_255 = arith.constant 0 : index
    %c0_256 = arith.constant 0 : index
    %c0_257 = arith.constant 0 : index
    %525 = vector.load %arg8[%c0_255, %c0_256, %c0_257] : memref<1x16x32xf32, #tpu.memory_space<vmem>>, vector<1x16x32xf32>
    %526 = vector.shape_cast %525 : vector<1x16x32xf32> to vector<16x32xf32>
    %527 = vector.shape_cast %524 : vector<16x32xf32> to vector<1x16x32xf32>
    tpu.vector_store %arg8[%c0_255, %c0_256, %c0_257], %527 {strides = array<i32>} : memref<1x16x32xf32, #tpu.memory_space<vmem>>, vector<1x16x32xf32>,
    return
  }
  func.func @transform_0(%arg0: i32) -> (i32, i32, i32) {
    %c0_i32 = arith.constant 0 : i32
    %c0_i32_0 = arith.constant 0 : i32
    %c0_i32_1 = arith.constant 0 : i32
    return %arg0, %c0_i32, %c0_i32_0 : i32, i32, i32
  }
  func.func @transform_1(%arg0: i32) -> (i32, i32, i32) {
    %c0_i32 = arith.constant 0 : i32
    %c0_i32_0 = arith.constant 0 : i32
    %c0_i32_1 = arith.constant 0 : i32
    %c0_i32_2 = arith.constant 0 : i32
    return %c0_i32, %c0_i32_0, %c0_i32_1 : i32, i32, i32
  }
  func.func @transform_2(%arg0: i32) -> (i32, i32, i32) {
    %c0_i32 = arith.constant 0 : i32
    %c0_i32_0 = arith.constant 0 : i32
    %c0_i32_1 = arith.constant 0 : i32
    %c0_i32_2 = arith.constant 0 : i32
    return %c0_i32, %c0_i32_0, %c0_i32_1 : i32, i32, i32
  }
  func.func @transform_3(%arg0: i32) -> (i32, i32, i32) {
    %c0_i32 = arith.constant 0 : i32
    %c0_i32_0 = arith.constant 0 : i32
    %c0_i32_1 = arith.constant 0 : i32
    %c0_i32_2 = arith.constant 0 : i32
    return %c0_i32, %c0_i32_0, %c0_i32_1 : i32, i32, i32
  }
  func.func @transform_4(%arg0: i32) -> (i32, i32, i32) {
    %c0_i32 = arith.constant 0 : i32
    %c0_i32_0 = arith.constant 0 : i32
    %c0_i32_1 = arith.constant 0 : i32
    %c0_i32_2 = arith.constant 0 : i32
    return %c0_i32, %c0_i32_0, %c0_i32_1 : i32, i32, i32
  }
  func.func @transform_5(%arg0: i32) -> (i32, i32, i32) {
    %c0_i32 = arith.constant 0 : i32
    %c0_i32_0 = arith.constant 0 : i32
    %c0_i32_1 = arith.constant 0 : i32
    %c0_i32_2 = arith.constant 0 : i32
    return %c0_i32, %c0_i32_0, %c0_i32_1 : i32, i32, i32
  }
  func.func @transform_6(%arg0: i32) -> (i32, i32) {
    %c0_i32 = arith.constant 0 : i32
    %c0_i32_0 = arith.constant 0 : i32
    %c0_i32_1 = arith.constant 0 : i32
    return %c0_i32, %c0_i32_0 : i32, i32
  }
  func.func @transform_7(%arg0: i32) -> (i32, i32, i32) {
    %c0_i32 = arith.constant 0 : i32
    %c0_i32_0 = arith.constant 0 : i32
    %c0_i32_1 = arith.constant 0 : i32
    return %arg0, %c0_i32, %c0_i32_0 : i32, i32, i32
  }
  func.func @transform_8(%arg0: i32) -> (i32, i32, i32, i32, i32) {
    %c0_i32 = arith.constant 0 : i32
    %c0_i32_0 = arith.constant 0 : i32
    %c0_i32_1 = arith.constant 0 : i32
    %c0_i32_2 = arith.constant 0 : i32
    %c0_i32_3 = arith.constant 0 : i32
    return %c0_i32, %arg0, %c0_i32_0, %c0_i32_1, %c0_i32_2 : i32, i32, i32, i32, i32
  }
  func.func @transform_9(%arg0: i32) -> (i32, i32, i32, i32, i32) {
    %c0_i32 = arith.constant 0 : i32
    %c0_i32_0 = arith.constant 0 : i32
    %c0_i32_1 = arith.constant 0 : i32
    %c0_i32_2 = arith.constant 0 : i32
    %c0_i32_3 = arith.constant 0 : i32
    return %c0_i32, %arg0, %c0_i32_0, %c0_i32_1, %c0_i32_2 : i32, i32, i32, i32, i32
  }
  func.func @transform_10(%arg0: i32) -> (i32, i32, i32, i32, i32) {
    %c0_i32 = arith.constant 0 : i32
    %c0_i32_0 = arith.constant 0 : i32
    %c0_i32_1 = arith.constant 0 : i32
    %c0_i32_2 = arith.constant 0 : i32
    %c0_i32_3 = arith.constant 0 : i32
    return %c0_i32, %arg0, %c0_i32_0, %c0_i32_1, %c0_i32_2 : i32, i32, i32, i32, i32
  }
}

</mosaic_0001>

<llo_original>
// kernel: _run.1
$region0: #{_run.1}
  #allocation0 [shape = 'u32[]', space=smem, size = 0x4, offset = 0x4, fixed_abs, tag = 'smem constant byte address 0x4 - core index']
  #allocation1 [shape = 'u32[144,128]{1,0:T(1,128)}', space=vmem, size = 0x12000, scoped, tag = 'internal scratch']
  #allocation9 [shape = 's32[]', space=sflag, size = 0x4, offset = 0, fixed_abs, tag = 'sflag constant byte address 0x0 - dummy sync flag']
  #allocation11 [shape = 's32[]', space=sflag, size = 0x4, offset = 0, fixed_abs, tag = 'sflag constant byte address 0x0 - dummy sync flag']
  #allocation13 [shape = 's32[]', space=sflag, size = 0x4, offset = 0, fixed_abs, tag = 'sflag constant byte address 0x0 - dummy sync flag']
  %s0 = inlined_call_operand.vmem [shape: f32[2,16,32], index: 0, kind: input, shape index: {}]
  %s1 = inlined_call_operand.vmem [shape: f32[2,32,128], index: 1, kind: input, shape index: {}]
  %s2 = inlined_call_operand.vmem [shape: f32[2,32,32], index: 2, kind: input, shape index: {}]
  %s3 = inlined_call_operand.vmem [shape: f32[2,32,64], index: 3, kind: input, shape index: {}]
  %s4 = inlined_call_operand.vmem [shape: f32[2,64,32], index: 4, kind: input, shape index: {}]
  %s5 = inlined_call_operand.vmem [shape: f32[2,8,128], index: 5, kind: input, shape index: {}]
  %s6 = inlined_call_operand.vmem [shape: f32[2,32], index: 6, kind: input, shape index: {}]
  %s7 = inlined_call_operand.hbm [shape: f32[2,16,32], index: 7, kind: output, shape index: {0}]
  %s8 = inlined_call_operand.hbm [shape: f32[2,2,4,16,16], index: 8, kind: output, shape index: {1}]
  %s9 = inlined_call_operand.hbm [shape: f32[2,2,4,16,16], index: 9, kind: output, shape index: {2}]
  %s10 = inlined_call_operand.hbm [shape: f32[2,2,4,16,16], index: 10, kind: output, shape index: {3}]
  %11 = xla_tuple %s7, %s8, %s9, %s10
  %s12 = sld [smem:[#allocation0]]
  $region85: #{_run.1} parent=0
    _
  %s14 = ssub.s32 1, %s12
  %s15 = scalar_select 0, %s14, %s12
  $region1: #{_run.1} parent=0
    #allocation2 [shape = 'u8[16384]{0}', space=vmem, size = 0x4000, scoped, tag = 'output window, operand 0']
    #allocation3 [shape = 's32[2]{0}', space=sflag, size = 0x8, scoped, tag = 'scoped memory for _run.1']
    #allocation4 [shape = 'u8[131072]{0}', space=vmem, size = 0x20000, scoped, tag = 'output window, operand 1']
    #allocation5 [shape = 's32[2]{0}', space=sflag, size = 0x8, scoped, tag = 'scoped memory for _run.1']
    #allocation6 [shape = 'u8[131072]{0}', space=vmem, size = 0x20000, scoped, tag = 'output window, operand 2']
    #allocation7 [shape = 'u8[131072]{0}', space=vmem, size = 0x20000, scoped, tag = 'output window, operand 3']
    #allocation8 [shape = 's32[2]{0}', space=sflag, size = 0x8, scoped, tag = 'scoped memory for _run.1']
    %16 = vsyncpa [#allocation3], 0
    %s17 = scalar_lea.sflag [#allocation3], 1
    %18 = vsyncpa %s17, 0
    %19 = vsyncpa [#allocation5], 0
    %s20 = scalar_lea.sflag [#allocation5], 1
    %21 = vsyncpa %s20, 0
    %22 = vsyncpa [#allocation8], 0
    %s23 = scalar_lea.sflag [#allocation8], 1
    %24 = vsyncpa %s23, 0
    loop: start=0, step=1, limit=4
    $region2: #{_run.1} parent=1 // loop_pre_header
      _
    $region3: #{_run.1} parent=1 // loop_header
      %s26 = sphi 0, %s30
      %p27 = scmp.ge.s32.totalorder %s26, 4
      %s36 = sphi 0, %s38
      %s39 = sphi 0, %s36
      %s40 = sphi 0, %s39
      %s56 = sphi 0, %s40
      %s60 = sphi 0, %s60
      %s62 = sphi 0, %s60
      %s63 = sphi 0, %s62
      %s77 = sphi 0, %s63
      %s81 = sphi 0, %s81
      %s83 = sphi 0, %s81
      %s84 = sphi 0, %s83
      %s98 = sphi 0, %s84
      %s102 = sphi 0, %s102
      %s104 = sphi 0, %s102
      %s105 = sphi 0, %s104
      %s119 = sphi 0, %s105
      %s123 = sphi 0, %s123
      %s125 = sphi 0, %s123
      %s126 = sphi 0, %s125
      %s140 = sphi 0, %s126
      %s144 = sphi 0, %s144
      %s146 = sphi 0, %s144
      %s147 = sphi 0, %s146
      %s161 = sphi 0, %s147
      %s165 = sphi 0, %s165
      %s167 = sphi 0, %s165
      %s168 = sphi 0, %s167
      %s182 = sphi 0, %s168
      %s188 = sphi 0, %s190
      %s191 = sphi 0, %s188
      %s192 = sphi 0, %s191
      %s208 = sphi 0, %s192
      %s214 = sphi 0, %s216
      %s217 = sphi 0, %s214
      %s218 = sphi 0, %s217
      %s234 = sphi 0, %s218
      %s240 = sphi 0, %s242
      %s243 = sphi 0, %s240
      %s244 = sphi 0, %s243
      %s260 = sphi 0, %s244
      %s266 = sphi 0, %s268
      %s269 = sphi 0, %s266
      %s270 = sphi 0, %s269
      %s286 = sphi 0, %s270
    $region4: #{_run.1} parent=1 // loop_header_branch
      %29 = sbr.rel (%p27) target = $region8
    $region5: #{_run.1} parent=1 // loop_body
      %s31 = ssub.s32 %s26, 1
      %s32 = ssub.s32 %s26, 2
      %s33 = sadd.s32 %s26, 1
      %s34 = ssub.s32 %s26, %s33
      %p35 = scmp.eq.s32.totalorder %s34, 0
      %s37 = sadd.s32 %s36, 1
      %s38 = scalar_select %p35, %s36, %s37
      %p41 = pneg %p35
      %p42 = scmp.eq.s32.totalorder %s26, 1
      %p43 = por %p41, %p42
      %p44 = scmp.ne.s32.totalorder %s36, %s39
      %p45 = scmp.eq.s32.totalorder %s26, 0
      %p46 = por %p44, %p45
      %p47 = scmp.ne.s32.totalorder %s36, %s39
      %p48 = scmp.eq.s32.totalorder %s31, 1
      %p49 = por %p47, %p48
      %p50 = scmp.ne.s32.totalorder %s39, %s40
      %p51 = scmp.eq.s32.totalorder %s31, 0
      %p52 = por %p50, %p51
      %p53 = scmp.ne.s32.totalorder %s39, %s40
      %p54 = scmp.eq.s32.totalorder %s32, 1
      %p55 = por %p53, %p54
      %p57 = scmp.ne.s32.totalorder %s40, %s56
      %p58 = scmp.eq.s32.totalorder %s32, 0
      %p59 = por %p57, %p58
      %s61 = sadd.s32 %s60, 1
      %p64 = scmp.eq.s32.totalorder %s26, 1
      %p65 = scmp.ne.s32.totalorder %s60, %s62
      %p66 = scmp.eq.s32.totalorder %s26, 0
      %p67 = por %p65, %p66
      %p68 = scmp.ne.s32.totalorder %s60, %s62
      %p69 = scmp.eq.s32.totalorder %s31, 1
      %p70 = por %p68, %p69
      %p71 = scmp.ne.s32.totalorder %s62, %s63
      %p72 = scmp.eq.s32.totalorder %s31, 0
      %p73 = por %p71, %p72
      %p74 = scmp.ne.s32.totalorder %s62, %s63
      %p75 = scmp.eq.s32.totalorder %s32, 1
      %p76 = por %p74, %p75
      %p78 = scmp.ne.s32.totalorder %s63, %s77
      %p79 = scmp.eq.s32.totalorder %s32, 0
      %p80 = por %p78, %p79
      %s82 = sadd.s32 %s81, 1
      %p85 = scmp.eq.s32.totalorder %s26, 1
      %p86 = scmp.ne.s32.totalorder %s81, %s83
      %p87 = scmp.eq.s32.totalorder %s26, 0
      %p88 = por %p86, %p87
      %p89 = scmp.ne.s32.totalorder %s81, %s83
      %p90 = scmp.eq.s32.totalorder %s31, 1
      %p91 = por %p89, %p90
      %p92 = scmp.ne.s32.totalorder %s83, %s84
      %p93 = scmp.eq.s32.totalorder %s31, 0
      %p94 = por %p92, %p93
      %p95 = scmp.ne.s32.totalorder %s83, %s84
      %p96 = scmp.eq.s32.totalorder %s32, 1
      %p97 = por %p95, %p96
      %p99 = scmp.ne.s32.totalorder %s84, %s98
      %p100 = scmp.eq.s32.totalorder %s32, 0
      %p101 = por %p99, %p100
      %s103 = sadd.s32 %s102, 1
      %p106 = scmp.eq.s32.totalorder %s26, 1
      %p107 = scmp.ne.s32.totalorder %s102, %s104
      %p108 = scmp.eq.s32.totalorder %s26, 0
      %p109 = por %p107, %p108
      %p110 = scmp.ne.s32.totalorder %s102, %s104
      %p111 = scmp.eq.s32.totalorder %s31, 1
      %p112 = por %p110, %p111
      %p113 = scmp.ne.s32.totalorder %s104, %s105
      %p114 = scmp.eq.s32.totalorder %s31, 0
      %p115 = por %p113, %p114
      %p116 = scmp.ne.s32.totalorder %s104, %s105
      %p117 = scmp.eq.s32.totalorder %s32, 1
      %p118 = por %p116, %p117
      %p120 = scmp.ne.s32.totalorder %s105, %s119
      %p121 = scmp.eq.s32.totalorder %s32, 0
      %p122 = por %p120, %p121
      %s124 = sadd.s32 %s123, 1
      %p127 = scmp.eq.s32.totalorder %s26, 1
      %p128 = scmp.ne.s32.totalorder %s123, %s125
      %p129 = scmp.eq.s32.totalorder %s26, 0
      %p130 = por %p128, %p129
      %p131 = scmp.ne.s32.totalorder %s123, %s125
      %p132 = scmp.eq.s32.totalorder %s31, 1
      %p133 = por %p131, %p132
      %p134 = scmp.ne.s32.totalorder %s125, %s126
      %p135 = scmp.eq.s32.totalorder %s31, 0
      %p136 = por %p134, %p135
      %p137 = scmp.ne.s32.totalorder %s125, %s126
      %p138 = scmp.eq.s32.totalorder %s32, 1
      %p139 = por %p137, %p138
      %p141 = scmp.ne.s32.totalorder %s126, %s140
      %p142 = scmp.eq.s32.totalorder %s32, 0
      %p143 = por %p141, %p142
      %s145 = sadd.s32 %s144, 1
      %p148 = scmp.eq.s32.totalorder %s26, 1
      %p149 = scmp.ne.s32.totalorder %s144, %s146
      %p150 = scmp.eq.s32.totalorder %s26, 0
      %p151 = por %p149, %p150
      %p152 = scmp.ne.s32.totalorder %s144, %s146
      %p153 = scmp.eq.s32.totalorder %s31, 1
      %p154 = por %p152, %p153
      %p155 = scmp.ne.s32.totalorder %s146, %s147
      %p156 = scmp.eq.s32.totalorder %s31, 0
      %p157 = por %p155, %p156
      %p158 = scmp.ne.s32.totalorder %s146, %s147
      %p159 = scmp.eq.s32.totalorder %s32, 1
      %p160 = por %p158, %p159
      %p162 = scmp.ne.s32.totalorder %s147, %s161
      %p163 = scmp.eq.s32.totalorder %s32, 0
      %p164 = por %p162, %p163
      %s166 = sadd.s32 %s165, 1
      %p169 = scmp.eq.s32.totalorder %s26, 1
      %p170 = scmp.ne.s32.totalorder %s165, %s167
      %p171 = scmp.eq.s32.totalorder %s26, 0
      %p172 = por %p170, %p171
      %p173 = scmp.ne.s32.totalorder %s165, %s167
      %p174 = scmp.eq.s32.totalorder %s31, 1
      %p175 = por %p173, %p174
      %p176 = scmp.ne.s32.totalorder %s167, %s168
      %p177 = scmp.eq.s32.totalorder %s31, 0
      %p178 = por %p176, %p177
      %p179 = scmp.ne.s32.totalorder %s167, %s168
      %p180 = scmp.eq.s32.totalorder %s32, 1
      %p181 = por %p179, %p180
      %p183 = scmp.ne.s32.totalorder %s168, %s182
      %p184 = scmp.eq.s32.totalorder %s32, 0
      %p185 = por %p183, %p184
      %s186 = ssub.s32 %s26, %s33
      %p187 = scmp.eq.s32.totalorder %s186, 0
      %s189 = sadd.s32 %s188, 1
      %s190 = scalar_select %p187, %s188, %s189
      %p193 = pneg %p187
      %p194 = scmp.eq.s32.totalorder %s26, 1
      %p195 = por %p193, %p194
      %p196 = scmp.ne.s32.totalorder %s188, %s191
      %p197 = scmp.eq.s32.totalorder %s26, 0
      %p198 = por %p196, %p197
      %p199 = scmp.ne.s32.totalorder %s188, %s191
      %p200 = scmp.eq.s32.totalorder %s31, 1
      %p201 = por %p199, %p200
      %p202 = scmp.ne.s32.totalorder %s191, %s192
      %p203 = scmp.eq.s32.totalorder %s31, 0
      %p204 = por %p202, %p203
      %p205 = scmp.ne.s32.totalorder %s191, %s192
      %p206 = scmp.eq.s32.totalorder %s32, 1
      %p207 = por %p205, %p206
      %p209 = scmp.ne.s32.totalorder %s192, %s208
      %p210 = scmp.eq.s32.totalorder %s32, 0
      %p211 = por %p209, %p210
      %s212 = ssub.s32 %s26, %s33
      %p213 = scmp.eq.s32.totalorder %s212, 0
      %s215 = sadd.s32 %s214, 1
      %s216 = scalar_select %p213, %s214, %s215
      %p219 = pneg %p213
      %p220 = scmp.eq.s32.totalorder %s26, 1
      %p221 = por %p219, %p220
      %p222 = scmp.ne.s32.totalorder %s214, %s217
      %p223 = scmp.eq.s32.totalorder %s26, 0
      %p224 = por %p222, %p223
      %p225 = scmp.ne.s32.totalorder %s214, %s217
      %p226 = scmp.eq.s32.totalorder %s31, 1
      %p227 = por %p225, %p226
      %p228 = scmp.ne.s32.totalorder %s217, %s218
      %p229 = scmp.eq.s32.totalorder %s31, 0
      %p230 = por %p228, %p229
      %p231 = scmp.ne.s32.totalorder %s217, %s218
      %p232 = scmp.eq.s32.totalorder %s32, 1
      %p233 = por %p231, %p232
      %p235 = scmp.ne.s32.totalorder %s218, %s234
      %p236 = scmp.eq.s32.totalorder %s32, 0
      %p237 = por %p235, %p236
      %s238 = ssub.s32 %s26, %s33
      %p239 = scmp.eq.s32.totalorder %s238, 0
      %s241 = sadd.s32 %s240, 1
      %s242 = scalar_select %p239, %s240, %s241
      %p245 = pneg %p239
      %p246 = scmp.eq.s32.totalorder %s26, 1
      %p247 = por %p245, %p246
      %p248 = scmp.ne.s32.totalorder %s240, %s243
      %p249 = scmp.eq.s32.totalorder %s26, 0
      %p250 = por %p248, %p249
      %p251 = scmp.ne.s32.totalorder %s240, %s243
      %p252 = scmp.eq.s32.totalorder %s31, 1
      %p253 = por %p251, %p252
      %p254 = scmp.ne.s32.totalorder %s243, %s244
      %p255 = scmp.eq.s32.totalorder %s31, 0
      %p256 = por %p254, %p255
      %p257 = scmp.ne.s32.totalorder %s243, %s244
      %p258 = scmp.eq.s32.totalorder %s32, 1
      %p259 = por %p257, %p258
      %p261 = scmp.ne.s32.totalorder %s244, %s260
      %p262 = scmp.eq.s32.totalorder %s32, 0
      %p263 = por %p261, %p262
      %s264 = ssub.s32 %s26, %s33
      %p265 = scmp.eq.s32.totalorder %s264, 0
      %s267 = sadd.s32 %s266, 1
      %s268 = scalar_select %p265, %s266, %s267
      %p271 = pneg %p265
      %p272 = scmp.eq.s32.totalorder %s26, 1
      %p273 = por %p271, %p272
      %p274 = scmp.ne.s32.totalorder %s266, %s269
      %p275 = scmp.eq.s32.totalorder %s26, 0
      %p276 = por %p274, %p275
      %p277 = scmp.ne.s32.totalorder %s266, %s269
      %p278 = scmp.eq.s32.totalorder %s31, 1
      %p279 = por %p277, %p278
      %p280 = scmp.ne.s32.totalorder %s269, %s270
      %p281 = scmp.eq.s32.totalorder %s31, 0
      %p282 = por %p280, %p281
      %p283 = scmp.ne.s32.totalorder %s269, %s270
      %p284 = scmp.eq.s32.totalorder %s32, 1
      %p285 = por %p283, %p284
      %p287 = scmp.ne.s32.totalorder %s270, %s286
      %p288 = scmp.eq.s32.totalorder %s32, 0
      %p289 = por %p287, %p288
      %p290 = scmp.le.s32.totalorder 1, %s26
      %p291 = scmp.lt.s32.totalorder %s26, 3
      %p292 = pnand %p290, %p291
      %p293 = pneg %p292
      // Predicated region
      $region9: #{_run.1} parent=5 // pred_check
        _
      $region10: #{_run.1} parent=5 // pred_check_branch
        %295 = sbr.rel (%p292) target = $region12
      $region11: #{_run.1} parent=5 // pred_region
        %s296 = ssub.s32 %s26, 1
        // Predicated region
        $region13: #{_run.1} parent=11 // pred_check
          %p297 = pneg %p73
        $region14: #{_run.1} parent=11 // pred_check_branch
          %299 = sbr.rel (%p297) target = $region16
        $region15: #{_run.1} parent=11 // pred_region
          _
        $region16: #{_run.1} parent=11 // pred_fallthru
          _
        // Predicated region
        $region17: #{_run.1} parent=11 // pred_check
          %p300 = pneg %p94
        $region18: #{_run.1} parent=11 // pred_check_branch
          %302 = sbr.rel (%p300) target = $region20
        $region19: #{_run.1} parent=11 // pred_region
          _
        $region20: #{_run.1} parent=11 // pred_fallthru
          _
        // Predicated region
        $region21: #{_run.1} parent=11 // pred_check
          %p303 = pneg %p115
        $region22: #{_run.1} parent=11 // pred_check_branch
          %305 = sbr.rel (%p303) target = $region24
        $region23: #{_run.1} parent=11 // pred_region
          _
        $region24: #{_run.1} parent=11 // pred_fallthru
          _
        // Predicated region
        $region25: #{_run.1} parent=11 // pred_check
          %p306 = pneg %p136
        $region26: #{_run.1} parent=11 // pred_check_branch
          %308 = sbr.rel (%p306) target = $region28
        $region27: #{_run.1} parent=11 // pred_region
          _
        $region28: #{_run.1} parent=11 // pred_fallthru
          _
        // Predicated region
        $region29: #{_run.1} parent=11 // pred_check
          %p309 = pneg %p157
        $region30: #{_run.1} parent=11 // pred_check_branch
          %311 = sbr.rel (%p309) target = $region32
        $region31: #{_run.1} parent=11 // pred_region
          _
        $region32: #{_run.1} parent=11 // pred_fallthru
          _
        // Predicated region
        $region33: #{_run.1} parent=11 // pred_check
          %p312 = pneg %p178
        $region34: #{_run.1} parent=11 // pred_check_branch
          %314 = sbr.rel (%p312) target = $region36
        $region35: #{_run.1} parent=11 // pred_region
          _
        $region36: #{_run.1} parent=11 // pred_fallthru
          _
      $region12: #{_run.1} parent=5 // pred_fallthru
        _
      %p315 = scmp.lt.s32.totalorder %s26, 2
      // Predicated region
      $region37: #{_run.1} parent=5 // pred_check
        %p316 = pneg %p315
      $region38: #{_run.1} parent=5 // pred_check_branch
        %318 = sbr.rel (%p316) target = $region40
      $region39: #{_run.1} parent=5 // pred_region
        // Predicated region
        $region41: #{_run.1} parent=39 // pred_check
          %p319 = pneg %p46
        $region42: #{_run.1} parent=39 // pred_check_branch
          %321 = sbr.rel (%p319) target = $region44
        $region43: #{_run.1} parent=39 // pred_region
          %p322 = scmp.lt.s32.totalorder %s26, 1
          %s323 = scalar_select %p322, %s26, 1
          %s324 = smul.addr %s323, 2
          %s325 = smul.addr %s324, 8
          %s326 = scalar_lea.vmem %s0, %s325
        $region44: #{_run.1} parent=39 // pred_fallthru
          _
      $region40: #{_run.1} parent=5 // pred_fallthru
        _
      %p327 = scmp.le.s32.totalorder 1, %s26
      %p328 = scmp.lt.s32.totalorder %s26, 3
      %p329 = pnand %p327, %p328
      %p330 = pneg %p329
      // Predicated region
      $region45: #{_run.1} parent=5 // pred_check
        _
      $region46: #{_run.1} parent=5 // pred_check_branch
        %332 = sbr.rel (%p329) target = $region48
      $region47: #{_run.1} parent=5 // pred_region
        %s333 = ssub.s32 %s26, 1
        %p334 = scmp.lt.s32.totalorder %s31, 1
        %s335 = scalar_select %p334, %s31, 1
        %s336 = smul.addr %s335, 2
        %s337 = smul.addr %s336, 8
        %s338 = scalar_lea.vmem %s0, %s337
        %p339 = pneg %p52
        %p340 = pneg %p49
        %p341 = pneg %p73
        %p342 = pneg %p70
        %p343 = pneg %p94
        %p344 = pneg %p91
        %p345 = pneg %p115
        %p346 = pneg %p112
        %p347 = pneg %p136
        %p348 = pneg %p133
        %p349 = pneg %p157
        %p350 = pneg %p154
        %p351 = pneg %p178
        %p352 = pneg %p175
        %p353 = pneg %p204
        %p354 = pneg %p201
        %s355 = sand.u32 %s191, 1
        %s356 = scalar_lea.sflag [#allocation3], %s355
        %s357 = sand.u32 %s191, 1
        %s358 = smul.addr %s357, 16
        %s359 = scalar_lea.vmem [#allocation2], %s358
        %p360 = pneg %p230
        %p361 = pneg %p227
        %s362 = sand.u32 %s31, 1
        %s363 = scalar_lea.sflag [#allocation5], %s362
        %s364 = sand.u32 %s217, 1
        %s365 = smul.addr %s364, 128
        %s366 = scalar_lea.vmem [#allocation4], %s365
        %p367 = pneg %p256
        %p368 = pneg %p253
        %s369 = sand.u32 %s31, 1
        %s370 = scalar_lea.sflag [#allocation5], %s369
        %s371 = sand.u32 %s243, 1
        %s372 = smul.addr %s371, 128
        %s373 = scalar_lea.vmem [#allocation6], %s372
        %p374 = pneg %p282
        %p375 = pneg %p279
        %s376 = sand.u32 %s269, 1
        %s377 = scalar_lea.sflag [#allocation8], %s376
        %s378 = sand.u32 %s269, 1
        %s379 = smul.addr %s378, 128
        %s380 = scalar_lea.vmem [#allocation7], %s379
        %p381 = scmp.lt.s32.totalorder %s31, 1
        %s382 = scalar_select %p381, %s31, 1
        %s383 = smul.addr %s382, 2
        %s384 = smul.addr %s383, 8
        %s385 = scalar_lea.vmem %s0, %s384
        %v386 = vlaneseq
        %v387 = vshrl.u32 %v386, 7
        %v388 = vadd.s32 %v387, 8
        %v389 = vlaneseq
        %v390 = vand.u32 %v389, 127
        %v391 = vsub.s32 %v387, %v390
        %v392 = vsub.s32 %v388, %v390
        %v393 = vcvt.s32.f32 %v391
        %v394 = vcvt.s32.f32 %v392
        %v395 = vmul.f32 %v393, %v393
        %v396 = vmul.f32 %v394, %v394
        %v397 = vmul.f32 %v395, -0.5
        %v398 = vmul.f32 %v396, -0.5
        %v399 = vld [vmem:[%s385] sm:$0xff]
        %v400 = vld [vmem:[%s385 + $0x8] sm:$0xff]
        %v401 = vld [vmem:[%s5] sm:$0xff]
        %v402 = vld [vmem:[%s1] sm:$0xff]
        %v403 = vld [vmem:[%s1 + $0x8] sm:$0xff]
        %v404 = vld [vmem:[%s1 + $0x10] sm:$0xff]
        %v405 = vld [vmem:[%s1 + $0x18] sm:$0xff]
        %v406 = vlaneseq
        %v407 = vshrl.u32 %v406, 7
        %v408 = vsub.s32 0, %v407
        %v409 = vrot.slane %v401, %v408
        %vm410 = vcmask 261120
        %v412 = vsel %vm410, %v399, 0
        %v415 = vsel %vm410, %v400, 0
        %417 = vmatprep.subr.mxu0 0.0
        %418 = vmatpush1.msra.mxu0 %v402
        %419 = vmatprep.subr.mxu0 0.0
        %420 = vmatpush1.msra.mxu0 %v403
        %421 = vmatprep.subr.mxu0 0.0
        %422 = vmatpush1.msra.mxu0 %v404
        %423 = vmatprep.subr.mxu0 0.0
        %424 = vmatpush1.msra.mxu0 %v405
        %425 = vmatprep.subr.mxu0 0.0
        %426 = vmatpush1.msra.mxu0 0.0
        %427 = vmatprep.subr.mxu0 0.0
        %428 = vmatpush1.msra.mxu0 0.0
        %429 = vmatprep.subr.mxu0 0.0
        %430 = vmatpush1.msra.mxu0 0.0
        %431 = vmatprep.subr.mxu0 0.0
        %432 = vmatpush1.msra.mxu0 0.0
        %433 = vmatprep.subr.mxu0 0.0
        %434 = vmatpush1.msra.mxu0 0.0
        %435 = vmatprep.subr.mxu0 0.0
        %436 = vmatpush1.msra.mxu0 0.0
        %437 = vmatprep.subr.mxu0 0.0
        %438 = vmatpush1.msra.mxu0 0.0
        %439 = vmatprep.subr.mxu0 0.0
        %440 = vmatpush1.msra.mxu0 0.0
        %441 = vmatprep.subr.mxu0 0.0
        %442 = vmatpush1.msra.mxu0 0.0
        %443 = vmatprep.subr.mxu0 0.0
        %444 = vmatpush1.msra.mxu0 0.0
        %445 = vmatprep.subr.mxu0 0.0
        %446 = vmatpush1.msra.mxu0 0.0
        %447 = vmatprep.subr.mxu0 0.0
        %448 = vmatpush1.msra.mxu0 0.0
        %449 = vmatprep.subr.mxu0 0.0
        %450 = vmatpush1.msra.mxu0 0.0
        %451 = vmatprep.subr.mxu0 0.0
        %452 = vmatpush1.msra.mxu0 0.0
        %453 = vmatprep.subr.mxu0 0.0
        %454 = vmatpush1.msra.mxu0 0.0
        %455 = vmatprep.subr.mxu0 0.0
        %456 = vmatpush1.msra.mxu0 0.0
        %457 = vmatprep.subr.mxu0 0.0
        %458 = vmatpush1.msra.mxu0 0.0
        %459 = vmatprep.subr.mxu0 0.0
        %460 = vmatpush1.msra.mxu0 0.0
        %461 = vmatprep.subr.mxu0 0.0
        %462 = vmatpush1.msra.mxu0 0.0
        %463 = vmatprep.subr.mxu0 0.0
        %464 = vmatpush1.msra.mxu0 0.0
        %465 = vmatprep.subr.mxu0 0.0
        %466 = vmatpush1.msra.mxu0 0.0
        %467 = vmatprep.subr.mxu0 0.0
        %468 = vmatpush1.msra.mxu0 0.0
        %469 = vmatprep.subr.mxu0 0.0
        %470 = vmatpush1.msra.mxu0 0.0
        %471 = vmatprep.subr.mxu0 0.0
        %472 = vmatpush1.msra.mxu0 0.0
        %473 = vmatprep.subr.mxu0 0.0
        %474 = vmatpush1.msra.mxu0 0.0
        %475 = vmatprep.subr.mxu0 0.0
        %476 = vmatpush1.msra.mxu0 0.0
        %477 = vmatprep.subr.mxu0 0.0
        %478 = vmatpush1.msra.mxu0 0.0
        %479 = vmatprep.subr.mxu0 0.0
        %480 = vmatpush1.msra.mxu0 0.0
        %481 = vmatprep.mubr.f32.mxu0 0.0
        %482 = vmatmul.mubr.f32.gmra.mrb[0].mxu0 %v412
        %v483 = vpop.f32.mrb[0].mxu0
        %v484 = vadd.f32 %v409, %v483
        %v485 = vpop.f32.mrb[0].mxu0
        %486 = vmatprep.mubr.f32.mxu0 0.0
        %487 = vmatmul.mubr.f32.gmra.mrb[0].mxu0 %v415
        %v488 = vpop.f32.mrb[0].mxu0
        %v489 = vadd.f32 %v409, %v488
        %v490 = vpop.f32.mrb[0].mxu0
        %491 = vdwg.mxu0
        %v492 = vmul.f32 %v484, 0.35355338
        %v493 = vmul.f32 %v489, 0.35355338
        %v494 = vmul.f32 %v484, 5.0
        %v495 = vmul.f32 %v489, 5.0
        %v496 = vxor.u32 %v494, 2147483648
        %v497 = vxor.u32 %v495, 2147483648
        %v498 = vmul.f32 %v496, 1.442695
        %v499 = vpow.pop %v498
        %v500 = vmul.f32 %v497, 1.442695
        %v501 = vpow.pop %v500
        %v502 = vadd.f32 %v499, 1.0
        %v503 = vadd.f32 %v501, 1.0
        %v504 = vrcp.pop %v502
        %v505 = vmul.f32 1.0, %v504
        %v506 = vrcp.pop %v503
        %v507 = vmul.f32 1.0, %v506
        %v508 = vadd.f32 %v505, 1e-05
        %v509 = vadd.f32 %v507, 1e-05
        %v510 = vmul.f32 %v508, 1.0986123
        %v511 = vmul.f32 %v509, 1.0986123
        %v512 = vmul.f32 %v510, 1.442695
        %v513 = vpow.pop %v512
        %v514 = vmul.f32 %v511, 1.442695
        %v515 = vpow.pop %v514
        %v516 = vsub.f32 %v513, 1.0
        %v517 = vsub.f32 %v515, 1.0
        %v518 = vrcp.pop %v516
        %v519 = vrcp.pop %v517
        %v520 = vmul.f32 %v518, 0.3989423
        %v521 = vmul.f32 %v519, 0.3989423
        %v522 = vmul.f32 %v518, %v518
        %v523 = vmul.f32 %v519, %v519
        %526 = vrot.lane.b32.xlu0 %v484, 96
        %v527 = vpop.permute.xlu0 %526
        %528 = vrot.lane.b32.xlu0 %v489, 96
        %v529 = vpop.permute.xlu0 %528
        %vm530 = vcmask 64512
        %v532 = vsel %vm530, %v492, 0
        %v535 = vsel %vm530, %v493, 0
        %v537 = vsel %vm530, %v527, 0
        %v539 = vsel %vm530, %v529, 0
        %541 = vmatprep.subr.mxu0 0.0
        %542 = vmatpush1.xpose.msra.mxu0 %v537
        %543 = vmatprep.subr.mxu0 0.0
        %544 = vmatpush1.xpose.msra.mxu0 %v539
        %545 = vmatprep.subr.mxu0 0.0
        %546 = vmatpush1.xpose.msra.mxu0 0.0
        %547 = vmatprep.subr.mxu0 0.0
        %548 = vmatpush1.xpose.msra.mxu0 0.0
        %549 = vmatprep.subr.mxu0 0.0
        %550 = vmatpush1.xpose.msra.mxu0 0.0
        %551 = vmatprep.subr.mxu0 0.0
        %552 = vmatpush1.xpose.msra.mxu0 0.0
        %553 = vmatprep.subr.mxu0 0.0
        %554 = vmatpush1.xpose.msra.mxu0 0.0
        %555 = vmatprep.subr.mxu0 0.0
        %556 = vmatpush1.xpose.msra.mxu0 0.0
        %557 = vmatprep.subr.mxu0 0.0
        %558 = vmatpush1.xpose.msra.mxu0 0.0
        %559 = vmatprep.subr.mxu0 0.0
        %560 = vmatpush1.xpose.msra.mxu0 0.0
        %561 = vmatprep.subr.mxu0 0.0
        %562 = vmatpush1.xpose.msra.mxu0 0.0
        %563 = vmatprep.subr.mxu0 0.0
        %564 = vmatpush1.xpose.msra.mxu0 0.0
        %565 = vmatprep.subr.mxu0 0.0
        %566 = vmatpush1.xpose.msra.mxu0 0.0
        %567 = vmatprep.subr.mxu0 0.0
        %568 = vmatpush1.xpose.msra.mxu0 0.0
        %569 = vmatprep.subr.mxu0 0.0
        %570 = vmatpush1.xpose.msra.mxu0 0.0
        %571 = vmatprep.subr.mxu0 0.0
        %572 = vmatpush1.xpose.msra.mxu0 0.0
        %573 = vmatprep.subr.mxu0 0.0
        %574 = vmatpush1.xpose.msra.mxu0 0.0
        %575 = vmatprep.subr.mxu0 0.0
        %576 = vmatpush1.xpose.msra.mxu0 0.0
        %577 = vmatprep.subr.mxu0 0.0
        %578 = vmatpush1.xpose.msra.mxu0 0.0
        %579 = vmatprep.subr.mxu0 0.0
        %580 = vmatpush1.xpose.msra.mxu0 0.0
        %581 = vmatprep.subr.mxu0 0.0
        %582 = vmatpush1.xpose.msra.mxu0 0.0
        %583 = vmatprep.subr.mxu0 0.0
        %584 = vmatpush1.xpose.msra.mxu0 0.0
        %585 = vmatprep.subr.mxu0 0.0
        %586 = vmatpush1.xpose.msra.mxu0 0.0
        %587 = vmatprep.subr.mxu0 0.0
        %588 = vmatpush1.xpose.msra.mxu0 0.0
        %589 = vmatprep.subr.mxu0 0.0
        %590 = vmatpush1.xpose.msra.mxu0 0.0
        %591 = vmatprep.subr.mxu0 0.0
        %592 = vmatpush1.xpose.msra.mxu0 0.0
        %593 = vmatprep.subr.mxu0 0.0
        %594 = vmatpush1.xpose.msra.mxu0 0.0
        %595 = vmatprep.subr.mxu0 0.0
        %596 = vmatpush1.xpose.msra.mxu0 0.0
        %597 = vmatprep.subr.mxu0 0.0
        %598 = vmatpush1.xpose.msra.mxu0 0.0
        %599 = vmatprep.subr.mxu0 0.0
        %600 = vmatpush1.xpose.msra.mxu0 0.0
        %601 = vmatprep.subr.mxu0 0.0
        %602 = vmatpush1.xpose.msra.mxu0 0.0
        %603 = vmatprep.subr.mxu0 0.0
        %604 = vmatpush1.xpose.msra.mxu0 0.0
        %605 = vmatprep.mubr.f32.mxu0 0.0
        %606 = vmatmul.mubr.f32.gmra.mrb[0].mxu0 %v532
        %v607 = vpop.f32.mrb[0].mxu0
        %v608 = vadd.f32 0.0, %v607
        %v609 = vpop.f32.mrb[0].mxu0
        %610 = vmatprep.mubr.f32.mxu0 0.0
        %611 = vmatmul.mubr.f32.gmra.mrb[0].mxu0 %v535
        %v612 = vpop.f32.mrb[0].mxu0
        %v613 = vadd.f32 0.0, %v612
        %v614 = vpop.f32.mrb[0].mxu0
        %615 = vdwg.mxu0
        %vm616 = vcmask 130048
        %v617 = vsel %vm616, %v608, -inf
        %618 = vmax.xlane.f32.xlu0 %v617
        %v619 = vpop.xlane.xlu0 %618
        %v620 = vsel %vm616, %v613, -inf
        %621 = vmax.xlane.f32.xlu0 %v620
        %v622 = vpop.xlane.xlu0 %621
        %v623 = vsub.f32 %v608, %v619
        %v624 = vsub.f32 %v613, %v622
        %v625 = vmul.f32 %v623, 1.442695
        %v626 = vpow.pop %v625
        %v627 = vmul.f32 %v624, 1.442695
        %v628 = vpow.pop %v627
        %v629 = vsel %vm616, %v626, 0.0
        %630 = vadd.xlane.f32.xlu0 %v629
        %v631 = vpop.xlane.xlu0 %630
        %v632 = vsel %vm616, %v628, 0.0
        %633 = vadd.xlane.f32.xlu0 %v632
        %v634 = vpop.xlane.xlu0 %633
        %v635 = vrcp.pop %v631
        %v636 = vmul.f32 %v626, %v635
        %v637 = vrcp.pop %v634
        %v638 = vmul.f32 %v628, %v637
        %640 = vset.pattern.permute.xlu0 96
        %641 = vperm.xlu0 %640, %v522
        %v642 = vpop.permute.xlu0 %641
        %645 = vset.pattern.permute.xlu0 96
        %646 = vperm.xlu0 %645, %v523
        %v647 = vpop.permute.xlu0 %646
        %v649 = vmul.f32 %v397, %v642
        %v650 = vmul.f32 %v398, %v647
        %v651 = vmul.f32 %v649, 1.442695
        %v652 = vpow.pop %v651
        %v653 = vmul.f32 %v650, 1.442695
        %v654 = vpow.pop %v653
        %656 = vset.pattern.permute.xlu0 96
        %657 = vperm.xlu0 %656, %v520
        %v658 = vpop.permute.xlu0 %657
        %661 = vset.pattern.permute.xlu0 96
        %662 = vperm.xlu0 %661, %v521
        %v663 = vpop.permute.xlu0 %662
        %v665 = vmul.f32 %v658, %v652
        %v666 = vmul.f32 %v663, %v654
        %667 = vst.msk [vmem:[%s366] sm:$0xff] %vm616, %v636
        %668 = vst.msk [vmem:[%s366 + $0x8] sm:$0xff] %vm616, %v638
        %669 = vst.msk [vmem:[%s373] sm:$0xff] %vm616, %v665
        %670 = vst.msk [vmem:[%s373 + $0x8] sm:$0xff] %vm616, %v666
        %672 = vset.pattern.permute.xlu0 96
        %673 = vperm.xlu0 %672, %v516
        %v674 = vpop.permute.xlu0 %673
        %677 = vset.pattern.permute.xlu0 96
        %678 = vperm.xlu0 %677, %v517
        %v679 = vpop.permute.xlu0 %678
        %681 = vst.msk [vmem:[%s380] sm:$0xff] %vm616, %v674
        %682 = vst.msk [vmem:[%s380 + $0x8] sm:$0xff] %vm616, %v679
        %683 = vrot.lane.b32.xlu0 %v484, 64
        %v684 = vpop.permute.xlu0 %683
        %685 = vrot.lane.b32.xlu0 %v489, 64
        %v686 = vpop.permute.xlu0 %685
        %v690 = vsel %vm616, %v636, 0
        %v693 = vsel %vm616, %v638, 0
        %695 = vmatprep.subr.mxu0 0.0
        %696 = vmatpush1.msra.mxu0 %v684
        %697 = vmatprep.subr.mxu0 0.0
        %698 = vmatpush1.msra.mxu0 %v686
        %699 = vmatprep.subr.mxu0 0.0
        %700 = vmatpush1.msra.mxu0 0.0
        %701 = vmatprep.subr.mxu0 0.0
        %702 = vmatpush1.msra.mxu0 0.0
        %703 = vmatprep.subr.mxu0 0.0
        %704 = vmatpush1.msra.mxu0 0.0
        %705 = vmatprep.subr.mxu0 0.0
        %706 = vmatpush1.msra.mxu0 0.0
        %707 = vmatprep.subr.mxu0 0.0
        %708 = vmatpush1.msra.mxu0 0.0
        %709 = vmatprep.subr.mxu0 0.0
        %710 = vmatpush1.msra.mxu0 0.0
        %711 = vmatprep.subr.mxu0 0.0
        %712 = vmatpush1.msra.mxu0 0.0
        %713 = vmatprep.subr.mxu0 0.0
        %714 = vmatpush1.msra.mxu0 0.0
        %715 = vmatprep.subr.mxu0 0.0
        %716 = vmatpush1.msra.mxu0 0.0
        %717 = vmatprep.subr.mxu0 0.0
        %718 = vmatpush1.msra.mxu0 0.0
        %719 = vmatprep.subr.mxu0 0.0
        %720 = vmatpush1.msra.mxu0 0.0
        %721 = vmatprep.subr.mxu0 0.0
        %722 = vmatpush1.msra.mxu0 0.0
        %723 = vmatprep.subr.mxu0 0.0
        %724 = vmatpush1.msra.mxu0 0.0
        %725 = vmatprep.subr.mxu0 0.0
        %726 = vmatpush1.msra.mxu0 0.0
        %727 = vmatprep.subr.mxu0 0.0
        %728 = vmatpush1.msra.mxu0 0.0
        %729 = vmatprep.subr.mxu0 0.0
        %730 = vmatpush1.msra.mxu0 0.0
        %731 = vmatprep.subr.mxu0 0.0
        %732 = vmatpush1.msra.mxu0 0.0
        %733 = vmatprep.subr.mxu0 0.0
        %734 = vmatpush1.msra.mxu0 0.0
        %735 = vmatprep.subr.mxu0 0.0
        %736 = vmatpush1.msra.mxu0 0.0
        %737 = vmatprep.subr.mxu0 0.0
        %738 = vmatpush1.msra.mxu0 0.0
        %739 = vmatprep.subr.mxu0 0.0
        %740 = vmatpush1.msra.mxu0 0.0
        %741 = vmatprep.subr.mxu0 0.0
        %742 = vmatpush1.msra.mxu0 0.0
        %743 = vmatprep.subr.mxu0 0.0
        %744 = vmatpush1.msra.mxu0 0.0
        %745 = vmatprep.subr.mxu0 0.0
        %746 = vmatpush1.msra.mxu0 0.0
        %747 = vmatprep.subr.mxu0 0.0
        %748 = vmatpush1.msra.mxu0 0.0
        %749 = vmatprep.subr.mxu0 0.0
        %750 = vmatpush1.msra.mxu0 0.0
        %751 = vmatprep.subr.mxu0 0.0
        %752 = vmatpush1.msra.mxu0 0.0
        %753 = vmatprep.subr.mxu0 0.0
        %754 = vmatpush1.msra.mxu0 0.0
        %755 = vmatprep.subr.mxu0 0.0
        %756 = vmatpush1.msra.mxu0 0.0
        %757 = vmatprep.subr.mxu0 0.0
        %758 = vmatpush1.msra.mxu0 0.0
        %759 = vmatprep.mubr.f32.mxu0 0.0
        %760 = vmatmul.mubr.f32.gmra.mrb[0].mxu0 %v690
        %v761 = vpop.f32.mrb[0].mxu0
        %v762 = vadd.f32 0.0, %v761
        %v763 = vpop.f32.mrb[0].mxu0
        %764 = vmatprep.mubr.f32.mxu0 0.0
        %765 = vmatmul.mubr.f32.gmra.mrb[0].mxu0 %v693
        %v766 = vpop.f32.mrb[0].mxu0
        %v767 = vadd.f32 0.0, %v766
        %v768 = vpop.f32.mrb[0].mxu0
        %769 = vdwg.mxu0
        %v770 = vld [vmem:[%s2] sm:$0xff]
        %771 = vrot.lane.b32.xlu0 %v492, 120
        %v772 = vpop.permute.xlu0 %771
        %773 = vrot.lane.b32.xlu0 %v493, 120
        %v774 = vpop.permute.xlu0 %773
        %775 = vrot.lane.b32.xlu0 %v484, 88
        %v776 = vpop.permute.xlu0 %775
        %777 = vrot.lane.b32.xlu0 %v489, 88
        %v778 = vpop.permute.xlu0 %777
        %v779 = vsel %vm530, %v772, 0
        %v781 = vsel %vm530, %v774, 0
        %v783 = vsel %vm530, %v776, 0
        %v785 = vsel %vm530, %v778, 0
        %787 = vmatprep.subr.mxu0 0.0
        %788 = vmatpush1.xpose.msra.mxu0 %v783
        %789 = vmatprep.subr.mxu0 0.0
        %790 = vmatpush1.xpose.msra.mxu0 %v785
        %791 = vmatprep.subr.mxu0 0.0
        %792 = vmatpush1.xpose.msra.mxu0 0.0
        %793 = vmatprep.subr.mxu0 0.0
        %794 = vmatpush1.xpose.msra.mxu0 0.0
        %795 = vmatprep.subr.mxu0 0.0
        %796 = vmatpush1.xpose.msra.mxu0 0.0
        %797 = vmatprep.subr.mxu0 0.0
        %798 = vmatpush1.xpose.msra.mxu0 0.0
        %799 = vmatprep.subr.mxu0 0.0
        %800 = vmatpush1.xpose.msra.mxu0 0.0
        %801 = vmatprep.subr.mxu0 0.0
        %802 = vmatpush1.xpose.msra.mxu0 0.0
        %803 = vmatprep.subr.mxu0 0.0
        %804 = vmatpush1.xpose.msra.mxu0 0.0
        %805 = vmatprep.subr.mxu0 0.0
        %806 = vmatpush1.xpose.msra.mxu0 0.0
        %807 = vmatprep.subr.mxu0 0.0
        %808 = vmatpush1.xpose.msra.mxu0 0.0
        %809 = vmatprep.subr.mxu0 0.0
        %810 = vmatpush1.xpose.msra.mxu0 0.0
        %811 = vmatprep.subr.mxu0 0.0
        %812 = vmatpush1.xpose.msra.mxu0 0.0
        %813 = vmatprep.subr.mxu0 0.0
        %814 = vmatpush1.xpose.msra.mxu0 0.0
        %815 = vmatprep.subr.mxu0 0.0
        %816 = vmatpush1.xpose.msra.mxu0 0.0
        %817 = vmatprep.subr.mxu0 0.0
        %818 = vmatpush1.xpose.msra.mxu0 0.0
        %819 = vmatprep.subr.mxu0 0.0
        %820 = vmatpush1.xpose.msra.mxu0 0.0
        %821 = vmatprep.subr.mxu0 0.0
        %822 = vmatpush1.xpose.msra.mxu0 0.0
        %823 = vmatprep.subr.mxu0 0.0
        %824 = vmatpush1.xpose.msra.mxu0 0.0
        %825 = vmatprep.subr.mxu0 0.0
        %826 = vmatpush1.xpose.msra.mxu0 0.0
        %827 = vmatprep.subr.mxu0 0.0
        %828 = vmatpush1.xpose.msra.mxu0 0.0
        %829 = vmatprep.subr.mxu0 0.0
        %830 = vmatpush1.xpose.msra.mxu0 0.0
        %831 = vmatprep.subr.mxu0 0.0
        %832 = vmatpush1.xpose.msra.mxu0 0.0
        %833 = vmatprep.subr.mxu0 0.0
        %834 = vmatpush1.xpose.msra.mxu0 0.0
        %835 = vmatprep.subr.mxu0 0.0
        %836 = vmatpush1.xpose.msra.mxu0 0.0
        %837 = vmatprep.subr.mxu0 0.0
        %838 = vmatpush1.xpose.msra.mxu0 0.0
        %839 = vmatprep.subr.mxu0 0.0
        %840 = vmatpush1.xpose.msra.mxu0 0.0
        %841 = vmatprep.subr.mxu0 0.0
        %842 = vmatpush1.xpose.msra.mxu0 0.0
        %843 = vmatprep.subr.mxu0 0.0
        %844 = vmatpush1.xpose.msra.mxu0 0.0
        %845 = vmatprep.subr.mxu0 0.0
        %846 = vmatpush1.xpose.msra.mxu0 0.0
        %847 = vmatprep.subr.mxu0 0.0
        %848 = vmatpush1.xpose.msra.mxu0 0.0
        %849 = vmatprep.subr.mxu0 0.0
        %850 = vmatpush1.xpose.msra.mxu0 0.0
        %851 = vmatprep.mubr.f32.mxu0 0.0
        %852 = vmatmul.mubr.f32.gmra.mrb[0].mxu0 %v779
        %v853 = vpop.f32.mrb[0].mxu0
        %v854 = vadd.f32 0.0, %v853
        %v855 = vpop.f32.mrb[0].mxu0
        %856 = vmatprep.mubr.f32.mxu0 0.0
        %857 = vmatmul.mubr.f32.gmra.mrb[0].mxu0 %v781
        %v858 = vpop.f32.mrb[0].mxu0
        %v859 = vadd.f32 0.0, %v858
        %v860 = vpop.f32.mrb[0].mxu0
        %861 = vdwg.mxu0
        %v862 = vsel %vm616, %v854, -inf
        %863 = vmax.xlane.f32.xlu0 %v862
        %v864 = vpop.xlane.xlu0 %863
        %v865 = vsel %vm616, %v859, -inf
        %866 = vmax.xlane.f32.xlu0 %v865
        %v867 = vpop.xlane.xlu0 %866
        %v868 = vsub.f32 %v854, %v864
        %v869 = vsub.f32 %v859, %v867
        %v870 = vmul.f32 %v868, 1.442695
        %v871 = vpow.pop %v870
        %v872 = vmul.f32 %v869, 1.442695
        %v873 = vpow.pop %v872
        %v874 = vsel %vm616, %v871, 0.0
        %875 = vadd.xlane.f32.xlu0 %v874
        %v876 = vpop.xlane.xlu0 %875
        %v877 = vsel %vm616, %v873, 0.0
        %878 = vadd.xlane.f32.xlu0 %v877
        %v879 = vpop.xlane.xlu0 %878
        %v880 = vrcp.pop %v876
        %v881 = vmul.f32 %v871, %v880
        %v882 = vrcp.pop %v879
        %v883 = vmul.f32 %v873, %v882
        %884 = vset.pattern.permute.xlu0 97
        %885 = vperm.xlu0 %884, %v522
        %v886 = vpop.permute.xlu0 %885
        %888 = vset.pattern.permute.xlu0 97
        %889 = vperm.xlu0 %888, %v523
        %v890 = vpop.permute.xlu0 %889
        %v892 = vmul.f32 %v397, %v886
        %v893 = vmul.f32 %v398, %v890
        %v894 = vmul.f32 %v892, 1.442695
        %v895 = vpow.pop %v894
        %v896 = vmul.f32 %v893, 1.442695
        %v897 = vpow.pop %v896
        %898 = vset.pattern.permute.xlu0 97
        %899 = vperm.xlu0 %898, %v520
        %v900 = vpop.permute.xlu0 %899
        %902 = vset.pattern.permute.xlu0 97
        %903 = vperm.xlu0 %902, %v521
        %v904 = vpop.permute.xlu0 %903
        %v906 = vmul.f32 %v900, %v895
        %v907 = vmul.f32 %v904, %v897
        %s908 = scalar_lea.vmem %s366, 16 [#allocation4]
        %909 = vst.msk [vmem:[%s908] sm:$0xff] %vm616, %v881
        %910 = vst.msk [vmem:[%s908 + $0x8] sm:$0xff] %vm616, %v883
        %s911 = scalar_lea.vmem %s373, 16 [#allocation6]
        %912 = vst.msk [vmem:[%s911] sm:$0xff] %vm616, %v906
        %913 = vst.msk [vmem:[%s911 + $0x8] sm:$0xff] %vm616, %v907
        %914 = vset.pattern.permute.xlu0 97
        %915 = vperm.xlu0 %914, %v516
        %v916 = vpop.permute.xlu0 %915
        %918 = vset.pattern.permute.xlu0 97
        %919 = vperm.xlu0 %918, %v517
        %v920 = vpop.permute.xlu0 %919
        %s922 = scalar_lea.vmem %s380, 16 [#allocation7]
        %923 = vst.msk [vmem:[%s922] sm:$0xff] %vm616, %v916
        %924 = vst.msk [vmem:[%s922 + $0x8] sm:$0xff] %vm616, %v920
        %925 = vrot.lane.b32.xlu0 %v484, 56
        %v926 = vpop.permute.xlu0 %925
        %927 = vrot.lane.b32.xlu0 %v489, 56
        %v928 = vpop.permute.xlu0 %927
        %v932 = vsel %vm616, %v881, 0
        %v935 = vsel %vm616, %v883, 0
        %937 = vmatprep.subr.mxu0 0.0
        %938 = vmatpush1.msra.mxu0 %v926
        %939 = vmatprep.subr.mxu0 0.0
        %940 = vmatpush1.msra.mxu0 %v928
        %941 = vmatprep.subr.mxu0 0.0
        %942 = vmatpush1.msra.mxu0 0.0
        %943 = vmatprep.subr.mxu0 0.0
        %944 = vmatpush1.msra.mxu0 0.0
        %945 = vmatprep.subr.mxu0 0.0
        %946 = vmatpush1.msra.mxu0 0.0
        %947 = vmatprep.subr.mxu0 0.0
        %948 = vmatpush1.msra.mxu0 0.0
        %949 = vmatprep.subr.mxu0 0.0
        %950 = vmatpush1.msra.mxu0 0.0
        %951 = vmatprep.subr.mxu0 0.0
        %952 = vmatpush1.msra.mxu0 0.0
        %953 = vmatprep.subr.mxu0 0.0
        %954 = vmatpush1.msra.mxu0 0.0
        %955 = vmatprep.subr.mxu0 0.0
        %956 = vmatpush1.msra.mxu0 0.0
        %957 = vmatprep.subr.mxu0 0.0
        %958 = vmatpush1.msra.mxu0 0.0
        %959 = vmatprep.subr.mxu0 0.0
        %960 = vmatpush1.msra.mxu0 0.0
        %961 = vmatprep.subr.mxu0 0.0
        %962 = vmatpush1.msra.mxu0 0.0
        %963 = vmatprep.subr.mxu0 0.0
        %964 = vmatpush1.msra.mxu0 0.0
        %965 = vmatprep.subr.mxu0 0.0
        %966 = vmatpush1.msra.mxu0 0.0
        %967 = vmatprep.subr.mxu0 0.0
        %968 = vmatpush1.msra.mxu0 0.0
        %969 = vmatprep.subr.mxu0 0.0
        %970 = vmatpush1.msra.mxu0 0.0
        %971 = vmatprep.subr.mxu0 0.0
        %972 = vmatpush1.msra.mxu0 0.0
        %973 = vmatprep.subr.mxu0 0.0
        %974 = vmatpush1.msra.mxu0 0.0
        %975 = vmatprep.subr.mxu0 0.0
        %976 = vmatpush1.msra.mxu0 0.0
        %977 = vmatprep.subr.mxu0 0.0
        %978 = vmatpush1.msra.mxu0 0.0
        %979 = vmatprep.subr.mxu0 0.0
        %980 = vmatpush1.msra.mxu0 0.0
        %981 = vmatprep.subr.mxu0 0.0
        %982 = vmatpush1.msra.mxu0 0.0
        %983 = vmatprep.subr.mxu0 0.0
        %984 = vmatpush1.msra.mxu0 0.0
        %985 = vmatprep.subr.mxu0 0.0
        %986 = vmatpush1.msra.mxu0 0.0
        %987 = vmatprep.subr.mxu0 0.0
        %988 = vmatpush1.msra.mxu0 0.0
        %989 = vmatprep.subr.mxu0 0.0
        %990 = vmatpush1.msra.mxu0 0.0
        %991 = vmatprep.subr.mxu0 0.0
        %992 = vmatpush1.msra.mxu0 0.0
        %993 = vmatprep.subr.mxu0 0.0
        %994 = vmatpush1.msra.mxu0 0.0
        %995 = vmatprep.subr.mxu0 0.0
        %996 = vmatpush1.msra.mxu0 0.0
        %997 = vmatprep.subr.mxu0 0.0
        %998 = vmatpush1.msra.mxu0 0.0
        %999 = vmatprep.subr.mxu0 0.0
        %1000 = vmatpush1.msra.mxu0 0.0
        %1001 = vmatprep.mubr.f32.mxu0 0.0
        %1002 = vmatmul.mubr.f32.gmra.mrb[0].mxu0 %v932
        %v1003 = vpop.f32.mrb[0].mxu0
        %v1004 = vadd.f32 0.0, %v1003
        %v1005 = vpop.f32.mrb[0].mxu0
        %1006 = vmatprep.mubr.f32.mxu0 0.0
        %1007 = vmatmul.mubr.f32.gmra.mrb[0].mxu0 %v935
        %v1008 = vpop.f32.mrb[0].mxu0
        %v1009 = vadd.f32 0.0, %v1008
        %v1010 = vpop.f32.mrb[0].mxu0
        %1011 = vdwg.mxu0
        %v1012 = vld [vmem:[%s2 + $0x8] sm:$0xff]
        %v1014 = vsel %vm530, %v1004, 0
        %v1017 = vsel %vm530, %v1009, 0
        %1019 = vmatprep.subr.mxu0 0.0
        %1020 = vmatpush1.msra.mxu0 %v1012
        %1021 = vmatprep.subr.mxu0 0.0
        %1022 = vmatpush1.msra.mxu0 0.0
        %1023 = vmatprep.subr.mxu0 0.0
        %1024 = vmatpush1.msra.mxu0 0.0
        %1025 = vmatprep.subr.mxu0 0.0
        %1026 = vmatpush1.msra.mxu0 0.0
        %1027 = vmatprep.subr.mxu0 0.0
        %1028 = vmatpush1.msra.mxu0 0.0
        %1029 = vmatprep.subr.mxu0 0.0
        %1030 = vmatpush1.msra.mxu0 0.0
        %1031 = vmatprep.subr.mxu0 0.0
        %1032 = vmatpush1.msra.mxu0 0.0
        %1033 = vmatprep.subr.mxu0 0.0
        %1034 = vmatpush1.msra.mxu0 0.0
        %1035 = vmatprep.subr.mxu0 0.0
        %1036 = vmatpush1.msra.mxu0 0.0
        %1037 = vmatprep.subr.mxu0 0.0
        %1038 = vmatpush1.msra.mxu0 0.0
        %1039 = vmatprep.subr.mxu0 0.0
        %1040 = vmatpush1.msra.mxu0 0.0
        %1041 = vmatprep.subr.mxu0 0.0
        %1042 = vmatpush1.msra.mxu0 0.0
        %1043 = vmatprep.subr.mxu0 0.0
        %1044 = vmatpush1.msra.mxu0 0.0
        %1045 = vmatprep.subr.mxu0 0.0
        %1046 = vmatpush1.msra.mxu0 0.0
        %1047 = vmatprep.subr.mxu0 0.0
        %1048 = vmatpush1.msra.mxu0 0.0
        %1049 = vmatprep.subr.mxu0 0.0
        %1050 = vmatpush1.msra.mxu0 0.0
        %1051 = vmatprep.subr.mxu0 0.0
        %1052 = vmatpush1.msra.mxu0 0.0
        %1053 = vmatprep.subr.mxu0 0.0
        %1054 = vmatpush1.msra.mxu0 0.0
        %1055 = vmatprep.subr.mxu0 0.0
        %1056 = vmatpush1.msra.mxu0 0.0
        %1057 = vmatprep.subr.mxu0 0.0
        %1058 = vmatpush1.msra.mxu0 0.0
        %1059 = vmatprep.subr.mxu0 0.0
        %1060 = vmatpush1.msra.mxu0 0.0
        %1061 = vmatprep.subr.mxu0 0.0
        %1062 = vmatpush1.msra.mxu0 0.0
        %1063 = vmatprep.subr.mxu0 0.0
        %1064 = vmatpush1.msra.mxu0 0.0
        %1065 = vmatprep.subr.mxu0 0.0
        %1066 = vmatpush1.msra.mxu0 0.0
        %1067 = vmatprep.subr.mxu0 0.0
        %1068 = vmatpush1.msra.mxu0 0.0
        %1069 = vmatprep.subr.mxu0 0.0
        %1070 = vmatpush1.msra.mxu0 0.0
        %1071 = vmatprep.subr.mxu0 0.0
        %1072 = vmatpush1.msra.mxu0 0.0
        %1073 = vmatprep.subr.mxu0 0.0
        %1074 = vmatpush1.msra.mxu0 0.0
        %1075 = vmatprep.subr.mxu0 0.0
        %1076 = vmatpush1.msra.mxu0 0.0
        %1077 = vmatprep.subr.mxu0 0.0
        %1078 = vmatpush1.msra.mxu0 0.0
        %1079 = vmatprep.subr.mxu0 0.0
        %1080 = vmatpush1.msra.mxu0 0.0
        %1081 = vmatprep.subr.mxu0 0.0
        %1082 = vmatpush1.msra.mxu0 0.0
        %1083 = vmatprep.mubr.f32.mxu0 0.0
        %1084 = vmatmul.mubr.f32.gmra.mrb[0].mxu0 %v1014
        %v1085 = vpop.f32.mrb[0].mxu0
        %v1086 = vadd.f32 0.0, %v1085
        %v1087 = vpop.f32.mrb[0].mxu0
        %1088 = vmatprep.mubr.f32.mxu0 0.0
        %1089 = vmatmul.mubr.f32.gmra.mrb[0].mxu0 %v1017
        %v1090 = vpop.f32.mrb[0].mxu0
        %v1091 = vadd.f32 0.0, %v1090
        %v1092 = vpop.f32.mrb[0].mxu0
        %1093 = vdwg.mxu0
        %v1095 = vsel %vm530, %v762, 0
        %v1098 = vsel %vm530, %v767, 0
        %1100 = vmatprep.subr.mxu0 0.0
        %1101 = vmatpush1.msra.mxu0 %v770
        %1102 = vmatprep.subr.mxu0 0.0
        %1103 = vmatpush1.msra.mxu0 0.0
        %1104 = vmatprep.subr.mxu0 0.0
        %1105 = vmatpush1.msra.mxu0 0.0
        %1106 = vmatprep.subr.mxu0 0.0
        %1107 = vmatpush1.msra.mxu0 0.0
        %1108 = vmatprep.subr.mxu0 0.0
        %1109 = vmatpush1.msra.mxu0 0.0
        %1110 = vmatprep.subr.mxu0 0.0
        %1111 = vmatpush1.msra.mxu0 0.0
        %1112 = vmatprep.subr.mxu0 0.0
        %1113 = vmatpush1.msra.mxu0 0.0
        %1114 = vmatprep.subr.mxu0 0.0
        %1115 = vmatpush1.msra.mxu0 0.0
        %1116 = vmatprep.subr.mxu0 0.0
        %1117 = vmatpush1.msra.mxu0 0.0
        %1118 = vmatprep.subr.mxu0 0.0
        %1119 = vmatpush1.msra.mxu0 0.0
        %1120 = vmatprep.subr.mxu0 0.0
        %1121 = vmatpush1.msra.mxu0 0.0
        %1122 = vmatprep.subr.mxu0 0.0
        %1123 = vmatpush1.msra.mxu0 0.0
        %1124 = vmatprep.subr.mxu0 0.0
        %1125 = vmatpush1.msra.mxu0 0.0
        %1126 = vmatprep.subr.mxu0 0.0
        %1127 = vmatpush1.msra.mxu0 0.0
        %1128 = vmatprep.subr.mxu0 0.0
        %1129 = vmatpush1.msra.mxu0 0.0
        %1130 = vmatprep.subr.mxu0 0.0
        %1131 = vmatpush1.msra.mxu0 0.0
        %1132 = vmatprep.subr.mxu0 0.0
        %1133 = vmatpush1.msra.mxu0 0.0
        %1134 = vmatprep.subr.mxu0 0.0
        %1135 = vmatpush1.msra.mxu0 0.0
        %1136 = vmatprep.subr.mxu0 0.0
        %1137 = vmatpush1.msra.mxu0 0.0
        %1138 = vmatprep.subr.mxu0 0.0
        %1139 = vmatpush1.msra.mxu0 0.0
        %1140 = vmatprep.subr.mxu0 0.0
        %1141 = vmatpush1.msra.mxu0 0.0
        %1142 = vmatprep.subr.mxu0 0.0
        %1143 = vmatpush1.msra.mxu0 0.0
        %1144 = vmatprep.subr.mxu0 0.0
        %1145 = vmatpush1.msra.mxu0 0.0
        %1146 = vmatprep.subr.mxu0 0.0
        %1147 = vmatpush1.msra.mxu0 0.0
        %1148 = vmatprep.subr.mxu0 0.0
        %1149 = vmatpush1.msra.mxu0 0.0
        %1150 = vmatprep.subr.mxu0 0.0
        %1151 = vmatpush1.msra.mxu0 0.0
        %1152 = vmatprep.subr.mxu0 0.0
        %1153 = vmatpush1.msra.mxu0 0.0
        %1154 = vmatprep.subr.mxu0 0.0
        %1155 = vmatpush1.msra.mxu0 0.0
        %1156 = vmatprep.subr.mxu0 0.0
        %1157 = vmatpush1.msra.mxu0 0.0
        %1158 = vmatprep.subr.mxu0 0.0
        %1159 = vmatpush1.msra.mxu0 0.0
        %1160 = vmatprep.subr.mxu0 0.0
        %1161 = vmatpush1.msra.mxu0 0.0
        %1162 = vmatprep.subr.mxu0 0.0
        %1163 = vmatpush1.msra.mxu0 0.0
        %1164 = vmatprep.mubr.f32.mxu0 0.0
        %1165 = vmatmul.mubr.f32.gmra.mrb[0].mxu0 %v1095
        %v1166 = vpop.f32.mrb[0].mxu0
        %v1167 = vadd.f32 %v1086, %v1166
        %v1168 = vpop.f32.mrb[0].mxu0
        %1169 = vmatprep.mubr.f32.mxu0 0.0
        %1170 = vmatmul.mubr.f32.gmra.mrb[0].mxu0 %v1098
        %v1171 = vpop.f32.mrb[0].mxu0
        %v1172 = vadd.f32 %v1091, %v1171
        %v1173 = vpop.f32.mrb[0].mxu0
        %1174 = vdwg.mxu0
        %1175 = vrot.lane.b32.xlu0 %v492, 112
        %v1176 = vpop.permute.xlu0 %1175
        %1177 = vrot.lane.b32.xlu0 %v493, 112
        %v1178 = vpop.permute.xlu0 %1177
        %1179 = vrot.lane.b32.xlu0 %v484, 80
        %v1180 = vpop.permute.xlu0 %1179
        %1181 = vrot.lane.b32.xlu0 %v489, 80
        %v1182 = vpop.permute.xlu0 %1181
        %v1183 = vsel %vm530, %v1176, 0
        %v1185 = vsel %vm530, %v1178, 0
        %v1187 = vsel %vm530, %v1180, 0
        %v1189 = vsel %vm530, %v1182, 0
        %1191 = vmatprep.subr.mxu0 0.0
        %1192 = vmatpush1.xpose.msra.mxu0 %v1187
        %1193 = vmatprep.subr.mxu0 0.0
        %1194 = vmatpush1.xpose.msra.mxu0 %v1189
        %1195 = vmatprep.subr.mxu0 0.0
        %1196 = vmatpush1.xpose.msra.mxu0 0.0
        %1197 = vmatprep.subr.mxu0 0.0
        %1198 = vmatpush1.xpose.msra.mxu0 0.0
        %1199 = vmatprep.subr.mxu0 0.0
        %1200 = vmatpush1.xpose.msra.mxu0 0.0
        %1201 = vmatprep.subr.mxu0 0.0
        %1202 = vmatpush1.xpose.msra.mxu0 0.0
        %1203 = vmatprep.subr.mxu0 0.0
        %1204 = vmatpush1.xpose.msra.mxu0 0.0
        %1205 = vmatprep.subr.mxu0 0.0
        %1206 = vmatpush1.xpose.msra.mxu0 0.0
        %1207 = vmatprep.subr.mxu0 0.0
        %1208 = vmatpush1.xpose.msra.mxu0 0.0
        %1209 = vmatprep.subr.mxu0 0.0
        %1210 = vmatpush1.xpose.msra.mxu0 0.0
        %1211 = vmatprep.subr.mxu0 0.0
        %1212 = vmatpush1.xpose.msra.mxu0 0.0
        %1213 = vmatprep.subr.mxu0 0.0
        %1214 = vmatpush1.xpose.msra.mxu0 0.0
        %1215 = vmatprep.subr.mxu0 0.0
        %1216 = vmatpush1.xpose.msra.mxu0 0.0
        %1217 = vmatprep.subr.mxu0 0.0
        %1218 = vmatpush1.xpose.msra.mxu0 0.0
        %1219 = vmatprep.subr.mxu0 0.0
        %1220 = vmatpush1.xpose.msra.mxu0 0.0
        %1221 = vmatprep.subr.mxu0 0.0
        %1222 = vmatpush1.xpose.msra.mxu0 0.0
        %1223 = vmatprep.subr.mxu0 0.0
        %1224 = vmatpush1.xpose.msra.mxu0 0.0
        %1225 = vmatprep.subr.mxu0 0.0
        %1226 = vmatpush1.xpose.msra.mxu0 0.0
        %1227 = vmatprep.subr.mxu0 0.0
        %1228 = vmatpush1.xpose.msra.mxu0 0.0
        %1229 = vmatprep.subr.mxu0 0.0
        %1230 = vmatpush1.xpose.msra.mxu0 0.0
        %1231 = vmatprep.subr.mxu0 0.0
        %1232 = vmatpush1.xpose.msra.mxu0 0.0
        %1233 = vmatprep.subr.mxu0 0.0
        %1234 = vmatpush1.xpose.msra.mxu0 0.0
        %1235 = vmatprep.subr.mxu0 0.0
        %1236 = vmatpush1.xpose.msra.mxu0 0.0
        %1237 = vmatprep.subr.mxu0 0.0
        %1238 = vmatpush1.xpose.msra.mxu0 0.0
        %1239 = vmatprep.subr.mxu0 0.0
        %1240 = vmatpush1.xpose.msra.mxu0 0.0
        %1241 = vmatprep.subr.mxu0 0.0
        %1242 = vmatpush1.xpose.msra.mxu0 0.0
        %1243 = vmatprep.subr.mxu0 0.0
        %1244 = vmatpush1.xpose.msra.mxu0 0.0
        %1245 = vmatprep.subr.mxu0 0.0
        %1246 = vmatpush1.xpose.msra.mxu0 0.0
        %1247 = vmatprep.subr.mxu0 0.0
        %1248 = vmatpush1.xpose.msra.mxu0 0.0
        %1249 = vmatprep.subr.mxu0 0.0
        %1250 = vmatpush1.xpose.msra.mxu0 0.0
        %1251 = vmatprep.subr.mxu0 0.0
        %1252 = vmatpush1.xpose.msra.mxu0 0.0
        %1253 = vmatprep.subr.mxu0 0.0
        %1254 = vmatpush1.xpose.msra.mxu0 0.0
        %1255 = vmatprep.mubr.f32.mxu0 0.0
        %1256 = vmatmul.mubr.f32.gmra.mrb[0].mxu0 %v1183
        %v1257 = vpop.f32.mrb[0].mxu0
        %v1258 = vadd.f32 0.0, %v1257
        %v1259 = vpop.f32.mrb[0].mxu0
        %1260 = vmatprep.mubr.f32.mxu0 0.0
        %1261 = vmatmul.mubr.f32.gmra.mrb[0].mxu0 %v1185
        %v1262 = vpop.f32.mrb[0].mxu0
        %v1263 = vadd.f32 0.0, %v1262
        %v1264 = vpop.f32.mrb[0].mxu0
        %1265 = vdwg.mxu0
        %v1266 = vsel %vm616, %v1258, -inf
        %1267 = vmax.xlane.f32.xlu0 %v1266
        %v1268 = vpop.xlane.xlu0 %1267
        %v1269 = vsel %vm616, %v1263, -inf
        %1270 = vmax.xlane.f32.xlu0 %v1269
        %v1271 = vpop.xlane.xlu0 %1270
        %v1272 = vsub.f32 %v1258, %v1268
        %v1273 = vsub.f32 %v1263, %v1271
        %v1274 = vmul.f32 %v1272, 1.442695
        %v1275 = vpow.pop %v1274
        %v1276 = vmul.f32 %v1273, 1.442695
        %v1277 = vpow.pop %v1276
        %v1278 = vsel %vm616, %v1275, 0.0
        %1279 = vadd.xlane.f32.xlu0 %v1278
        %v1280 = vpop.xlane.xlu0 %1279
        %v1281 = vsel %vm616, %v1277, 0.0
        %1282 = vadd.xlane.f32.xlu0 %v1281
        %v1283 = vpop.xlane.xlu0 %1282
        %v1284 = vrcp.pop %v1280
        %v1285 = vmul.f32 %v1275, %v1284
        %v1286 = vrcp.pop %v1283
        %v1287 = vmul.f32 %v1277, %v1286
        %1288 = vset.pattern.permute.xlu0 98
        %1289 = vperm.xlu0 %1288, %v522
        %v1290 = vpop.permute.xlu0 %1289
        %1292 = vset.pattern.permute.xlu0 98
        %1293 = vperm.xlu0 %1292, %v523
        %v1294 = vpop.permute.xlu0 %1293
        %v1296 = vmul.f32 %v397, %v1290
        %v1297 = vmul.f32 %v398, %v1294
        %v1298 = vmul.f32 %v1296, 1.442695
        %v1299 = vpow.pop %v1298
        %v1300 = vmul.f32 %v1297, 1.442695
        %v1301 = vpow.pop %v1300
        %1302 = vset.pattern.permute.xlu0 98
        %1303 = vperm.xlu0 %1302, %v520
        %v1304 = vpop.permute.xlu0 %1303
        %1306 = vset.pattern.permute.xlu0 98
        %1307 = vperm.xlu0 %1306, %v521
        %v1308 = vpop.permute.xlu0 %1307
        %v1310 = vmul.f32 %v1304, %v1299
        %v1311 = vmul.f32 %v1308, %v1301
        %s1312 = scalar_lea.vmem %s366, 32 [#allocation4]
        %1313 = vst.msk [vmem:[%s1312] sm:$0xff] %vm616, %v1285
        %1314 = vst.msk [vmem:[%s1312 + $0x8] sm:$0xff] %vm616, %v1287
        %s1315 = scalar_lea.vmem %s373, 32 [#allocation6]
        %1316 = vst.msk [vmem:[%s1315] sm:$0xff] %vm616, %v1310
        %1317 = vst.msk [vmem:[%s1315 + $0x8] sm:$0xff] %vm616, %v1311
        %1318 = vset.pattern.permute.xlu0 98
        %1319 = vperm.xlu0 %1318, %v516
        %v1320 = vpop.permute.xlu0 %1319
        %1322 = vset.pattern.permute.xlu0 98
        %1323 = vperm.xlu0 %1322, %v517
        %v1324 = vpop.permute.xlu0 %1323
        %s1326 = scalar_lea.vmem %s380, 32 [#allocation7]
        %1327 = vst.msk [vmem:[%s1326] sm:$0xff] %vm616, %v1320
        %1328 = vst.msk [vmem:[%s1326 + $0x8] sm:$0xff] %vm616, %v1324
        %1329 = vrot.lane.b32.xlu0 %v484, 48
        %v1330 = vpop.permute.xlu0 %1329
        %1331 = vrot.lane.b32.xlu0 %v489, 48
        %v1332 = vpop.permute.xlu0 %1331
        %v1336 = vsel %vm616, %v1285, 0
        %v1339 = vsel %vm616, %v1287, 0
        %1341 = vmatprep.subr.mxu0 0.0
        %1342 = vmatpush1.msra.mxu0 %v1330
        %1343 = vmatprep.subr.mxu0 0.0
        %1344 = vmatpush1.msra.mxu0 %v1332
        %1345 = vmatprep.subr.mxu0 0.0
        %1346 = vmatpush1.msra.mxu0 0.0
        %1347 = vmatprep.subr.mxu0 0.0
        %1348 = vmatpush1.msra.mxu0 0.0
        %1349 = vmatprep.subr.mxu0 0.0
        %1350 = vmatpush1.msra.mxu0 0.0
        %1351 = vmatprep.subr.mxu0 0.0
        %1352 = vmatpush1.msra.mxu0 0.0
        %1353 = vmatprep.subr.mxu0 0.0
        %1354 = vmatpush1.msra.mxu0 0.0
        %1355 = vmatprep.subr.mxu0 0.0
        %1356 = vmatpush1.msra.mxu0 0.0
        %1357 = vmatprep.subr.mxu0 0.0
        %1358 = vmatpush1.msra.mxu0 0.0
        %1359 = vmatprep.subr.mxu0 0.0
        %1360 = vmatpush1.msra.mxu0 0.0
        %1361 = vmatprep.subr.mxu0 0.0
        %1362 = vmatpush1.msra.mxu0 0.0
        %1363 = vmatprep.subr.mxu0 0.0
        %1364 = vmatpush1.msra.mxu0 0.0
        %1365 = vmatprep.subr.mxu0 0.0
        %1366 = vmatpush1.msra.mxu0 0.0
        %1367 = vmatprep.subr.mxu0 0.0
        %1368 = vmatpush1.msra.mxu0 0.0
        %1369 = vmatprep.subr.mxu0 0.0
        %1370 = vmatpush1.msra.mxu0 0.0
        %1371 = vmatprep.subr.mxu0 0.0
        %1372 = vmatpush1.msra.mxu0 0.0
        %1373 = vmatprep.subr.mxu0 0.0
        %1374 = vmatpush1.msra.mxu0 0.0
        %1375 = vmatprep.subr.mxu0 0.0
        %1376 = vmatpush1.msra.mxu0 0.0
        %1377 = vmatprep.subr.mxu0 0.0
        %1378 = vmatpush1.msra.mxu0 0.0
        %1379 = vmatprep.subr.mxu0 0.0
        %1380 = vmatpush1.msra.mxu0 0.0
        %1381 = vmatprep.subr.mxu0 0.0
        %1382 = vmatpush1.msra.mxu0 0.0
        %1383 = vmatprep.subr.mxu0 0.0
        %1384 = vmatpush1.msra.mxu0 0.0
        %1385 = vmatprep.subr.mxu0 0.0
        %1386 = vmatpush1.msra.mxu0 0.0
        %1387 = vmatprep.subr.mxu0 0.0
        %1388 = vmatpush1.msra.mxu0 0.0
        %1389 = vmatprep.subr.mxu0 0.0
        %1390 = vmatpush1.msra.mxu0 0.0
        %1391 = vmatprep.subr.mxu0 0.0
        %1392 = vmatpush1.msra.mxu0 0.0
        %1393 = vmatprep.subr.mxu0 0.0
        %1394 = vmatpush1.msra.mxu0 0.0
        %1395 = vmatprep.subr.mxu0 0.0
        %1396 = vmatpush1.msra.mxu0 0.0
        %1397 = vmatprep.subr.mxu0 0.0
        %1398 = vmatpush1.msra.mxu0 0.0
        %1399 = vmatprep.subr.mxu0 0.0
        %1400 = vmatpush1.msra.mxu0 0.0
        %1401 = vmatprep.subr.mxu0 0.0
        %1402 = vmatpush1.msra.mxu0 0.0
        %1403 = vmatprep.subr.mxu0 0.0
        %1404 = vmatpush1.msra.mxu0 0.0
        %1405 = vmatprep.mubr.f32.mxu0 0.0
        %1406 = vmatmul.mubr.f32.gmra.mrb[0].mxu0 %v1336
        %v1407 = vpop.f32.mrb[0].mxu0
        %v1408 = vadd.f32 0.0, %v1407
        %v1409 = vpop.f32.mrb[0].mxu0
        %1410 = vmatprep.mubr.f32.mxu0 0.0
        %1411 = vmatmul.mubr.f32.gmra.mrb[0].mxu0 %v1339
        %v1412 = vpop.f32.mrb[0].mxu0
        %v1413 = vadd.f32 0.0, %v1412
        %v1414 = vpop.f32.mrb[0].mxu0
        %1415 = vdwg.mxu0
        %v1416 = vld [vmem:[%s2 + $0x10] sm:$0xff]
        %v1418 = vsel %vm530, %v1408, 0
        %v1421 = vsel %vm530, %v1413, 0
        %1423 = vmatprep.subr.mxu0 0.0
        %1424 = vmatpush1.msra.mxu0 %v1416
        %1425 = vmatprep.subr.mxu0 0.0
        %1426 = vmatpush1.msra.mxu0 0.0
        %1427 = vmatprep.subr.mxu0 0.0
        %1428 = vmatpush1.msra.mxu0 0.0
        %1429 = vmatprep.subr.mxu0 0.0
        %1430 = vmatpush1.msra.mxu0 0.0
        %1431 = vmatprep.subr.mxu0 0.0
        %1432 = vmatpush1.msra.mxu0 0.0
        %1433 = vmatprep.subr.mxu0 0.0
        %1434 = vmatpush1.msra.mxu0 0.0
        %1435 = vmatprep.subr.mxu0 0.0
        %1436 = vmatpush1.msra.mxu0 0.0
        %1437 = vmatprep.subr.mxu0 0.0
        %1438 = vmatpush1.msra.mxu0 0.0
        %1439 = vmatprep.subr.mxu0 0.0
        %1440 = vmatpush1.msra.mxu0 0.0
        %1441 = vmatprep.subr.mxu0 0.0
        %1442 = vmatpush1.msra.mxu0 0.0
        %1443 = vmatprep.subr.mxu0 0.0
        %1444 = vmatpush1.msra.mxu0 0.0
        %1445 = vmatprep.subr.mxu0 0.0
        %1446 = vmatpush1.msra.mxu0 0.0
        %1447 = vmatprep.subr.mxu0 0.0
        %1448 = vmatpush1.msra.mxu0 0.0
        %1449 = vmatprep.subr.mxu0 0.0
        %1450 = vmatpush1.msra.mxu0 0.0
        %1451 = vmatprep.subr.mxu0 0.0
        %1452 = vmatpush1.msra.mxu0 0.0
        %1453 = vmatprep.subr.mxu0 0.0
        %1454 = vmatpush1.msra.mxu0 0.0
        %1455 = vmatprep.subr.mxu0 0.0
        %1456 = vmatpush1.msra.mxu0 0.0
        %1457 = vmatprep.subr.mxu0 0.0
        %1458 = vmatpush1.msra.mxu0 0.0
        %1459 = vmatprep.subr.mxu0 0.0
        %1460 = vmatpush1.msra.mxu0 0.0
        %1461 = vmatprep.subr.mxu0 0.0
        %1462 = vmatpush1.msra.mxu0 0.0
        %1463 = vmatprep.subr.mxu0 0.0
        %1464 = vmatpush1.msra.mxu0 0.0
        %1465 = vmatprep.subr.mxu0 0.0
        %1466 = vmatpush1.msra.mxu0 0.0
        %1467 = vmatprep.subr.mxu0 0.0
        %1468 = vmatpush1.msra.mxu0 0.0
        %1469 = vmatprep.subr.mxu0 0.0
        %1470 = vmatpush1.msra.mxu0 0.0
        %1471 = vmatprep.subr.mxu0 0.0
        %1472 = vmatpush1.msra.mxu0 0.0
        %1473 = vmatprep.subr.mxu0 0.0
        %1474 = vmatpush1.msra.mxu0 0.0
        %1475 = vmatprep.subr.mxu0 0.0
        %1476 = vmatpush1.msra.mxu0 0.0
        %1477 = vmatprep.subr.mxu0 0.0
        %1478 = vmatpush1.msra.mxu0 0.0
        %1479 = vmatprep.subr.mxu0 0.0
        %1480 = vmatpush1.msra.mxu0 0.0
        %1481 = vmatprep.subr.mxu0 0.0
        %1482 = vmatpush1.msra.mxu0 0.0
        %1483 = vmatprep.subr.mxu0 0.0
        %1484 = vmatpush1.msra.mxu0 0.0
        %1485 = vmatprep.subr.mxu0 0.0
        %1486 = vmatpush1.msra.mxu0 0.0
        %1487 = vmatprep.mubr.f32.mxu0 0.0
        %1488 = vmatmul.mubr.f32.gmra.mrb[0].mxu0 %v1418
        %v1489 = vpop.f32.mrb[0].mxu0
        %v1490 = vadd.f32 0.0, %v1489
        %v1491 = vpop.f32.mrb[0].mxu0
        %1492 = vmatprep.mubr.f32.mxu0 0.0
        %1493 = vmatmul.mubr.f32.gmra.mrb[0].mxu0 %v1421
        %v1494 = vpop.f32.mrb[0].mxu0
        %v1495 = vadd.f32 0.0, %v1494
        %v1496 = vpop.f32.mrb[0].mxu0
        %1497 = vdwg.mxu0
        %v1498 = vadd.f32 %v1167, %v1490
        %v1499 = vadd.f32 %v1172, %v1495
        %1500 = vrot.lane.b32.xlu0 %v492, 104
        %v1501 = vpop.permute.xlu0 %1500
        %1502 = vrot.lane.b32.xlu0 %v493, 104
        %v1503 = vpop.permute.xlu0 %1502
        %1504 = vrot.lane.b32.xlu0 %v484, 72
        %v1505 = vpop.permute.xlu0 %1504
        %1506 = vrot.lane.b32.xlu0 %v489, 72
        %v1507 = vpop.permute.xlu0 %1506
        %v1508 = vsel %vm530, %v1501, 0
        %v1510 = vsel %vm530, %v1503, 0
        %v1512 = vsel %vm530, %v1505, 0
        %v1514 = vsel %vm530, %v1507, 0
        %1516 = vmatprep.subr.mxu0 0.0
        %1517 = vmatpush1.xpose.msra.mxu0 %v1512
        %1518 = vmatprep.subr.mxu0 0.0
        %1519 = vmatpush1.xpose.msra.mxu0 %v1514
        %1520 = vmatprep.subr.mxu0 0.0
        %1521 = vmatpush1.xpose.msra.mxu0 0.0
        %1522 = vmatprep.subr.mxu0 0.0
        %1523 = vmatpush1.xpose.msra.mxu0 0.0
        %1524 = vmatprep.subr.mxu0 0.0
        %1525 = vmatpush1.xpose.msra.mxu0 0.0
        %1526 = vmatprep.subr.mxu0 0.0
        %1527 = vmatpush1.xpose.msra.mxu0 0.0
        %1528 = vmatprep.subr.mxu0 0.0
        %1529 = vmatpush1.xpose.msra.mxu0 0.0
        %1530 = vmatprep.subr.mxu0 0.0
        %1531 = vmatpush1.xpose.msra.mxu0 0.0
        %1532 = vmatprep.subr.mxu0 0.0
        %1533 = vmatpush1.xpose.msra.mxu0 0.0
        %1534 = vmatprep.subr.mxu0 0.0
        %1535 = vmatpush1.xpose.msra.mxu0 0.0
        %1536 = vmatprep.subr.mxu0 0.0
        %1537 = vmatpush1.xpose.msra.mxu0 0.0
        %1538 = vmatprep.subr.mxu0 0.0
        %1539 = vmatpush1.xpose.msra.mxu0 0.0
        %1540 = vmatprep.subr.mxu0 0.0
        %1541 = vmatpush1.xpose.msra.mxu0 0.0
        %1542 = vmatprep.subr.mxu0 0.0
        %1543 = vmatpush1.xpose.msra.mxu0 0.0
        %1544 = vmatprep.subr.mxu0 0.0
        %1545 = vmatpush1.xpose.msra.mxu0 0.0
        %1546 = vmatprep.subr.mxu0 0.0
        %1547 = vmatpush1.xpose.msra.mxu0 0.0
        %1548 = vmatprep.subr.mxu0 0.0
        %1549 = vmatpush1.xpose.msra.mxu0 0.0
        %1550 = vmatprep.subr.mxu0 0.0
        %1551 = vmatpush1.xpose.msra.mxu0 0.0
        %1552 = vmatprep.subr.mxu0 0.0
        %1553 = vmatpush1.xpose.msra.mxu0 0.0
        %1554 = vmatprep.subr.mxu0 0.0
        %1555 = vmatpush1.xpose.msra.mxu0 0.0
        %1556 = vmatprep.subr.mxu0 0.0
        %1557 = vmatpush1.xpose.msra.mxu0 0.0
        %1558 = vmatprep.subr.mxu0 0.0
        %1559 = vmatpush1.xpose.msra.mxu0 0.0
        %1560 = vmatprep.subr.mxu0 0.0
        %1561 = vmatpush1.xpose.msra.mxu0 0.0
        %1562 = vmatprep.subr.mxu0 0.0
        %1563 = vmatpush1.xpose.msra.mxu0 0.0
        %1564 = vmatprep.subr.mxu0 0.0
        %1565 = vmatpush1.xpose.msra.mxu0 0.0
        %1566 = vmatprep.subr.mxu0 0.0
        %1567 = vmatpush1.xpose.msra.mxu0 0.0
        %1568 = vmatprep.subr.mxu0 0.0
        %1569 = vmatpush1.xpose.msra.mxu0 0.0
        %1570 = vmatprep.subr.mxu0 0.0
        %1571 = vmatpush1.xpose.msra.mxu0 0.0
        %1572 = vmatprep.subr.mxu0 0.0
        %1573 = vmatpush1.xpose.msra.mxu0 0.0
        %1574 = vmatprep.subr.mxu0 0.0
        %1575 = vmatpush1.xpose.msra.mxu0 0.0
        %1576 = vmatprep.subr.mxu0 0.0
        %1577 = vmatpush1.xpose.msra.mxu0 0.0
        %1578 = vmatprep.subr.mxu0 0.0
        %1579 = vmatpush1.xpose.msra.mxu0 0.0
        %1580 = vmatprep.mubr.f32.mxu0 0.0
        %1581 = vmatmul.mubr.f32.gmra.mrb[0].mxu0 %v1508
        %v1582 = vpop.f32.mrb[0].mxu0
        %v1583 = vadd.f32 0.0, %v1582
        %v1584 = vpop.f32.mrb[0].mxu0
        %1585 = vmatprep.mubr.f32.mxu0 0.0
        %1586 = vmatmul.mubr.f32.gmra.mrb[0].mxu0 %v1510
        %v1587 = vpop.f32.mrb[0].mxu0
        %v1588 = vadd.f32 0.0, %v1587
        %v1589 = vpop.f32.mrb[0].mxu0
        %1590 = vdwg.mxu0
        %v1591 = vsel %vm616, %v1583, -inf
        %1592 = vmax.xlane.f32.xlu0 %v1591
        %v1593 = vpop.xlane.xlu0 %1592
        %v1594 = vsel %vm616, %v1588, -inf
        %1595 = vmax.xlane.f32.xlu0 %v1594
        %v1596 = vpop.xlane.xlu0 %1595
        %v1597 = vsub.f32 %v1583, %v1593
        %v1598 = vsub.f32 %v1588, %v1596
        %v1599 = vmul.f32 %v1597, 1.442695
        %v1600 = vpow.pop %v1599
        %v1601 = vmul.f32 %v1598, 1.442695
        %v1602 = vpow.pop %v1601
        %v1603 = vsel %vm616, %v1600, 0.0
        %1604 = vadd.xlane.f32.xlu0 %v1603
        %v1605 = vpop.xlane.xlu0 %1604
        %v1606 = vsel %vm616, %v1602, 0.0
        %1607 = vadd.xlane.f32.xlu0 %v1606
        %v1608 = vpop.xlane.xlu0 %1607
        %v1609 = vrcp.pop %v1605
        %v1610 = vmul.f32 %v1600, %v1609
        %v1611 = vrcp.pop %v1608
        %v1612 = vmul.f32 %v1602, %v1611
        %1613 = vset.pattern.permute.xlu0 99
        %1614 = vperm.xlu0 %1613, %v522
        %v1615 = vpop.permute.xlu0 %1614
        %1617 = vset.pattern.permute.xlu0 99
        %1618 = vperm.xlu0 %1617, %v523
        %v1619 = vpop.permute.xlu0 %1618
        %v1621 = vmul.f32 %v397, %v1615
        %v1622 = vmul.f32 %v398, %v1619
        %v1623 = vmul.f32 %v1621, 1.442695
        %v1624 = vpow.pop %v1623
        %v1625 = vmul.f32 %v1622, 1.442695
        %v1626 = vpow.pop %v1625
        %1627 = vset.pattern.permute.xlu0 99
        %1628 = vperm.xlu0 %1627, %v520
        %v1629 = vpop.permute.xlu0 %1628
        %1631 = vset.pattern.permute.xlu0 99
        %1632 = vperm.xlu0 %1631, %v521
        %v1633 = vpop.permute.xlu0 %1632
        %v1635 = vmul.f32 %v1629, %v1624
        %v1636 = vmul.f32 %v1633, %v1626
        %s1637 = scalar_lea.vmem %s366, 48 [#allocation4]
        %1638 = vst.msk [vmem:[%s1637] sm:$0xff] %vm616, %v1610
        %1639 = vst.msk [vmem:[%s1637 + $0x8] sm:$0xff] %vm616, %v1612
        %s1640 = scalar_lea.vmem %s373, 48 [#allocation6]
        %1641 = vst.msk [vmem:[%s1640] sm:$0xff] %vm616, %v1635
        %1642 = vst.msk [vmem:[%s1640 + $0x8] sm:$0xff] %vm616, %v1636
        %1643 = vset.pattern.permute.xlu0 99
        %1644 = vperm.xlu0 %1643, %v516
        %v1645 = vpop.permute.xlu0 %1644
        %1647 = vset.pattern.permute.xlu0 99
        %1648 = vperm.xlu0 %1647, %v517
        %v1649 = vpop.permute.xlu0 %1648
        %s1651 = scalar_lea.vmem %s380, 48 [#allocation7]
        %1652 = vst.msk [vmem:[%s1651] sm:$0xff] %vm616, %v1645
        %1653 = vst.msk [vmem:[%s1651 + $0x8] sm:$0xff] %vm616, %v1649
        %1654 = vrot.lane.b32.xlu0 %v484, 40
        %v1655 = vpop.permute.xlu0 %1654
        %1656 = vrot.lane.b32.xlu0 %v489, 40
        %v1657 = vpop.permute.xlu0 %1656
        %v1661 = vsel %vm616, %v1610, 0
        %v1664 = vsel %vm616, %v1612, 0
        %1666 = vmatprep.subr.mxu0 0.0
        %1667 = vmatpush1.msra.mxu0 %v1655
        %1668 = vmatprep.subr.mxu0 0.0
        %1669 = vmatpush1.msra.mxu0 %v1657
        %1670 = vmatprep.subr.mxu0 0.0
        %1671 = vmatpush1.msra.mxu0 0.0
        %1672 = vmatprep.subr.mxu0 0.0
        %1673 = vmatpush1.msra.mxu0 0.0
        %1674 = vmatprep.subr.mxu0 0.0
        %1675 = vmatpush1.msra.mxu0 0.0
        %1676 = vmatprep.subr.mxu0 0.0
        %1677 = vmatpush1.msra.mxu0 0.0
        %1678 = vmatprep.subr.mxu0 0.0
        %1679 = vmatpush1.msra.mxu0 0.0
        %1680 = vmatprep.subr.mxu0 0.0
        %1681 = vmatpush1.msra.mxu0 0.0
        %1682 = vmatprep.subr.mxu0 0.0
        %1683 = vmatpush1.msra.mxu0 0.0
        %1684 = vmatprep.subr.mxu0 0.0
        %1685 = vmatpush1.msra.mxu0 0.0
        %1686 = vmatprep.subr.mxu0 0.0
        %1687 = vmatpush1.msra.mxu0 0.0
        %1688 = vmatprep.subr.mxu0 0.0
        %1689 = vmatpush1.msra.mxu0 0.0
        %1690 = vmatprep.subr.mxu0 0.0
        %1691 = vmatpush1.msra.mxu0 0.0
        %1692 = vmatprep.subr.mxu0 0.0
        %1693 = vmatpush1.msra.mxu0 0.0
        %1694 = vmatprep.subr.mxu0 0.0
        %1695 = vmatpush1.msra.mxu0 0.0
        %1696 = vmatprep.subr.mxu0 0.0
        %1697 = vmatpush1.msra.mxu0 0.0
        %1698 = vmatprep.subr.mxu0 0.0
        %1699 = vmatpush1.msra.mxu0 0.0
        %1700 = vmatprep.subr.mxu0 0.0
        %1701 = vmatpush1.msra.mxu0 0.0
        %1702 = vmatprep.subr.mxu0 0.0
        %1703 = vmatpush1.msra.mxu0 0.0
        %1704 = vmatprep.subr.mxu0 0.0
        %1705 = vmatpush1.msra.mxu0 0.0
        %1706 = vmatprep.subr.mxu0 0.0
        %1707 = vmatpush1.msra.mxu0 0.0
        %1708 = vmatprep.subr.mxu0 0.0
        %1709 = vmatpush1.msra.mxu0 0.0
        %1710 = vmatprep.subr.mxu0 0.0
        %1711 = vmatpush1.msra.mxu0 0.0
        %1712 = vmatprep.subr.mxu0 0.0
        %1713 = vmatpush1.msra.mxu0 0.0
        %1714 = vmatprep.subr.mxu0 0.0
        %1715 = vmatpush1.msra.mxu0 0.0
        %1716 = vmatprep.subr.mxu0 0.0
        %1717 = vmatpush1.msra.mxu0 0.0
        %1718 = vmatprep.subr.mxu0 0.0
        %1719 = vmatpush1.msra.mxu0 0.0
        %1720 = vmatprep.subr.mxu0 0.0
        %1721 = vmatpush1.msra.mxu0 0.0
        %1722 = vmatprep.subr.mxu0 0.0
        %1723 = vmatpush1.msra.mxu0 0.0
        %1724 = vmatprep.subr.mxu0 0.0
        %1725 = vmatpush1.msra.mxu0 0.0
        %1726 = vmatprep.subr.mxu0 0.0
        %1727 = vmatpush1.msra.mxu0 0.0
        %1728 = vmatprep.subr.mxu0 0.0
        %1729 = vmatpush1.msra.mxu0 0.0
        %1730 = vmatprep.mubr.f32.mxu0 0.0
        %1731 = vmatmul.mubr.f32.gmra.mrb[0].mxu0 %v1661
        %v1732 = vpop.f32.mrb[0].mxu0
        %v1733 = vadd.f32 0.0, %v1732
        %v1734 = vpop.f32.mrb[0].mxu0
        %1735 = vmatprep.mubr.f32.mxu0 0.0
        %1736 = vmatmul.mubr.f32.gmra.mrb[0].mxu0 %v1664
        %v1737 = vpop.f32.mrb[0].mxu0
        %v1738 = vadd.f32 0.0, %v1737
        %v1739 = vpop.f32.mrb[0].mxu0
        %1740 = vdwg.mxu0
        %v1741 = vld [vmem:[%s2 + $0x18] sm:$0xff]
        %v1743 = vsel %vm530, %v1733, 0
        %v1746 = vsel %vm530, %v1738, 0
        %1748 = vmatprep.subr.mxu0 0.0
        %1749 = vmatpush1.msra.mxu0 %v1741
        %1750 = vmatprep.subr.mxu0 0.0
        %1751 = vmatpush1.msra.mxu0 0.0
        %1752 = vmatprep.subr.mxu0 0.0
        %1753 = vmatpush1.msra.mxu0 0.0
        %1754 = vmatprep.subr.mxu0 0.0
        %1755 = vmatpush1.msra.mxu0 0.0
        %1756 = vmatprep.subr.mxu0 0.0
        %1757 = vmatpush1.msra.mxu0 0.0
        %1758 = vmatprep.subr.mxu0 0.0
        %1759 = vmatpush1.msra.mxu0 0.0
        %1760 = vmatprep.subr.mxu0 0.0
        %1761 = vmatpush1.msra.mxu0 0.0
        %1762 = vmatprep.subr.mxu0 0.0
        %1763 = vmatpush1.msra.mxu0 0.0
        %1764 = vmatprep.subr.mxu0 0.0
        %1765 = vmatpush1.msra.mxu0 0.0
        %1766 = vmatprep.subr.mxu0 0.0
        %1767 = vmatpush1.msra.mxu0 0.0
        %1768 = vmatprep.subr.mxu0 0.0
        %1769 = vmatpush1.msra.mxu0 0.0
        %1770 = vmatprep.subr.mxu0 0.0
        %1771 = vmatpush1.msra.mxu0 0.0
        %1772 = vmatprep.subr.mxu0 0.0
        %1773 = vmatpush1.msra.mxu0 0.0
        %1774 = vmatprep.subr.mxu0 0.0
        %1775 = vmatpush1.msra.mxu0 0.0
        %1776 = vmatprep.subr.mxu0 0.0
        %1777 = vmatpush1.msra.mxu0 0.0
        %1778 = vmatprep.subr.mxu0 0.0
        %1779 = vmatpush1.msra.mxu0 0.0
        %1780 = vmatprep.subr.mxu0 0.0
        %1781 = vmatpush1.msra.mxu0 0.0
        %1782 = vmatprep.subr.mxu0 0.0
        %1783 = vmatpush1.msra.mxu0 0.0
        %1784 = vmatprep.subr.mxu0 0.0
        %1785 = vmatpush1.msra.mxu0 0.0
        %1786 = vmatprep.subr.mxu0 0.0
        %1787 = vmatpush1.msra.mxu0 0.0
        %1788 = vmatprep.subr.mxu0 0.0
        %1789 = vmatpush1.msra.mxu0 0.0
        %1790 = vmatprep.subr.mxu0 0.0
        %1791 = vmatpush1.msra.mxu0 0.0
        %1792 = vmatprep.subr.mxu0 0.0
        %1793 = vmatpush1.msra.mxu0 0.0
        %1794 = vmatprep.subr.mxu0 0.0
        %1795 = vmatpush1.msra.mxu0 0.0
        %1796 = vmatprep.subr.mxu0 0.0
        %1797 = vmatpush1.msra.mxu0 0.0
        %1798 = vmatprep.subr.mxu0 0.0
        %1799 = vmatpush1.msra.mxu0 0.0
        %1800 = vmatprep.subr.mxu0 0.0
        %1801 = vmatpush1.msra.mxu0 0.0
        %1802 = vmatprep.subr.mxu0 0.0
        %1803 = vmatpush1.msra.mxu0 0.0
        %1804 = vmatprep.subr.mxu0 0.0
        %1805 = vmatpush1.msra.mxu0 0.0
        %1806 = vmatprep.subr.mxu0 0.0
        %1807 = vmatpush1.msra.mxu0 0.0
        %1808 = vmatprep.subr.mxu0 0.0
        %1809 = vmatpush1.msra.mxu0 0.0
        %1810 = vmatprep.subr.mxu0 0.0
        %1811 = vmatpush1.msra.mxu0 0.0
        %1812 = vmatprep.mubr.f32.mxu0 0.0
        %1813 = vmatmul.mubr.f32.gmra.mrb[0].mxu0 %v1743
        %v1814 = vpop.f32.mrb[0].mxu0
        %v1815 = vadd.f32 0.0, %v1814
        %v1816 = vpop.f32.mrb[0].mxu0
        %1817 = vmatprep.mubr.f32.mxu0 0.0
        %1818 = vmatmul.mubr.f32.gmra.mrb[0].mxu0 %v1746
        %v1819 = vpop.f32.mrb[0].mxu0
        %v1820 = vadd.f32 0.0, %v1819
        %v1821 = vpop.f32.mrb[0].mxu0
        %1822 = vdwg.mxu0
        %v1823 = vadd.f32 %v1498, %v1815
        %v1824 = vadd.f32 %v1499, %v1820
        %v1825 = vlaneseq
        %v1826 = vshrl.u32 %v1825, 7
        %v1827 = vsub.s32 1, %v1826
        %v1828 = vrot.slane %v401, %v1827
        %v1829 = vadd.f32 %v1823, %v1828
        %v1830 = vadd.f32 %v1824, %v1828
        %v1831 = vadd.f32 %v399, %v1829
        %v1832 = vadd.f32 %v400, %v1830
        %v1833 = vsel %vm410, %v1831, 0.0
        %1834 = vadd.xlane.f32.xlu0 %v1833
        %v1835 = vpop.xlane.xlu0 %1834
        %v1836 = vsel %vm410, %v1832, 0.0
        %1837 = vadd.xlane.f32.xlu0 %v1836
        %v1838 = vpop.xlane.xlu0 %1837
        %v1839 = vrcp.pop 32.0
        %v1840 = vmul.f32 %v1835, %v1839
        %v1841 = vmul.f32 %v1838, %v1839
        %v1842 = vsub.f32 %v1831, %v1840
        %v1843 = vsub.f32 %v1832, %v1841
        %v1844 = vmul.f32 %v1842, %v1842
        %v1845 = vmul.f32 %v1843, %v1843
        %v1846 = vsel %vm410, %v1844, 0.0
        %1847 = vadd.xlane.f32.xlu0 %v1846
        %v1848 = vpop.xlane.xlu0 %1847
        %v1849 = vsel %vm410, %v1845, 0.0
        %1850 = vadd.xlane.f32.xlu0 %v1849
        %v1851 = vpop.xlane.xlu0 %1850
        %v1852 = vmul.f32 %v1848, %v1839
        %v1853 = vmul.f32 %v1851, %v1839
        %v1854 = vadd.f32 %v1852, 1e-05
        %v1855 = vadd.f32 %v1853, 1e-05
        %v1856 = vrsqrt.pop %v1854
        %v1857 = vmul.f32 %v1854, %v1856
        %vm1858 = vcmp.eq.f32.partialorder %v1854, inf
        %v1859 = vsel %vm1858, %v1854, %v1857
        %vm1860 = vcmp.eq.f32.partialorder %v1854, 0.0
        %v1861 = vand.u32 %v1854, 2147483648
        %v1862 = vsel %vm1860, %v1861, %v1859
        %v1863 = vrsqrt.pop %v1855
        %v1864 = vmul.f32 %v1855, %v1863
        %vm1865 = vcmp.eq.f32.partialorder %v1855, inf
        %v1866 = vsel %vm1865, %v1855, %v1864
        %vm1867 = vcmp.eq.f32.partialorder %v1855, 0.0
        %v1868 = vand.u32 %v1855, 2147483648
        %v1869 = vsel %vm1867, %v1868, %v1866
        %v1870 = vrcp.pop %v1862
        %v1871 = vmul.f32 %v1842, %v1870
        %v1872 = vrcp.pop %v1869
        %v1873 = vmul.f32 %v1843, %v1872
        %v1874 = vlaneseq
        %v1875 = vshrl.u32 %v1874, 7
        %v1876 = vsub.s32 4, %v1875
        %v1877 = vrot.slane %v401, %v1876
        %v1878 = vmul.f32 %v1871, %v1877
        %v1879 = vmul.f32 %v1873, %v1877
        %v1880 = vlaneseq
        %v1881 = vshrl.u32 %v1880, 7
        %v1882 = vsub.s32 5, %v1881
        %v1883 = vrot.slane %v401, %v1882
        %v1884 = vadd.f32 %v1878, %v1883
        %v1885 = vadd.f32 %v1879, %v1883
        %v1886 = vld [vmem:[%s3] sm:$0xff]
        %v1887 = vld [vmem:[%s3 + $0x8] sm:$0xff]
        %v1888 = vld [vmem:[%s3 + $0x10] sm:$0xff]
        %v1889 = vld [vmem:[%s3 + $0x18] sm:$0xff]
        %v1890 = vlaneseq
        %v1891 = vshrl.u32 %v1890, 7
        %v1892 = vsub.s32 2, %v1891
        %v1893 = vrot.slane %v401, %v1892
        %v1895 = vsel %vm410, %v1884, 0
        %v1898 = vsel %vm410, %v1885, 0
        %1900 = vmatprep.subr.mxu0 0.0
        %1901 = vmatpush1.msra.mxu0 %v1886
        %1902 = vmatprep.subr.mxu0 0.0
        %1903 = vmatpush1.msra.mxu0 %v1887
        %1904 = vmatprep.subr.mxu0 0.0
        %1905 = vmatpush1.msra.mxu0 %v1888
        %1906 = vmatprep.subr.mxu0 0.0
        %1907 = vmatpush1.msra.mxu0 %v1889
        %1908 = vmatprep.subr.mxu0 0.0
        %1909 = vmatpush1.msra.mxu0 0.0
        %1910 = vmatprep.subr.mxu0 0.0
        %1911 = vmatpush1.msra.mxu0 0.0
        %1912 = vmatprep.subr.mxu0 0.0
        %1913 = vmatpush1.msra.mxu0 0.0
        %1914 = vmatprep.subr.mxu0 0.0
        %1915 = vmatpush1.msra.mxu0 0.0
        %1916 = vmatprep.subr.mxu0 0.0
        %1917 = vmatpush1.msra.mxu0 0.0
        %1918 = vmatprep.subr.mxu0 0.0
        %1919 = vmatpush1.msra.mxu0 0.0
        %1920 = vmatprep.subr.mxu0 0.0
        %1921 = vmatpush1.msra.mxu0 0.0
        %1922 = vmatprep.subr.mxu0 0.0
        %1923 = vmatpush1.msra.mxu0 0.0
        %1924 = vmatprep.subr.mxu0 0.0
        %1925 = vmatpush1.msra.mxu0 0.0
        %1926 = vmatprep.subr.mxu0 0.0
        %1927 = vmatpush1.msra.mxu0 0.0
        %1928 = vmatprep.subr.mxu0 0.0
        %1929 = vmatpush1.msra.mxu0 0.0
        %1930 = vmatprep.subr.mxu0 0.0
        %1931 = vmatpush1.msra.mxu0 0.0
        %1932 = vmatprep.subr.mxu0 0.0
        %1933 = vmatpush1.msra.mxu0 0.0
        %1934 = vmatprep.subr.mxu0 0.0
        %1935 = vmatpush1.msra.mxu0 0.0
        %1936 = vmatprep.subr.mxu0 0.0
        %1937 = vmatpush1.msra.mxu0 0.0
        %1938 = vmatprep.subr.mxu0 0.0
        %1939 = vmatpush1.msra.mxu0 0.0
        %1940 = vmatprep.subr.mxu0 0.0
        %1941 = vmatpush1.msra.mxu0 0.0
        %1942 = vmatprep.subr.mxu0 0.0
        %1943 = vmatpush1.msra.mxu0 0.0
        %1944 = vmatprep.subr.mxu0 0.0
        %1945 = vmatpush1.msra.mxu0 0.0
        %1946 = vmatprep.subr.mxu0 0.0
        %1947 = vmatpush1.msra.mxu0 0.0
        %1948 = vmatprep.subr.mxu0 0.0
        %1949 = vmatpush1.msra.mxu0 0.0
        %1950 = vmatprep.subr.mxu0 0.0
        %1951 = vmatpush1.msra.mxu0 0.0
        %1952 = vmatprep.subr.mxu0 0.0
        %1953 = vmatpush1.msra.mxu0 0.0
        %1954 = vmatprep.subr.mxu0 0.0
        %1955 = vmatpush1.msra.mxu0 0.0
        %1956 = vmatprep.subr.mxu0 0.0
        %1957 = vmatpush1.msra.mxu0 0.0
        %1958 = vmatprep.subr.mxu0 0.0
        %1959 = vmatpush1.msra.mxu0 0.0
        %1960 = vmatprep.subr.mxu0 0.0
        %1961 = vmatpush1.msra.mxu0 0.0
        %1962 = vmatprep.subr.mxu0 0.0
        %1963 = vmatpush1.msra.mxu0 0.0
        %1964 = vmatprep.mubr.f32.mxu0 0.0
        %1965 = vmatmul.mubr.f32.gmra.mrb[0].mxu0 %v1895
        %v1966 = vpop.f32.mrb[0].mxu0
        %v1967 = vadd.f32 %v1893, %v1966
        %v1968 = vpop.f32.mrb[0].mxu0
        %1969 = vmatprep.mubr.f32.mxu0 0.0
        %1970 = vmatmul.mubr.f32.gmra.mrb[0].mxu0 %v1898
        %v1971 = vpop.f32.mrb[0].mxu0
        %v1972 = vadd.f32 %v1893, %v1971
        %v1973 = vpop.f32.mrb[0].mxu0
        %1974 = vdwg.mxu0
        %v1975 = vmax.f32 %v1967, 0.0
        %v1976 = vmax.f32 %v1972, 0.0
        %v1977 = vld [vmem:[%s4] sm:$0xff]
        %v1978 = vld [vmem:[%s4 + $0x8] sm:$0xff]
        %v1979 = vld [vmem:[%s4 + $0x10] sm:$0xff]
        %v1980 = vld [vmem:[%s4 + $0x18] sm:$0xff]
        %v1981 = vld [vmem:[%s4 + $0x20] sm:$0xff]
        %v1982 = vld [vmem:[%s4 + $0x28] sm:$0xff]
        %v1983 = vld [vmem:[%s4 + $0x30] sm:$0xff]
        %v1984 = vld [vmem:[%s4 + $0x38] sm:$0xff]
        %v1985 = vlaneseq
        %v1986 = vshrl.u32 %v1985, 7
        %v1987 = vsub.s32 3, %v1986
        %v1988 = vrot.slane %v401, %v1987
        %vm1989 = vcmask 523264
        %v1991 = vsel %vm1989, %v1975, 0
        %v1994 = vsel %vm1989, %v1976, 0
        %1996 = vmatprep.subr.mxu0 0.0
        %1997 = vmatpush1.msra.mxu0 %v1977
        %1998 = vmatprep.subr.mxu0 0.0
        %1999 = vmatpush1.msra.mxu0 %v1978
        %2000 = vmatprep.subr.mxu0 0.0
        %2001 = vmatpush1.msra.mxu0 %v1979
        %2002 = vmatprep.subr.mxu0 0.0
        %2003 = vmatpush1.msra.mxu0 %v1980
        %2004 = vmatprep.subr.mxu0 0.0
        %2005 = vmatpush1.msra.mxu0 %v1981
        %2006 = vmatprep.subr.mxu0 0.0
        %2007 = vmatpush1.msra.mxu0 %v1982
        %2008 = vmatprep.subr.mxu0 0.0
        %2009 = vmatpush1.msra.mxu0 %v1983
        %2010 = vmatprep.subr.mxu0 0.0
        %2011 = vmatpush1.msra.mxu0 %v1984
        %2012 = vmatprep.subr.mxu0 0.0
        %2013 = vmatpush1.msra.mxu0 0.0
        %2014 = vmatprep.subr.mxu0 0.0
        %2015 = vmatpush1.msra.mxu0 0.0
        %2016 = vmatprep.subr.mxu0 0.0
        %2017 = vmatpush1.msra.mxu0 0.0
        %2018 = vmatprep.subr.mxu0 0.0
        %2019 = vmatpush1.msra.mxu0 0.0
        %2020 = vmatprep.subr.mxu0 0.0
        %2021 = vmatpush1.msra.mxu0 0.0
        %2022 = vmatprep.subr.mxu0 0.0
        %2023 = vmatpush1.msra.mxu0 0.0
        %2024 = vmatprep.subr.mxu0 0.0
        %2025 = vmatpush1.msra.mxu0 0.0
        %2026 = vmatprep.subr.mxu0 0.0
        %2027 = vmatpush1.msra.mxu0 0.0
        %2028 = vmatprep.subr.mxu0 0.0
        %2029 = vmatpush1.msra.mxu0 0.0
        %2030 = vmatprep.subr.mxu0 0.0
        %2031 = vmatpush1.msra.mxu0 0.0
        %2032 = vmatprep.subr.mxu0 0.0
        %2033 = vmatpush1.msra.mxu0 0.0
        %2034 = vmatprep.subr.mxu0 0.0
        %2035 = vmatpush1.msra.mxu0 0.0
        %2036 = vmatprep.subr.mxu0 0.0
        %2037 = vmatpush1.msra.mxu0 0.0
        %2038 = vmatprep.subr.mxu0 0.0
        %2039 = vmatpush1.msra.mxu0 0.0
        %2040 = vmatprep.subr.mxu0 0.0
        %2041 = vmatpush1.msra.mxu0 0.0
        %2042 = vmatprep.subr.mxu0 0.0
        %2043 = vmatpush1.msra.mxu0 0.0
        %2044 = vmatprep.subr.mxu0 0.0
        %2045 = vmatpush1.msra.mxu0 0.0
        %2046 = vmatprep.subr.mxu0 0.0
        %2047 = vmatpush1.msra.mxu0 0.0
        %2048 = vmatprep.subr.mxu0 0.0
        %2049 = vmatpush1.msra.mxu0 0.0
        %2050 = vmatprep.subr.mxu0 0.0
        %2051 = vmatpush1.msra.mxu0 0.0
        %2052 = vmatprep.subr.mxu0 0.0
        %2053 = vmatpush1.msra.mxu0 0.0
        %2054 = vmatprep.subr.mxu0 0.0
        %2055 = vmatpush1.msra.mxu0 0.0
        %2056 = vmatprep.subr.mxu0 0.0
        %2057 = vmatpush1.msra.mxu0 0.0
        %2058 = vmatprep.subr.mxu0 0.0
        %2059 = vmatpush1.msra.mxu0 0.0
        %2060 = vmatprep.mubr.f32.mxu0 0.0
        %2061 = vmatmul.mubr.f32.gmra.mrb[0].mxu0 %v1991
        %v2062 = vpop.f32.mrb[0].mxu0
        %v2063 = vadd.f32 %v1988, %v2062
        %v2064 = vpop.f32.mrb[0].mxu0
        %2065 = vmatprep.mubr.f32.mxu0 0.0
        %2066 = vmatmul.mubr.f32.gmra.mrb[0].mxu0 %v1994
        %v2067 = vpop.f32.mrb[0].mxu0
        %v2068 = vadd.f32 %v1988, %v2067
        %v2069 = vpop.f32.mrb[0].mxu0
        %2070 = vdwg.mxu0
        %v2071 = vadd.f32 %v1884, %v2063
        %v2072 = vadd.f32 %v1885, %v2068
        %v2073 = vsel %vm410, %v2071, 0.0
        %2074 = vadd.xlane.f32.xlu0 %v2073
        %v2075 = vpop.xlane.xlu0 %2074
        %v2076 = vsel %vm410, %v2072, 0.0
        %2077 = vadd.xlane.f32.xlu0 %v2076
        %v2078 = vpop.xlane.xlu0 %2077
        %v2079 = vmul.f32 %v2075, %v1839
        %v2080 = vmul.f32 %v2078, %v1839
        %v2081 = vsub.f32 %v2071, %v2079
        %v2082 = vsub.f32 %v2072, %v2080
        %v2083 = vmul.f32 %v2081, %v2081
        %v2084 = vmul.f32 %v2082, %v2082
        %v2085 = vsel %vm410, %v2083, 0.0
        %2086 = vadd.xlane.f32.xlu0 %v2085
        %v2087 = vpop.xlane.xlu0 %2086
        %v2088 = vsel %vm410, %v2084, 0.0
        %2089 = vadd.xlane.f32.xlu0 %v2088
        %v2090 = vpop.xlane.xlu0 %2089
        %v2091 = vmul.f32 %v2087, %v1839
        %v2092 = vmul.f32 %v2090, %v1839
        %v2093 = vadd.f32 %v2091, 1e-05
        %v2094 = vadd.f32 %v2092, 1e-05
        %v2095 = vrsqrt.pop %v2093
        %v2096 = vmul.f32 %v2093, %v2095
        %vm2097 = vcmp.eq.f32.partialorder %v2093, inf
        %v2098 = vsel %vm2097, %v2093, %v2096
        %vm2099 = vcmp.eq.f32.partialorder %v2093, 0.0
        %v2100 = vand.u32 %v2093, 2147483648
        %v2101 = vsel %vm2099, %v2100, %v2098
        %v2102 = vrsqrt.pop %v2094
        %v2103 = vmul.f32 %v2094, %v2102
        %vm2104 = vcmp.eq.f32.partialorder %v2094, inf
        %v2105 = vsel %vm2104, %v2094, %v2103
        %vm2106 = vcmp.eq.f32.partialorder %v2094, 0.0
        %v2107 = vand.u32 %v2094, 2147483648
        %v2108 = vsel %vm2106, %v2107, %v2105
        %v2109 = vrcp.pop %v2101
        %v2110 = vmul.f32 %v2081, %v2109
        %v2111 = vrcp.pop %v2108
        %v2112 = vmul.f32 %v2082, %v2111
        %v2113 = vlaneseq
        %v2114 = vshrl.u32 %v2113, 7
        %v2115 = vsub.s32 6, %v2114
        %v2116 = vrot.slane %v401, %v2115
        %v2117 = vmul.f32 %v2110, %v2116
        %v2118 = vmul.f32 %v2112, %v2116
        %v2119 = vlaneseq
        %v2120 = vshrl.u32 %v2119, 7
        %v2121 = vsub.s32 7, %v2120
        %v2122 = vrot.slane %v401, %v2121
        %v2123 = vadd.f32 %v2117, %v2122
        %v2124 = vadd.f32 %v2118, %v2122
        %s2125 = scalar_lea.vmem %s5, 8
        %v2126 = vld [vmem:[%s2125] sm:$0xff]
        %s2127 = scalar_lea.vmem %s1, 32
        %v2128 = vld [vmem:[%s2127] sm:$0xff]
        %v2129 = vld [vmem:[%s2127 + $0x8] sm:$0xff]
        %v2130 = vld [vmem:[%s2127 + $0x10] sm:$0xff]
        %v2131 = vld [vmem:[%s2127 + $0x18] sm:$0xff]
        %v2132 = vlaneseq
        %v2133 = vshrl.u32 %v2132, 7
        %v2134 = vsub.s32 0, %v2133
        %v2135 = vrot.slane %v2126, %v2134
        %v2137 = vsel %vm410, %v2123, 0
        %v2140 = vsel %vm410, %v2124, 0
        %2142 = vmatprep.subr.mxu0 0.0
        %2143 = vmatpush1.msra.mxu0 %v2128
        %2144 = vmatprep.subr.mxu0 0.0
        %2145 = vmatpush1.msra.mxu0 %v2129
        %2146 = vmatprep.subr.mxu0 0.0
        %2147 = vmatpush1.msra.mxu0 %v2130
        %2148 = vmatprep.subr.mxu0 0.0
        %2149 = vmatpush1.msra.mxu0 %v2131
        %2150 = vmatprep.subr.mxu0 0.0
        %2151 = vmatpush1.msra.mxu0 0.0
        %2152 = vmatprep.subr.mxu0 0.0
        %2153 = vmatpush1.msra.mxu0 0.0
        %2154 = vmatprep.subr.mxu0 0.0
        %2155 = vmatpush1.msra.mxu0 0.0
        %2156 = vmatprep.subr.mxu0 0.0
        %2157 = vmatpush1.msra.mxu0 0.0
        %2158 = vmatprep.subr.mxu0 0.0
        %2159 = vmatpush1.msra.mxu0 0.0
        %2160 = vmatprep.subr.mxu0 0.0
        %2161 = vmatpush1.msra.mxu0 0.0
        %2162 = vmatprep.subr.mxu0 0.0
        %2163 = vmatpush1.msra.mxu0 0.0
        %2164 = vmatprep.subr.mxu0 0.0
        %2165 = vmatpush1.msra.mxu0 0.0
        %2166 = vmatprep.subr.mxu0 0.0
        %2167 = vmatpush1.msra.mxu0 0.0
        %2168 = vmatprep.subr.mxu0 0.0
        %2169 = vmatpush1.msra.mxu0 0.0
        %2170 = vmatprep.subr.mxu0 0.0
        %2171 = vmatpush1.msra.mxu0 0.0
        %2172 = vmatprep.subr.mxu0 0.0
        %2173 = vmatpush1.msra.mxu0 0.0
        %2174 = vmatprep.subr.mxu0 0.0
        %2175 = vmatpush1.msra.mxu0 0.0
        %2176 = vmatprep.subr.mxu0 0.0
        %2177 = vmatpush1.msra.mxu0 0.0
        %2178 = vmatprep.subr.mxu0 0.0
        %2179 = vmatpush1.msra.mxu0 0.0
        %2180 = vmatprep.subr.mxu0 0.0
        %2181 = vmatpush1.msra.mxu0 0.0
        %2182 = vmatprep.subr.mxu0 0.0
        %2183 = vmatpush1.msra.mxu0 0.0
        %2184 = vmatprep.subr.mxu0 0.0
        %2185 = vmatpush1.msra.mxu0 0.0
        %2186 = vmatprep.subr.mxu0 0.0
        %2187 = vmatpush1.msra.mxu0 0.0
        %2188 = vmatprep.subr.mxu0 0.0
        %2189 = vmatpush1.msra.mxu0 0.0
        %2190 = vmatprep.subr.mxu0 0.0
        %2191 = vmatpush1.msra.mxu0 0.0
        %2192 = vmatprep.subr.mxu0 0.0
        %2193 = vmatpush1.msra.mxu0 0.0
        %2194 = vmatprep.subr.mxu0 0.0
        %2195 = vmatpush1.msra.mxu0 0.0
        %2196 = vmatprep.subr.mxu0 0.0
        %2197 = vmatpush1.msra.mxu0 0.0
        %2198 = vmatprep.subr.mxu0 0.0
        %2199 = vmatpush1.msra.mxu0 0.0
        %2200 = vmatprep.subr.mxu0 0.0
        %2201 = vmatpush1.msra.mxu0 0.0
        %2202 = vmatprep.subr.mxu0 0.0
        %2203 = vmatpush1.msra.mxu0 0.0
        %2204 = vmatprep.subr.mxu0 0.0
        %2205 = vmatpush1.msra.mxu0 0.0
        %2206 = vmatprep.mubr.f32.mxu0 0.0
        %2207 = vmatmul.mubr.f32.gmra.mrb[0].mxu0 %v2137
        %v2208 = vpop.f32.mrb[0].mxu0
        %v2209 = vadd.f32 %v2135, %v2208
        %v2210 = vpop.f32.mrb[0].mxu0
        %2211 = vmatprep.mubr.f32.mxu0 0.0
        %2212 = vmatmul.mubr.f32.gmra.mrb[0].mxu0 %v2140
        %v2213 = vpop.f32.mrb[0].mxu0
        %v2214 = vadd.f32 %v2135, %v2213
        %v2215 = vpop.f32.mrb[0].mxu0
        %2216 = vdwg.mxu0
        %v2217 = vmul.f32 %v2209, 0.35355338
        %v2218 = vmul.f32 %v2214, 0.35355338
        %v2219 = vmul.f32 %v2209, 5.0
        %v2220 = vmul.f32 %v2214, 5.0
        %v2221 = vxor.u32 %v2219, 2147483648
        %v2222 = vxor.u32 %v2220, 2147483648
        %v2223 = vmul.f32 %v2221, 1.442695
        %v2224 = vpow.pop %v2223
        %v2225 = vmul.f32 %v2222, 1.442695
        %v2226 = vpow.pop %v2225
        %v2227 = vadd.f32 %v2224, 1.0
        %v2228 = vadd.f32 %v2226, 1.0
        %v2229 = vrcp.pop %v2227
        %v2230 = vmul.f32 1.0, %v2229
        %v2231 = vrcp.pop %v2228
        %v2232 = vmul.f32 1.0, %v2231
        %v2233 = vadd.f32 %v2230, 1e-05
        %v2234 = vadd.f32 %v2232, 1e-05
        %v2235 = vmul.f32 %v2233, 1.0986123
        %v2236 = vmul.f32 %v2234, 1.0986123
        %v2237 = vmul.f32 %v2235, 1.442695
        %v2238 = vpow.pop %v2237
        %v2239 = vmul.f32 %v2236, 1.442695
        %v2240 = vpow.pop %v2239
        %v2241 = vsub.f32 %v2238, 1.0
        %v2242 = vsub.f32 %v2240, 1.0
        %v2243 = vrcp.pop %v2241
        %v2244 = vrcp.pop %v2242
        %v2245 = vmul.f32 %v2243, 0.3989423
        %v2246 = vmul.f32 %v2244, 0.3989423
        %v2247 = vmul.f32 %v2243, %v2243
        %v2248 = vmul.f32 %v2244, %v2244
        %2251 = vrot.lane.b32.xlu0 %v2209, 96
        %v2252 = vpop.permute.xlu0 %2251
        %2253 = vrot.lane.b32.xlu0 %v2214, 96
        %v2254 = vpop.permute.xlu0 %2253
        %v2256 = vsel %vm530, %v2217, 0
        %v2259 = vsel %vm530, %v2218, 0
        %v2261 = vsel %vm530, %v2252, 0
        %v2263 = vsel %vm530, %v2254, 0
        %2265 = vmatprep.subr.mxu0 0.0
        %2266 = vmatpush1.xpose.msra.mxu0 %v2261
        %2267 = vmatprep.subr.mxu0 0.0
        %2268 = vmatpush1.xpose.msra.mxu0 %v2263
        %2269 = vmatprep.subr.mxu0 0.0
        %2270 = vmatpush1.xpose.msra.mxu0 0.0
        %2271 = vmatprep.subr.mxu0 0.0
        %2272 = vmatpush1.xpose.msra.mxu0 0.0
        %2273 = vmatprep.subr.mxu0 0.0
        %2274 = vmatpush1.xpose.msra.mxu0 0.0
        %2275 = vmatprep.subr.mxu0 0.0
        %2276 = vmatpush1.xpose.msra.mxu0 0.0
        %2277 = vmatprep.subr.mxu0 0.0
        %2278 = vmatpush1.xpose.msra.mxu0 0.0
        %2279 = vmatprep.subr.mxu0 0.0
        %2280 = vmatpush1.xpose.msra.mxu0 0.0
        %2281 = vmatprep.subr.mxu0 0.0
        %2282 = vmatpush1.xpose.msra.mxu0 0.0
        %2283 = vmatprep.subr.mxu0 0.0
        %2284 = vmatpush1.xpose.msra.mxu0 0.0
        %2285 = vmatprep.subr.mxu0 0.0
        %2286 = vmatpush1.xpose.msra.mxu0 0.0
        %2287 = vmatprep.subr.mxu0 0.0
        %2288 = vmatpush1.xpose.msra.mxu0 0.0
        %2289 = vmatprep.subr.mxu0 0.0
        %2290 = vmatpush1.xpose.msra.mxu0 0.0
        %2291 = vmatprep.subr.mxu0 0.0
        %2292 = vmatpush1.xpose.msra.mxu0 0.0
        %2293 = vmatprep.subr.mxu0 0.0
        %2294 = vmatpush1.xpose.msra.mxu0 0.0
        %2295 = vmatprep.subr.mxu0 0.0
        %2296 = vmatpush1.xpose.msra.mxu0 0.0
        %2297 = vmatprep.subr.mxu0 0.0
        %2298 = vmatpush1.xpose.msra.mxu0 0.0
        %2299 = vmatprep.subr.mxu0 0.0
        %2300 = vmatpush1.xpose.msra.mxu0 0.0
        %2301 = vmatprep.subr.mxu0 0.0
        %2302 = vmatpush1.xpose.msra.mxu0 0.0
        %2303 = vmatprep.subr.mxu0 0.0
        %2304 = vmatpush1.xpose.msra.mxu0 0.0
        %2305 = vmatprep.subr.mxu0 0.0
        %2306 = vmatpush1.xpose.msra.mxu0 0.0
        %2307 = vmatprep.subr.mxu0 0.0
        %2308 = vmatpush1.xpose.msra.mxu0 0.0
        %2309 = vmatprep.subr.mxu0 0.0
        %2310 = vmatpush1.xpose.msra.mxu0 0.0
        %2311 = vmatprep.subr.mxu0 0.0
        %2312 = vmatpush1.xpose.msra.mxu0 0.0
        %2313 = vmatprep.subr.mxu0 0.0
        %2314 = vmatpush1.xpose.msra.mxu0 0.0
        %2315 = vmatprep.subr.mxu0 0.0
        %2316 = vmatpush1.xpose.msra.mxu0 0.0
        %2317 = vmatprep.subr.mxu0 0.0
        %2318 = vmatpush1.xpose.msra.mxu0 0.0
        %2319 = vmatprep.subr.mxu0 0.0
        %2320 = vmatpush1.xpose.msra.mxu0 0.0
        %2321 = vmatprep.subr.mxu0 0.0
        %2322 = vmatpush1.xpose.msra.mxu0 0.0
        %2323 = vmatprep.subr.mxu0 0.0
        %2324 = vmatpush1.xpose.msra.mxu0 0.0
        %2325 = vmatprep.subr.mxu0 0.0
        %2326 = vmatpush1.xpose.msra.mxu0 0.0
        %2327 = vmatprep.subr.mxu0 0.0
        %2328 = vmatpush1.xpose.msra.mxu0 0.0
        %2329 = vmatprep.mubr.f32.mxu0 0.0
        %2330 = vmatmul.mubr.f32.gmra.mrb[0].mxu0 %v2256
        %v2331 = vpop.f32.mrb[0].mxu0
        %v2332 = vadd.f32 0.0, %v2331
        %v2333 = vpop.f32.mrb[0].mxu0
        %2334 = vmatprep.mubr.f32.mxu0 0.0
        %2335 = vmatmul.mubr.f32.gmra.mrb[0].mxu0 %v2259
        %v2336 = vpop.f32.mrb[0].mxu0
        %v2337 = vadd.f32 0.0, %v2336
        %v2338 = vpop.f32.mrb[0].mxu0
        %2339 = vdwg.mxu0
        %v2340 = vsel %vm616, %v2332, -inf
        %2341 = vmax.xlane.f32.xlu0 %v2340
        %v2342 = vpop.xlane.xlu0 %2341
        %v2343 = vsel %vm616, %v2337, -inf
        %2344 = vmax.xlane.f32.xlu0 %v2343
        %v2345 = vpop.xlane.xlu0 %2344
        %v2346 = vsub.f32 %v2332, %v2342
        %v2347 = vsub.f32 %v2337, %v2345
        %v2348 = vmul.f32 %v2346, 1.442695
        %v2349 = vpow.pop %v2348
        %v2350 = vmul.f32 %v2347, 1.442695
        %v2351 = vpow.pop %v2350
        %v2352 = vsel %vm616, %v2349, 0.0
        %2353 = vadd.xlane.f32.xlu0 %v2352
        %v2354 = vpop.xlane.xlu0 %2353
        %v2355 = vsel %vm616, %v2351, 0.0
        %2356 = vadd.xlane.f32.xlu0 %v2355
        %v2357 = vpop.xlane.xlu0 %2356
        %v2358 = vrcp.pop %v2354
        %v2359 = vmul.f32 %v2349, %v2358
        %v2360 = vrcp.pop %v2357
        %v2361 = vmul.f32 %v2351, %v2360
        %2363 = vset.pattern.permute.xlu0 96
        %2364 = vperm.xlu0 %2363, %v2247
        %v2365 = vpop.permute.xlu0 %2364
        %2368 = vset.pattern.permute.xlu0 96
        %2369 = vperm.xlu0 %2368, %v2248
        %v2370 = vpop.permute.xlu0 %2369
        %v2372 = vmul.f32 %v397, %v2365
        %v2373 = vmul.f32 %v398, %v2370
        %v2374 = vmul.f32 %v2372, 1.442695
        %v2375 = vpow.pop %v2374
        %v2376 = vmul.f32 %v2373, 1.442695
        %v2377 = vpow.pop %v2376
        %2379 = vset.pattern.permute.xlu0 96
        %2380 = vperm.xlu0 %2379, %v2245
        %v2381 = vpop.permute.xlu0 %2380
        %2384 = vset.pattern.permute.xlu0 96
        %2385 = vperm.xlu0 %2384, %v2246
        %v2386 = vpop.permute.xlu0 %2385
        %v2388 = vmul.f32 %v2381, %v2375
        %v2389 = vmul.f32 %v2386, %v2377
        %s2390 = scalar_lea.vmem %s366, 64 [#allocation4]
        %2391 = vst.msk [vmem:[%s2390] sm:$0xff] %vm616, %v2359
        %2392 = vst.msk [vmem:[%s2390 + $0x8] sm:$0xff] %vm616, %v2361
        %s2393 = scalar_lea.vmem %s373, 64 [#allocation6]
        %2394 = vst.msk [vmem:[%s2393] sm:$0xff] %vm616, %v2388
        %2395 = vst.msk [vmem:[%s2393 + $0x8] sm:$0xff] %vm616, %v2389
        %2397 = vset.pattern.permute.xlu0 96
        %2398 = vperm.xlu0 %2397, %v2241
        %v2399 = vpop.permute.xlu0 %2398
        %2402 = vset.pattern.permute.xlu0 96
        %2403 = vperm.xlu0 %2402, %v2242
        %v2404 = vpop.permute.xlu0 %2403
        %s2406 = scalar_lea.vmem %s380, 64 [#allocation7]
        %2407 = vst.msk [vmem:[%s2406] sm:$0xff] %vm616, %v2399
        %2408 = vst.msk [vmem:[%s2406 + $0x8] sm:$0xff] %vm616, %v2404
        %2409 = vrot.lane.b32.xlu0 %v2209, 64
        %v2410 = vpop.permute.xlu0 %2409
        %2411 = vrot.lane.b32.xlu0 %v2214, 64
        %v2412 = vpop.permute.xlu0 %2411
        %v2416 = vsel %vm616, %v2359, 0
        %v2419 = vsel %vm616, %v2361, 0
        %2421 = vmatprep.subr.mxu0 0.0
        %2422 = vmatpush1.msra.mxu0 %v2410
        %2423 = vmatprep.subr.mxu0 0.0
        %2424 = vmatpush1.msra.mxu0 %v2412
        %2425 = vmatprep.subr.mxu0 0.0
        %2426 = vmatpush1.msra.mxu0 0.0
        %2427 = vmatprep.subr.mxu0 0.0
        %2428 = vmatpush1.msra.mxu0 0.0
        %2429 = vmatprep.subr.mxu0 0.0
        %2430 = vmatpush1.msra.mxu0 0.0
        %2431 = vmatprep.subr.mxu0 0.0
        %2432 = vmatpush1.msra.mxu0 0.0
        %2433 = vmatprep.subr.mxu0 0.0
        %2434 = vmatpush1.msra.mxu0 0.0
        %2435 = vmatprep.subr.mxu0 0.0
        %2436 = vmatpush1.msra.mxu0 0.0
        %2437 = vmatprep.subr.mxu0 0.0
        %2438 = vmatpush1.msra.mxu0 0.0
        %2439 = vmatprep.subr.mxu0 0.0
        %2440 = vmatpush1.msra.mxu0 0.0
        %2441 = vmatprep.subr.mxu0 0.0
        %2442 = vmatpush1.msra.mxu0 0.0
        %2443 = vmatprep.subr.mxu0 0.0
        %2444 = vmatpush1.msra.mxu0 0.0
        %2445 = vmatprep.subr.mxu0 0.0
        %2446 = vmatpush1.msra.mxu0 0.0
        %2447 = vmatprep.subr.mxu0 0.0
        %2448 = vmatpush1.msra.mxu0 0.0
        %2449 = vmatprep.subr.mxu0 0.0
        %2450 = vmatpush1.msra.mxu0 0.0
        %2451 = vmatprep.subr.mxu0 0.0
        %2452 = vmatpush1.msra.mxu0 0.0
        %2453 = vmatprep.subr.mxu0 0.0
        %2454 = vmatpush1.msra.mxu0 0.0
        %2455 = vmatprep.subr.mxu0 0.0
        %2456 = vmatpush1.msra.mxu0 0.0
        %2457 = vmatprep.subr.mxu0 0.0
        %2458 = vmatpush1.msra.mxu0 0.0
        %2459 = vmatprep.subr.mxu0 0.0
        %2460 = vmatpush1.msra.mxu0 0.0
        %2461 = vmatprep.subr.mxu0 0.0
        %2462 = vmatpush1.msra.mxu0 0.0
        %2463 = vmatprep.subr.mxu0 0.0
        %2464 = vmatpush1.msra.mxu0 0.0
        %2465 = vmatprep.subr.mxu0 0.0
        %2466 = vmatpush1.msra.mxu0 0.0
        %2467 = vmatprep.subr.mxu0 0.0
        %2468 = vmatpush1.msra.mxu0 0.0
        %2469 = vmatprep.subr.mxu0 0.0
        %2470 = vmatpush1.msra.mxu0 0.0
        %2471 = vmatprep.subr.mxu0 0.0
        %2472 = vmatpush1.msra.mxu0 0.0
        %2473 = vmatprep.subr.mxu0 0.0
        %2474 = vmatpush1.msra.mxu0 0.0
        %2475 = vmatprep.subr.mxu0 0.0
        %2476 = vmatpush1.msra.mxu0 0.0
        %2477 = vmatprep.subr.mxu0 0.0
        %2478 = vmatpush1.msra.mxu0 0.0
        %2479 = vmatprep.subr.mxu0 0.0
        %2480 = vmatpush1.msra.mxu0 0.0
        %2481 = vmatprep.subr.mxu0 0.0
        %2482 = vmatpush1.msra.mxu0 0.0
        %2483 = vmatprep.subr.mxu0 0.0
        %2484 = vmatpush1.msra.mxu0 0.0
        %2485 = vmatprep.mubr.f32.mxu0 0.0
        %2486 = vmatmul.mubr.f32.gmra.mrb[0].mxu0 %v2416
        %v2487 = vpop.f32.mrb[0].mxu0
        %v2488 = vadd.f32 0.0, %v2487
        %v2489 = vpop.f32.mrb[0].mxu0
        %2490 = vmatprep.mubr.f32.mxu0 0.0
        %2491 = vmatmul.mubr.f32.gmra.mrb[0].mxu0 %v2419
        %v2492 = vpop.f32.mrb[0].mxu0
        %v2493 = vadd.f32 0.0, %v2492
        %v2494 = vpop.f32.mrb[0].mxu0
        %2495 = vdwg.mxu0
        %s2496 = scalar_lea.vmem %s2, 32
        %v2497 = vld [vmem:[%s2496] sm:$0xff]
        %2498 = vrot.lane.b32.xlu0 %v2217, 120
        %v2499 = vpop.permute.xlu0 %2498
        %2500 = vrot.lane.b32.xlu0 %v2218, 120
        %v2501 = vpop.permute.xlu0 %2500
        %2502 = vrot.lane.b32.xlu0 %v2209, 88
        %v2503 = vpop.permute.xlu0 %2502
        %2504 = vrot.lane.b32.xlu0 %v2214, 88
        %v2505 = vpop.permute.xlu0 %2504
        %v2506 = vsel %vm530, %v2499, 0
        %v2508 = vsel %vm530, %v2501, 0
        %v2510 = vsel %vm530, %v2503, 0
        %v2512 = vsel %vm530, %v2505, 0
        %2514 = vmatprep.subr.mxu0 0.0
        %2515 = vmatpush1.xpose.msra.mxu0 %v2510
        %2516 = vmatprep.subr.mxu0 0.0
        %2517 = vmatpush1.xpose.msra.mxu0 %v2512
        %2518 = vmatprep.subr.mxu0 0.0
        %2519 = vmatpush1.xpose.msra.mxu0 0.0
        %2520 = vmatprep.subr.mxu0 0.0
        %2521 = vmatpush1.xpose.msra.mxu0 0.0
        %2522 = vmatprep.subr.mxu0 0.0
        %2523 = vmatpush1.xpose.msra.mxu0 0.0
        %2524 = vmatprep.subr.mxu0 0.0
        %2525 = vmatpush1.xpose.msra.mxu0 0.0
        %2526 = vmatprep.subr.mxu0 0.0
        %2527 = vmatpush1.xpose.msra.mxu0 0.0
        %2528 = vmatprep.subr.mxu0 0.0
        %2529 = vmatpush1.xpose.msra.mxu0 0.0
        %2530 = vmatprep.subr.mxu0 0.0
        %2531 = vmatpush1.xpose.msra.mxu0 0.0
        %2532 = vmatprep.subr.mxu0 0.0
        %2533 = vmatpush1.xpose.msra.mxu0 0.0
        %2534 = vmatprep.subr.mxu0 0.0
        %2535 = vmatpush1.xpose.msra.mxu0 0.0
        %2536 = vmatprep.subr.mxu0 0.0
        %2537 = vmatpush1.xpose.msra.mxu0 0.0
        %2538 = vmatprep.subr.mxu0 0.0
        %2539 = vmatpush1.xpose.msra.mxu0 0.0
        %2540 = vmatprep.subr.mxu0 0.0
        %2541 = vmatpush1.xpose.msra.mxu0 0.0
        %2542 = vmatprep.subr.mxu0 0.0
        %2543 = vmatpush1.xpose.msra.mxu0 0.0
        %2544 = vmatprep.subr.mxu0 0.0
        %2545 = vmatpush1.xpose.msra.mxu0 0.0
        %2546 = vmatprep.subr.mxu0 0.0
        %2547 = vmatpush1.xpose.msra.mxu0 0.0
        %2548 = vmatprep.subr.mxu0 0.0
        %2549 = vmatpush1.xpose.msra.mxu0 0.0
        %2550 = vmatprep.subr.mxu0 0.0
        %2551 = vmatpush1.xpose.msra.mxu0 0.0
        %2552 = vmatprep.subr.mxu0 0.0
        %2553 = vmatpush1.xpose.msra.mxu0 0.0
        %2554 = vmatprep.subr.mxu0 0.0
        %2555 = vmatpush1.xpose.msra.mxu0 0.0
        %2556 = vmatprep.subr.mxu0 0.0
        %2557 = vmatpush1.xpose.msra.mxu0 0.0
        %2558 = vmatprep.subr.mxu0 0.0
        %2559 = vmatpush1.xpose.msra.mxu0 0.0
        %2560 = vmatprep.subr.mxu0 0.0
        %2561 = vmatpush1.xpose.msra.mxu0 0.0
        %2562 = vmatprep.subr.mxu0 0.0
        %2563 = vmatpush1.xpose.msra.mxu0 0.0
        %2564 = vmatprep.subr.mxu0 0.0
        %2565 = vmatpush1.xpose.msra.mxu0 0.0
        %2566 = vmatprep.subr.mxu0 0.0
        %2567 = vmatpush1.xpose.msra.mxu0 0.0
        %2568 = vmatprep.subr.mxu0 0.0
        %2569 = vmatpush1.xpose.msra.mxu0 0.0
        %2570 = vmatprep.subr.mxu0 0.0
        %2571 = vmatpush1.xpose.msra.mxu0 0.0
        %2572 = vmatprep.subr.mxu0 0.0
        %2573 = vmatpush1.xpose.msra.mxu0 0.0
        %2574 = vmatprep.subr.mxu0 0.0
        %2575 = vmatpush1.xpose.msra.mxu0 0.0
        %2576 = vmatprep.subr.mxu0 0.0
        %2577 = vmatpush1.xpose.msra.mxu0 0.0
        %2578 = vmatprep.mubr.f32.mxu0 0.0
        %2579 = vmatmul.mubr.f32.gmra.mrb[0].mxu0 %v2506
        %v2580 = vpop.f32.mrb[0].mxu0
        %v2581 = vadd.f32 0.0, %v2580
        %v2582 = vpop.f32.mrb[0].mxu0
        %2583 = vmatprep.mubr.f32.mxu0 0.0
        %2584 = vmatmul.mubr.f32.gmra.mrb[0].mxu0 %v2508
        %v2585 = vpop.f32.mrb[0].mxu0
        %v2586 = vadd.f32 0.0, %v2585
        %v2587 = vpop.f32.mrb[0].mxu0
        %2588 = vdwg.mxu0
        %v2589 = vsel %vm616, %v2581, -inf
        %2590 = vmax.xlane.f32.xlu0 %v2589
        %v2591 = vpop.xlane.xlu0 %2590
        %v2592 = vsel %vm616, %v2586, -inf
        %2593 = vmax.xlane.f32.xlu0 %v2592
        %v2594 = vpop.xlane.xlu0 %2593
        %v2595 = vsub.f32 %v2581, %v2591
        %v2596 = vsub.f32 %v2586, %v2594
        %v2597 = vmul.f32 %v2595, 1.442695
        %v2598 = vpow.pop %v2597
        %v2599 = vmul.f32 %v2596, 1.442695
        %v2600 = vpow.pop %v2599
        %v2601 = vsel %vm616, %v2598, 0.0
        %2602 = vadd.xlane.f32.xlu0 %v2601
        %v2603 = vpop.xlane.xlu0 %2602
        %v2604 = vsel %vm616, %v2600, 0.0
        %2605 = vadd.xlane.f32.xlu0 %v2604
        %v2606 = vpop.xlane.xlu0 %2605
        %v2607 = vrcp.pop %v2603
        %v2608 = vmul.f32 %v2598, %v2607
        %v2609 = vrcp.pop %v2606
        %v2610 = vmul.f32 %v2600, %v2609
        %2611 = vset.pattern.permute.xlu0 97
        %2612 = vperm.xlu0 %2611, %v2247
        %v2613 = vpop.permute.xlu0 %2612
        %2615 = vset.pattern.permute.xlu0 97
        %2616 = vperm.xlu0 %2615, %v2248
        %v2617 = vpop.permute.xlu0 %2616
        %v2619 = vmul.f32 %v397, %v2613
        %v2620 = vmul.f32 %v398, %v2617
        %v2621 = vmul.f32 %v2619, 1.442695
        %v2622 = vpow.pop %v2621
        %v2623 = vmul.f32 %v2620, 1.442695
        %v2624 = vpow.pop %v2623
        %2625 = vset.pattern.permute.xlu0 97
        %2626 = vperm.xlu0 %2625, %v2245
        %v2627 = vpop.permute.xlu0 %2626
        %2629 = vset.pattern.permute.xlu0 97
        %2630 = vperm.xlu0 %2629, %v2246
        %v2631 = vpop.permute.xlu0 %2630
        %v2633 = vmul.f32 %v2627, %v2622
        %v2634 = vmul.f32 %v2631, %v2624
        %s2635 = scalar_lea.vmem %s366, 80 [#allocation4]
        %2636 = vst.msk [vmem:[%s2635] sm:$0xff] %vm616, %v2608
        %2637 = vst.msk [vmem:[%s2635 + $0x8] sm:$0xff] %vm616, %v2610
        %s2638 = scalar_lea.vmem %s373, 80 [#allocation6]
        %2639 = vst.msk [vmem:[%s2638] sm:$0xff] %vm616, %v2633
        %2640 = vst.msk [vmem:[%s2638 + $0x8] sm:$0xff] %vm616, %v2634
        %2641 = vset.pattern.permute.xlu0 97
        %2642 = vperm.xlu0 %2641, %v2241
        %v2643 = vpop.permute.xlu0 %2642
        %2645 = vset.pattern.permute.xlu0 97
        %2646 = vperm.xlu0 %2645, %v2242
        %v2647 = vpop.permute.xlu0 %2646
        %s2649 = scalar_lea.vmem %s380, 80 [#allocation7]
        %2650 = vst.msk [vmem:[%s2649] sm:$0xff] %vm616, %v2643
        %2651 = vst.msk [vmem:[%s2649 + $0x8] sm:$0xff] %vm616, %v2647
        %2652 = vrot.lane.b32.xlu0 %v2209, 56
        %v2653 = vpop.permute.xlu0 %2652
        %2654 = vrot.lane.b32.xlu0 %v2214, 56
        %v2655 = vpop.permute.xlu0 %2654
        %v2659 = vsel %vm616, %v2608, 0
        %v2662 = vsel %vm616, %v2610, 0
        %2664 = vmatprep.subr.mxu0 0.0
        %2665 = vmatpush1.msra.mxu0 %v2653
        %2666 = vmatprep.subr.mxu0 0.0
        %2667 = vmatpush1.msra.mxu0 %v2655
        %2668 = vmatprep.subr.mxu0 0.0
        %2669 = vmatpush1.msra.mxu0 0.0
        %2670 = vmatprep.subr.mxu0 0.0
        %2671 = vmatpush1.msra.mxu0 0.0
        %2672 = vmatprep.subr.mxu0 0.0
        %2673 = vmatpush1.msra.mxu0 0.0
        %2674 = vmatprep.subr.mxu0 0.0
        %2675 = vmatpush1.msra.mxu0 0.0
        %2676 = vmatprep.subr.mxu0 0.0
        %2677 = vmatpush1.msra.mxu0 0.0
        %2678 = vmatprep.subr.mxu0 0.0
        %2679 = vmatpush1.msra.mxu0 0.0
        %2680 = vmatprep.subr.mxu0 0.0
        %2681 = vmatpush1.msra.mxu0 0.0
        %2682 = vmatprep.subr.mxu0 0.0
        %2683 = vmatpush1.msra.mxu0 0.0
        %2684 = vmatprep.subr.mxu0 0.0
        %2685 = vmatpush1.msra.mxu0 0.0
        %2686 = vmatprep.subr.mxu0 0.0
        %2687 = vmatpush1.msra.mxu0 0.0
        %2688 = vmatprep.subr.mxu0 0.0
        %2689 = vmatpush1.msra.mxu0 0.0
        %2690 = vmatprep.subr.mxu0 0.0
        %2691 = vmatpush1.msra.mxu0 0.0
        %2692 = vmatprep.subr.mxu0 0.0
        %2693 = vmatpush1.msra.mxu0 0.0
        %2694 = vmatprep.subr.mxu0 0.0
        %2695 = vmatpush1.msra.mxu0 0.0
        %2696 = vmatprep.subr.mxu0 0.0
        %2697 = vmatpush1.msra.mxu0 0.0
        %2698 = vmatprep.subr.mxu0 0.0
        %2699 = vmatpush1.msra.mxu0 0.0
        %2700 = vmatprep.subr.mxu0 0.0
        %2701 = vmatpush1.msra.mxu0 0.0
        %2702 = vmatprep.subr.mxu0 0.0
        %2703 = vmatpush1.msra.mxu0 0.0
        %2704 = vmatprep.subr.mxu0 0.0
        %2705 = vmatpush1.msra.mxu0 0.0
        %2706 = vmatprep.subr.mxu0 0.0
        %2707 = vmatpush1.msra.mxu0 0.0
        %2708 = vmatprep.subr.mxu0 0.0
        %2709 = vmatpush1.msra.mxu0 0.0
        %2710 = vmatprep.subr.mxu0 0.0
        %2711 = vmatpush1.msra.mxu0 0.0
        %2712 = vmatprep.subr.mxu0 0.0
        %2713 = vmatpush1.msra.mxu0 0.0
        %2714 = vmatprep.subr.mxu0 0.0
        %2715 = vmatpush1.msra.mxu0 0.0
        %2716 = vmatprep.subr.mxu0 0.0
        %2717 = vmatpush1.msra.mxu0 0.0
        %2718 = vmatprep.subr.mxu0 0.0
        %2719 = vmatpush1.msra.mxu0 0.0
        %2720 = vmatprep.subr.mxu0 0.0
        %2721 = vmatpush1.msra.mxu0 0.0
        %2722 = vmatprep.subr.mxu0 0.0
        %2723 = vmatpush1.msra.mxu0 0.0
        %2724 = vmatprep.subr.mxu0 0.0
        %2725 = vmatpush1.msra.mxu0 0.0
        %2726 = vmatprep.subr.mxu0 0.0
        %2727 = vmatpush1.msra.mxu0 0.0
        %2728 = vmatprep.mubr.f32.mxu0 0.0
        %2729 = vmatmul.mubr.f32.gmra.mrb[0].mxu0 %v2659
        %v2730 = vpop.f32.mrb[0].mxu0
        %v2731 = vadd.f32 0.0, %v2730
        %v2732 = vpop.f32.mrb[0].mxu0
        %2733 = vmatprep.mubr.f32.mxu0 0.0
        %2734 = vmatmul.mubr.f32.gmra.mrb[0].mxu0 %v2662
        %v2735 = vpop.f32.mrb[0].mxu0
        %v2736 = vadd.f32 0.0, %v2735
        %v2737 = vpop.f32.mrb[0].mxu0
        %2738 = vdwg.mxu0
        %v2739 = vld [vmem:[%s2496 + $0x8] sm:$0xff]
        %v2741 = vsel %vm530, %v2731, 0
        %v2744 = vsel %vm530, %v2736, 0
        %2746 = vmatprep.subr.mxu0 0.0
        %2747 = vmatpush1.msra.mxu0 %v2739
        %2748 = vmatprep.subr.mxu0 0.0
        %2749 = vmatpush1.msra.mxu0 0.0
        %2750 = vmatprep.subr.mxu0 0.0
        %2751 = vmatpush1.msra.mxu0 0.0
        %2752 = vmatprep.subr.mxu0 0.0
        %2753 = vmatpush1.msra.mxu0 0.0
        %2754 = vmatprep.subr.mxu0 0.0
        %2755 = vmatpush1.msra.mxu0 0.0
        %2756 = vmatprep.subr.mxu0 0.0
        %2757 = vmatpush1.msra.mxu0 0.0
        %2758 = vmatprep.subr.mxu0 0.0
        %2759 = vmatpush1.msra.mxu0 0.0
        %2760 = vmatprep.subr.mxu0 0.0
        %2761 = vmatpush1.msra.mxu0 0.0
        %2762 = vmatprep.subr.mxu0 0.0
        %2763 = vmatpush1.msra.mxu0 0.0
        %2764 = vmatprep.subr.mxu0 0.0
        %2765 = vmatpush1.msra.mxu0 0.0
        %2766 = vmatprep.subr.mxu0 0.0
        %2767 = vmatpush1.msra.mxu0 0.0
        %2768 = vmatprep.subr.mxu0 0.0
        %2769 = vmatpush1.msra.mxu0 0.0
        %2770 = vmatprep.subr.mxu0 0.0
        %2771 = vmatpush1.msra.mxu0 0.0
        %2772 = vmatprep.subr.mxu0 0.0
        %2773 = vmatpush1.msra.mxu0 0.0
        %2774 = vmatprep.subr.mxu0 0.0
        %2775 = vmatpush1.msra.mxu0 0.0
        %2776 = vmatprep.subr.mxu0 0.0
        %2777 = vmatpush1.msra.mxu0 0.0
        %2778 = vmatprep.subr.mxu0 0.0
        %2779 = vmatpush1.msra.mxu0 0.0
        %2780 = vmatprep.subr.mxu0 0.0
        %2781 = vmatpush1.msra.mxu0 0.0
        %2782 = vmatprep.subr.mxu0 0.0
        %2783 = vmatpush1.msra.mxu0 0.0
        %2784 = vmatprep.subr.mxu0 0.0
        %2785 = vmatpush1.msra.mxu0 0.0
        %2786 = vmatprep.subr.mxu0 0.0
        %2787 = vmatpush1.msra.mxu0 0.0
        %2788 = vmatprep.subr.mxu0 0.0
        %2789 = vmatpush1.msra.mxu0 0.0
        %2790 = vmatprep.subr.mxu0 0.0
        %2791 = vmatpush1.msra.mxu0 0.0
        %2792 = vmatprep.subr.mxu0 0.0
        %2793 = vmatpush1.msra.mxu0 0.0
        %2794 = vmatprep.subr.mxu0 0.0
        %2795 = vmatpush1.msra.mxu0 0.0
        %2796 = vmatprep.subr.mxu0 0.0
        %2797 = vmatpush1.msra.mxu0 0.0
        %2798 = vmatprep.subr.mxu0 0.0
        %2799 = vmatpush1.msra.mxu0 0.0
        %2800 = vmatprep.subr.mxu0 0.0
        %2801 = vmatpush1.msra.mxu0 0.0
        %2802 = vmatprep.subr.mxu0 0.0
        %2803 = vmatpush1.msra.mxu0 0.0
        %2804 = vmatprep.subr.mxu0 0.0
        %2805 = vmatpush1.msra.mxu0 0.0
        %2806 = vmatprep.subr.mxu0 0.0
        %2807 = vmatpush1.msra.mxu0 0.0
        %2808 = vmatprep.subr.mxu0 0.0
        %2809 = vmatpush1.msra.mxu0 0.0
        %2810 = vmatprep.mubr.f32.mxu0 0.0
        %2811 = vmatmul.mubr.f32.gmra.mrb[0].mxu0 %v2741
        %v2812 = vpop.f32.mrb[0].mxu0
        %v2813 = vadd.f32 0.0, %v2812
        %v2814 = vpop.f32.mrb[0].mxu0
        %2815 = vmatprep.mubr.f32.mxu0 0.0
        %2816 = vmatmul.mubr.f32.gmra.mrb[0].mxu0 %v2744
        %v2817 = vpop.f32.mrb[0].mxu0
        %v2818 = vadd.f32 0.0, %v2817
        %v2819 = vpop.f32.mrb[0].mxu0
        %2820 = vdwg.mxu0
        %v2822 = vsel %vm530, %v2488, 0
        %v2825 = vsel %vm530, %v2493, 0
        %2827 = vmatprep.subr.mxu0 0.0
        %2828 = vmatpush1.msra.mxu0 %v2497
        %2829 = vmatprep.subr.mxu0 0.0
        %2830 = vmatpush1.msra.mxu0 0.0
        %2831 = vmatprep.subr.mxu0 0.0
        %2832 = vmatpush1.msra.mxu0 0.0
        %2833 = vmatprep.subr.mxu0 0.0
        %2834 = vmatpush1.msra.mxu0 0.0
        %2835 = vmatprep.subr.mxu0 0.0
        %2836 = vmatpush1.msra.mxu0 0.0
        %2837 = vmatprep.subr.mxu0 0.0
        %2838 = vmatpush1.msra.mxu0 0.0
        %2839 = vmatprep.subr.mxu0 0.0
        %2840 = vmatpush1.msra.mxu0 0.0
        %2841 = vmatprep.subr.mxu0 0.0
        %2842 = vmatpush1.msra.mxu0 0.0
        %2843 = vmatprep.subr.mxu0 0.0
        %2844 = vmatpush1.msra.mxu0 0.0
        %2845 = vmatprep.subr.mxu0 0.0
        %2846 = vmatpush1.msra.mxu0 0.0
        %2847 = vmatprep.subr.mxu0 0.0
        %2848 = vmatpush1.msra.mxu0 0.0
        %2849 = vmatprep.subr.mxu0 0.0
        %2850 = vmatpush1.msra.mxu0 0.0
        %2851 = vmatprep.subr.mxu0 0.0
        %2852 = vmatpush1.msra.mxu0 0.0
        %2853 = vmatprep.subr.mxu0 0.0
        %2854 = vmatpush1.msra.mxu0 0.0
        %2855 = vmatprep.subr.mxu0 0.0
        %2856 = vmatpush1.msra.mxu0 0.0
        %2857 = vmatprep.subr.mxu0 0.0
        %2858 = vmatpush1.msra.mxu0 0.0
        %2859 = vmatprep.subr.mxu0 0.0
        %2860 = vmatpush1.msra.mxu0 0.0
        %2861 = vmatprep.subr.mxu0 0.0
        %2862 = vmatpush1.msra.mxu0 0.0
        %2863 = vmatprep.subr.mxu0 0.0
        %2864 = vmatpush1.msra.mxu0 0.0
        %2865 = vmatprep.subr.mxu0 0.0
        %2866 = vmatpush1.msra.mxu0 0.0
        %2867 = vmatprep.subr.mxu0 0.0
        %2868 = vmatpush1.msra.mxu0 0.0
        %2869 = vmatprep.subr.mxu0 0.0
        %2870 = vmatpush1.msra.mxu0 0.0
        %2871 = vmatprep.subr.mxu0 0.0
        %2872 = vmatpush1.msra.mxu0 0.0
        %2873 = vmatprep.subr.mxu0 0.0
        %2874 = vmatpush1.msra.mxu0 0.0
        %2875 = vmatprep.subr.mxu0 0.0
        %2876 = vmatpush1.msra.mxu0 0.0
        %2877 = vmatprep.subr.mxu0 0.0
        %2878 = vmatpush1.msra.mxu0 0.0
        %2879 = vmatprep.subr.mxu0 0.0
        %2880 = vmatpush1.msra.mxu0 0.0
        %2881 = vmatprep.subr.mxu0 0.0
        %2882 = vmatpush1.msra.mxu0 0.0
        %2883 = vmatprep.subr.mxu0 0.0
        %2884 = vmatpush1.msra.mxu0 0.0
        %2885 = vmatprep.subr.mxu0 0.0
        %2886 = vmatpush1.msra.mxu0 0.0
        %2887 = vmatprep.subr.mxu0 0.0
        %2888 = vmatpush1.msra.mxu0 0.0
        %2889 = vmatprep.subr.mxu0 0.0
        %2890 = vmatpush1.msra.mxu0 0.0
        %2891 = vmatprep.mubr.f32.mxu0 0.0
        %2892 = vmatmul.mubr.f32.gmra.mrb[0].mxu0 %v2822
        %v2893 = vpop.f32.mrb[0].mxu0
        %v2894 = vadd.f32 %v2813, %v2893
        %v2895 = vpop.f32.mrb[0].mxu0
        %2896 = vmatprep.mubr.f32.mxu0 0.0
        %2897 = vmatmul.mubr.f32.gmra.mrb[0].mxu0 %v2825
        %v2898 = vpop.f32.mrb[0].mxu0
        %v2899 = vadd.f32 %v2818, %v2898
        %v2900 = vpop.f32.mrb[0].mxu0
        %2901 = vdwg.mxu0
        %2902 = vrot.lane.b32.xlu0 %v2217, 112
        %v2903 = vpop.permute.xlu0 %2902
        %2904 = vrot.lane.b32.xlu0 %v2218, 112
        %v2905 = vpop.permute.xlu0 %2904
        %2906 = vrot.lane.b32.xlu0 %v2209, 80
        %v2907 = vpop.permute.xlu0 %2906
        %2908 = vrot.lane.b32.xlu0 %v2214, 80
        %v2909 = vpop.permute.xlu0 %2908
        %v2910 = vsel %vm530, %v2903, 0
        %v2912 = vsel %vm530, %v2905, 0
        %v2914 = vsel %vm530, %v2907, 0
        %v2916 = vsel %vm530, %v2909, 0
        %2918 = vmatprep.subr.mxu0 0.0
        %2919 = vmatpush1.xpose.msra.mxu0 %v2914
        %2920 = vmatprep.subr.mxu0 0.0
        %2921 = vmatpush1.xpose.msra.mxu0 %v2916
        %2922 = vmatprep.subr.mxu0 0.0
        %2923 = vmatpush1.xpose.msra.mxu0 0.0
        %2924 = vmatprep.subr.mxu0 0.0
        %2925 = vmatpush1.xpose.msra.mxu0 0.0
        %2926 = vmatprep.subr.mxu0 0.0
        %2927 = vmatpush1.xpose.msra.mxu0 0.0
        %2928 = vmatprep.subr.mxu0 0.0
        %2929 = vmatpush1.xpose.msra.mxu0 0.0
        %2930 = vmatprep.subr.mxu0 0.0
        %2931 = vmatpush1.xpose.msra.mxu0 0.0
        %2932 = vmatprep.subr.mxu0 0.0
        %2933 = vmatpush1.xpose.msra.mxu0 0.0
        %2934 = vmatprep.subr.mxu0 0.0
        %2935 = vmatpush1.xpose.msra.mxu0 0.0
        %2936 = vmatprep.subr.mxu0 0.0
        %2937 = vmatpush1.xpose.msra.mxu0 0.0
        %2938 = vmatprep.subr.mxu0 0.0
        %2939 = vmatpush1.xpose.msra.mxu0 0.0
        %2940 = vmatprep.subr.mxu0 0.0
        %2941 = vmatpush1.xpose.msra.mxu0 0.0
        %2942 = vmatprep.subr.mxu0 0.0
        %2943 = vmatpush1.xpose.msra.mxu0 0.0
        %2944 = vmatprep.subr.mxu0 0.0
        %2945 = vmatpush1.xpose.msra.mxu0 0.0
        %2946 = vmatprep.subr.mxu0 0.0
        %2947 = vmatpush1.xpose.msra.mxu0 0.0
        %2948 = vmatprep.subr.mxu0 0.0
        %2949 = vmatpush1.xpose.msra.mxu0 0.0
        %2950 = vmatprep.subr.mxu0 0.0
        %2951 = vmatpush1.xpose.msra.mxu0 0.0
        %2952 = vmatprep.subr.mxu0 0.0
        %2953 = vmatpush1.xpose.msra.mxu0 0.0
        %2954 = vmatprep.subr.mxu0 0.0
        %2955 = vmatpush1.xpose.msra.mxu0 0.0
        %2956 = vmatprep.subr.mxu0 0.0
        %2957 = vmatpush1.xpose.msra.mxu0 0.0
        %2958 = vmatprep.subr.mxu0 0.0
        %2959 = vmatpush1.xpose.msra.mxu0 0.0
        %2960 = vmatprep.subr.mxu0 0.0
        %2961 = vmatpush1.xpose.msra.mxu0 0.0
        %2962 = vmatprep.subr.mxu0 0.0
        %2963 = vmatpush1.xpose.msra.mxu0 0.0
        %2964 = vmatprep.subr.mxu0 0.0
        %2965 = vmatpush1.xpose.msra.mxu0 0.0
        %2966 = vmatprep.subr.mxu0 0.0
        %2967 = vmatpush1.xpose.msra.mxu0 0.0
        %2968 = vmatprep.subr.mxu0 0.0
        %2969 = vmatpush1.xpose.msra.mxu0 0.0
        %2970 = vmatprep.subr.mxu0 0.0
        %2971 = vmatpush1.xpose.msra.mxu0 0.0
        %2972 = vmatprep.subr.mxu0 0.0
        %2973 = vmatpush1.xpose.msra.mxu0 0.0
        %2974 = vmatprep.subr.mxu0 0.0
        %2975 = vmatpush1.xpose.msra.mxu0 0.0
        %2976 = vmatprep.subr.mxu0 0.0
        %2977 = vmatpush1.xpose.msra.mxu0 0.0
        %2978 = vmatprep.subr.mxu0 0.0
        %2979 = vmatpush1.xpose.msra.mxu0 0.0
        %2980 = vmatprep.subr.mxu0 0.0
        %2981 = vmatpush1.xpose.msra.mxu0 0.0
        %2982 = vmatprep.mubr.f32.mxu0 0.0
        %2983 = vmatmul.mubr.f32.gmra.mrb[0].mxu0 %v2910
        %v2984 = vpop.f32.mrb[0].mxu0
        %v2985 = vadd.f32 0.0, %v2984
        %v2986 = vpop.f32.mrb[0].mxu0
        %2987 = vmatprep.mubr.f32.mxu0 0.0
        %2988 = vmatmul.mubr.f32.gmra.mrb[0].mxu0 %v2912
        %v2989 = vpop.f32.mrb[0].mxu0
        %v2990 = vadd.f32 0.0, %v2989
        %v2991 = vpop.f32.mrb[0].mxu0
        %2992 = vdwg.mxu0
        %v2993 = vsel %vm616, %v2985, -inf
        %2994 = vmax.xlane.f32.xlu0 %v2993
        %v2995 = vpop.xlane.xlu0 %2994
        %v2996 = vsel %vm616, %v2990, -inf
        %2997 = vmax.xlane.f32.xlu0 %v2996
        %v2998 = vpop.xlane.xlu0 %2997
        %v2999 = vsub.f32 %v2985, %v2995
        %v3000 = vsub.f32 %v2990, %v2998
        %v3001 = vmul.f32 %v2999, 1.442695
        %v3002 = vpow.pop %v3001
        %v3003 = vmul.f32 %v3000, 1.442695
        %v3004 = vpow.pop %v3003
        %v3005 = vsel %vm616, %v3002, 0.0
        %3006 = vadd.xlane.f32.xlu0 %v3005
        %v3007 = vpop.xlane.xlu0 %3006
        %v3008 = vsel %vm616, %v3004, 0.0
        %3009 = vadd.xlane.f32.xlu0 %v3008
        %v3010 = vpop.xlane.xlu0 %3009
        %v3011 = vrcp.pop %v3007
        %v3012 = vmul.f32 %v3002, %v3011
        %v3013 = vrcp.pop %v3010
        %v3014 = vmul.f32 %v3004, %v3013
        %3015 = vset.pattern.permute.xlu0 98
        %3016 = vperm.xlu0 %3015, %v2247
        %v3017 = vpop.permute.xlu0 %3016
        %3019 = vset.pattern.permute.xlu0 98
        %3020 = vperm.xlu0 %3019, %v2248
        %v3021 = vpop.permute.xlu0 %3020
        %v3023 = vmul.f32 %v397, %v3017
        %v3024 = vmul.f32 %v398, %v3021
        %v3025 = vmul.f32 %v3023, 1.442695
        %v3026 = vpow.pop %v3025
        %v3027 = vmul.f32 %v3024, 1.442695
        %v3028 = vpow.pop %v3027
        %3029 = vset.pattern.permute.xlu0 98
        %3030 = vperm.xlu0 %3029, %v2245
        %v3031 = vpop.permute.xlu0 %3030
        %3033 = vset.pattern.permute.xlu0 98
        %3034 = vperm.xlu0 %3033, %v2246
        %v3035 = vpop.permute.xlu0 %3034
        %v3037 = vmul.f32 %v3031, %v3026
        %v3038 = vmul.f32 %v3035, %v3028
        %s3039 = scalar_lea.vmem %s366, 96 [#allocation4]
        %3040 = vst.msk [vmem:[%s3039] sm:$0xff] %vm616, %v3012
        %3041 = vst.msk [vmem:[%s3039 + $0x8] sm:$0xff] %vm616, %v3014
        %s3042 = scalar_lea.vmem %s373, 96 [#allocation6]
        %3043 = vst.msk [vmem:[%s3042] sm:$0xff] %vm616, %v3037
        %3044 = vst.msk [vmem:[%s3042 + $0x8] sm:$0xff] %vm616, %v3038
        %3045 = vset.pattern.permute.xlu0 98
        %3046 = vperm.xlu0 %3045, %v2241
        %v3047 = vpop.permute.xlu0 %3046
        %3049 = vset.pattern.permute.xlu0 98
        %3050 = vperm.xlu0 %3049, %v2242
        %v3051 = vpop.permute.xlu0 %3050
        %s3053 = scalar_lea.vmem %s380, 96 [#allocation7]
        %3054 = vst.msk [vmem:[%s3053] sm:$0xff] %vm616, %v3047
        %3055 = vst.msk [vmem:[%s3053 + $0x8] sm:$0xff] %vm616, %v3051
        %3056 = vrot.lane.b32.xlu0 %v2209, 48
        %v3057 = vpop.permute.xlu0 %3056
        %3058 = vrot.lane.b32.xlu0 %v2214, 48
        %v3059 = vpop.permute.xlu0 %3058
        %v3063 = vsel %vm616, %v3012, 0
        %v3066 = vsel %vm616, %v3014, 0
        %3068 = vmatprep.subr.mxu0 0.0
        %3069 = vmatpush1.msra.mxu0 %v3057
        %3070 = vmatprep.subr.mxu0 0.0
        %3071 = vmatpush1.msra.mxu0 %v3059
        %3072 = vmatprep.subr.mxu0 0.0
        %3073 = vmatpush1.msra.mxu0 0.0
        %3074 = vmatprep.subr.mxu0 0.0
        %3075 = vmatpush1.msra.mxu0 0.0
        %3076 = vmatprep.subr.mxu0 0.0
        %3077 = vmatpush1.msra.mxu0 0.0
        %3078 = vmatprep.subr.mxu0 0.0
        %3079 = vmatpush1.msra.mxu0 0.0
        %3080 = vmatprep.subr.mxu0 0.0
        %3081 = vmatpush1.msra.mxu0 0.0
        %3082 = vmatprep.subr.mxu0 0.0
        %3083 = vmatpush1.msra.mxu0 0.0
        %3084 = vmatprep.subr.mxu0 0.0
        %3085 = vmatpush1.msra.mxu0 0.0
        %3086 = vmatprep.subr.mxu0 0.0
        %3087 = vmatpush1.msra.mxu0 0.0
        %3088 = vmatprep.subr.mxu0 0.0
        %3089 = vmatpush1.msra.mxu0 0.0
        %3090 = vmatprep.subr.mxu0 0.0
        %3091 = vmatpush1.msra.mxu0 0.0
        %3092 = vmatprep.subr.mxu0 0.0
        %3093 = vmatpush1.msra.mxu0 0.0
        %3094 = vmatprep.subr.mxu0 0.0
        %3095 = vmatpush1.msra.mxu0 0.0
        %3096 = vmatprep.subr.mxu0 0.0
        %3097 = vmatpush1.msra.mxu0 0.0
        %3098 = vmatprep.subr.mxu0 0.0
        %3099 = vmatpush1.msra.mxu0 0.0
        %3100 = vmatprep.subr.mxu0 0.0
        %3101 = vmatpush1.msra.mxu0 0.0
        %3102 = vmatprep.subr.mxu0 0.0
        %3103 = vmatpush1.msra.mxu0 0.0
        %3104 = vmatprep.subr.mxu0 0.0
        %3105 = vmatpush1.msra.mxu0 0.0
        %3106 = vmatprep.subr.mxu0 0.0
        %3107 = vmatpush1.msra.mxu0 0.0
        %3108 = vmatprep.subr.mxu0 0.0
        %3109 = vmatpush1.msra.mxu0 0.0
        %3110 = vmatprep.subr.mxu0 0.0
        %3111 = vmatpush1.msra.mxu0 0.0
        %3112 = vmatprep.subr.mxu0 0.0
        %3113 = vmatpush1.msra.mxu0 0.0
        %3114 = vmatprep.subr.mxu0 0.0
        %3115 = vmatpush1.msra.mxu0 0.0
        %3116 = vmatprep.subr.mxu0 0.0
        %3117 = vmatpush1.msra.mxu0 0.0
        %3118 = vmatprep.subr.mxu0 0.0
        %3119 = vmatpush1.msra.mxu0 0.0
        %3120 = vmatprep.subr.mxu0 0.0
        %3121 = vmatpush1.msra.mxu0 0.0
        %3122 = vmatprep.subr.mxu0 0.0
        %3123 = vmatpush1.msra.mxu0 0.0
        %3124 = vmatprep.subr.mxu0 0.0
        %3125 = vmatpush1.msra.mxu0 0.0
        %3126 = vmatprep.subr.mxu0 0.0
        %3127 = vmatpush1.msra.mxu0 0.0
        %3128 = vmatprep.subr.mxu0 0.0
        %3129 = vmatpush1.msra.mxu0 0.0
        %3130 = vmatprep.subr.mxu0 0.0
        %3131 = vmatpush1.msra.mxu0 0.0
        %3132 = vmatprep.mubr.f32.mxu0 0.0
        %3133 = vmatmul.mubr.f32.gmra.mrb[0].mxu0 %v3063
        %v3134 = vpop.f32.mrb[0].mxu0
        %v3135 = vadd.f32 0.0, %v3134
        %v3136 = vpop.f32.mrb[0].mxu0
        %3137 = vmatprep.mubr.f32.mxu0 0.0
        %3138 = vmatmul.mubr.f32.gmra.mrb[0].mxu0 %v3066
        %v3139 = vpop.f32.mrb[0].mxu0
        %v3140 = vadd.f32 0.0, %v3139
        %v3141 = vpop.f32.mrb[0].mxu0
        %3142 = vdwg.mxu0
        %v3143 = vld [vmem:[%s2496 + $0x10] sm:$0xff]
        %v3145 = vsel %vm530, %v3135, 0
        %v3148 = vsel %vm530, %v3140, 0
        %3150 = vmatprep.subr.mxu0 0.0
        %3151 = vmatpush1.msra.mxu0 %v3143
        %3152 = vmatprep.subr.mxu0 0.0
        %3153 = vmatpush1.msra.mxu0 0.0
        %3154 = vmatprep.subr.mxu0 0.0
        %3155 = vmatpush1.msra.mxu0 0.0
        %3156 = vmatprep.subr.mxu0 0.0
        %3157 = vmatpush1.msra.mxu0 0.0
        %3158 = vmatprep.subr.mxu0 0.0
        %3159 = vmatpush1.msra.mxu0 0.0
        %3160 = vmatprep.subr.mxu0 0.0
        %3161 = vmatpush1.msra.mxu0 0.0
        %3162 = vmatprep.subr.mxu0 0.0
        %3163 = vmatpush1.msra.mxu0 0.0
        %3164 = vmatprep.subr.mxu0 0.0
        %3165 = vmatpush1.msra.mxu0 0.0
        %3166 = vmatprep.subr.mxu0 0.0
        %3167 = vmatpush1.msra.mxu0 0.0
        %3168 = vmatprep.subr.mxu0 0.0
        %3169 = vmatpush1.msra.mxu0 0.0
        %3170 = vmatprep.subr.mxu0 0.0
        %3171 = vmatpush1.msra.mxu0 0.0
        %3172 = vmatprep.subr.mxu0 0.0
        %3173 = vmatpush1.msra.mxu0 0.0
        %3174 = vmatprep.subr.mxu0 0.0
        %3175 = vmatpush1.msra.mxu0 0.0
        %3176 = vmatprep.subr.mxu0 0.0
        %3177 = vmatpush1.msra.mxu0 0.0
        %3178 = vmatprep.subr.mxu0 0.0
        %3179 = vmatpush1.msra.mxu0 0.0
        %3180 = vmatprep.subr.mxu0 0.0
        %3181 = vmatpush1.msra.mxu0 0.0
        %3182 = vmatprep.subr.mxu0 0.0
        %3183 = vmatpush1.msra.mxu0 0.0
        %3184 = vmatprep.subr.mxu0 0.0
        %3185 = vmatpush1.msra.mxu0 0.0
        %3186 = vmatprep.subr.mxu0 0.0
        %3187 = vmatpush1.msra.mxu0 0.0
        %3188 = vmatprep.subr.mxu0 0.0
        %3189 = vmatpush1.msra.mxu0 0.0
        %3190 = vmatprep.subr.mxu0 0.0
        %3191 = vmatpush1.msra.mxu0 0.0
        %3192 = vmatprep.subr.mxu0 0.0
        %3193 = vmatpush1.msra.mxu0 0.0
        %3194 = vmatprep.subr.mxu0 0.0
        %3195 = vmatpush1.msra.mxu0 0.0
        %3196 = vmatprep.subr.mxu0 0.0
        %3197 = vmatpush1.msra.mxu0 0.0
        %3198 = vmatprep.subr.mxu0 0.0
        %3199 = vmatpush1.msra.mxu0 0.0
        %3200 = vmatprep.subr.mxu0 0.0
        %3201 = vmatpush1.msra.mxu0 0.0
        %3202 = vmatprep.subr.mxu0 0.0
        %3203 = vmatpush1.msra.mxu0 0.0
        %3204 = vmatprep.subr.mxu0 0.0
        %3205 = vmatpush1.msra.mxu0 0.0
        %3206 = vmatprep.subr.mxu0 0.0
        %3207 = vmatpush1.msra.mxu0 0.0
        %3208 = vmatprep.subr.mxu0 0.0
        %3209 = vmatpush1.msra.mxu0 0.0
        %3210 = vmatprep.subr.mxu0 0.0
        %3211 = vmatpush1.msra.mxu0 0.0
        %3212 = vmatprep.subr.mxu0 0.0
        %3213 = vmatpush1.msra.mxu0 0.0
        %3214 = vmatprep.mubr.f32.mxu0 0.0
        %3215 = vmatmul.mubr.f32.gmra.mrb[0].mxu0 %v3145
        %v3216 = vpop.f32.mrb[0].mxu0
        %v3217 = vadd.f32 0.0, %v3216
        %v3218 = vpop.f32.mrb[0].mxu0
        %3219 = vmatprep.mubr.f32.mxu0 0.0
        %3220 = vmatmul.mubr.f32.gmra.mrb[0].mxu0 %v3148
        %v3221 = vpop.f32.mrb[0].mxu0
        %v3222 = vadd.f32 0.0, %v3221
        %v3223 = vpop.f32.mrb[0].mxu0
        %3224 = vdwg.mxu0
        %v3225 = vadd.f32 %v2894, %v3217
        %v3226 = vadd.f32 %v2899, %v3222
        %3227 = vrot.lane.b32.xlu0 %v2217, 104
        %v3228 = vpop.permute.xlu0 %3227
        %3229 = vrot.lane.b32.xlu0 %v2218, 104
        %v3230 = vpop.permute.xlu0 %3229
        %3231 = vrot.lane.b32.xlu0 %v2209, 72
        %v3232 = vpop.permute.xlu0 %3231
        %3233 = vrot.lane.b32.xlu0 %v2214, 72
        %v3234 = vpop.permute.xlu0 %3233
        %v3235 = vsel %vm530, %v3228, 0
        %v3237 = vsel %vm530, %v3230, 0
        %v3239 = vsel %vm530, %v3232, 0
        %v3241 = vsel %vm530, %v3234, 0
        %3243 = vmatprep.subr.mxu0 0.0
        %3244 = vmatpush1.xpose.msra.mxu0 %v3239
        %3245 = vmatprep.subr.mxu0 0.0
        %3246 = vmatpush1.xpose.msra.mxu0 %v3241
        %3247 = vmatprep.subr.mxu0 0.0
        %3248 = vmatpush1.xpose.msra.mxu0 0.0
        %3249 = vmatprep.subr.mxu0 0.0
        %3250 = vmatpush1.xpose.msra.mxu0 0.0
        %3251 = vmatprep.subr.mxu0 0.0
        %3252 = vmatpush1.xpose.msra.mxu0 0.0
        %3253 = vmatprep.subr.mxu0 0.0
        %3254 = vmatpush1.xpose.msra.mxu0 0.0
        %3255 = vmatprep.subr.mxu0 0.0
        %3256 = vmatpush1.xpose.msra.mxu0 0.0
        %3257 = vmatprep.subr.mxu0 0.0
        %3258 = vmatpush1.xpose.msra.mxu0 0.0
        %3259 = vmatprep.subr.mxu0 0.0
        %3260 = vmatpush1.xpose.msra.mxu0 0.0
        %3261 = vmatprep.subr.mxu0 0.0
        %3262 = vmatpush1.xpose.msra.mxu0 0.0
        %3263 = vmatprep.subr.mxu0 0.0
        %3264 = vmatpush1.xpose.msra.mxu0 0.0
        %3265 = vmatprep.subr.mxu0 0.0
        %3266 = vmatpush1.xpose.msra.mxu0 0.0
        %3267 = vmatprep.subr.mxu0 0.0
        %3268 = vmatpush1.xpose.msra.mxu0 0.0
        %3269 = vmatprep.subr.mxu0 0.0
        %3270 = vmatpush1.xpose.msra.mxu0 0.0
        %3271 = vmatprep.subr.mxu0 0.0
        %3272 = vmatpush1.xpose.msra.mxu0 0.0
        %3273 = vmatprep.subr.mxu0 0.0
        %3274 = vmatpush1.xpose.msra.mxu0 0.0
        %3275 = vmatprep.subr.mxu0 0.0
        %3276 = vmatpush1.xpose.msra.mxu0 0.0
        %3277 = vmatprep.subr.mxu0 0.0
        %3278 = vmatpush1.xpose.msra.mxu0 0.0
        %3279 = vmatprep.subr.mxu0 0.0
        %3280 = vmatpush1.xpose.msra.mxu0 0.0
        %3281 = vmatprep.subr.mxu0 0.0
        %3282 = vmatpush1.xpose.msra.mxu0 0.0
        %3283 = vmatprep.subr.mxu0 0.0
        %3284 = vmatpush1.xpose.msra.mxu0 0.0
        %3285 = vmatprep.subr.mxu0 0.0
        %3286 = vmatpush1.xpose.msra.mxu0 0.0
        %3287 = vmatprep.subr.mxu0 0.0
        %3288 = vmatpush1.xpose.msra.mxu0 0.0
        %3289 = vmatprep.subr.mxu0 0.0
        %3290 = vmatpush1.xpose.msra.mxu0 0.0
        %3291 = vmatprep.subr.mxu0 0.0
        %3292 = vmatpush1.xpose.msra.mxu0 0.0
        %3293 = vmatprep.subr.mxu0 0.0
        %3294 = vmatpush1.xpose.msra.mxu0 0.0
        %3295 = vmatprep.subr.mxu0 0.0
        %3296 = vmatpush1.xpose.msra.mxu0 0.0
        %3297 = vmatprep.subr.mxu0 0.0
        %3298 = vmatpush1.xpose.msra.mxu0 0.0
        %3299 = vmatprep.subr.mxu0 0.0
        %3300 = vmatpush1.xpose.msra.mxu0 0.0
        %3301 = vmatprep.subr.mxu0 0.0
        %3302 = vmatpush1.xpose.msra.mxu0 0.0
        %3303 = vmatprep.subr.mxu0 0.0
        %3304 = vmatpush1.xpose.msra.mxu0 0.0
        %3305 = vmatprep.subr.mxu0 0.0
        %3306 = vmatpush1.xpose.msra.mxu0 0.0
        %3307 = vmatprep.mubr.f32.mxu0 0.0
        %3308 = vmatmul.mubr.f32.gmra.mrb[0].mxu0 %v3235
        %v3309 = vpop.f32.mrb[0].mxu0
        %v3310 = vadd.f32 0.0, %v3309
        %v3311 = vpop.f32.mrb[0].mxu0
        %3312 = vmatprep.mubr.f32.mxu0 0.0
        %3313 = vmatmul.mubr.f32.gmra.mrb[0].mxu0 %v3237
        %v3314 = vpop.f32.mrb[0].mxu0
        %v3315 = vadd.f32 0.0, %v3314
        %v3316 = vpop.f32.mrb[0].mxu0
        %3317 = vdwg.mxu0
        %v3318 = vsel %vm616, %v3310, -inf
        %3319 = vmax.xlane.f32.xlu0 %v3318
        %v3320 = vpop.xlane.xlu0 %3319
        %v3321 = vsel %vm616, %v3315, -inf
        %3322 = vmax.xlane.f32.xlu0 %v3321
        %v3323 = vpop.xlane.xlu0 %3322
        %v3324 = vsub.f32 %v3310, %v3320
        %v3325 = vsub.f32 %v3315, %v3323
        %v3326 = vmul.f32 %v3324, 1.442695
        %v3327 = vpow.pop %v3326
        %v3328 = vmul.f32 %v3325, 1.442695
        %v3329 = vpow.pop %v3328
        %v3330 = vsel %vm616, %v3327, 0.0
        %3331 = vadd.xlane.f32.xlu0 %v3330
        %v3332 = vpop.xlane.xlu0 %3331
        %v3333 = vsel %vm616, %v3329, 0.0
        %3334 = vadd.xlane.f32.xlu0 %v3333
        %v3335 = vpop.xlane.xlu0 %3334
        %v3336 = vrcp.pop %v3332
        %v3337 = vmul.f32 %v3327, %v3336
        %v3338 = vrcp.pop %v3335
        %v3339 = vmul.f32 %v3329, %v3338
        %3340 = vset.pattern.permute.xlu0 99
        %3341 = vperm.xlu0 %3340, %v2247
        %v3342 = vpop.permute.xlu0 %3341
        %3344 = vset.pattern.permute.xlu0 99
        %3345 = vperm.xlu0 %3344, %v2248
        %v3346 = vpop.permute.xlu0 %3345
        %v3348 = vmul.f32 %v397, %v3342
        %v3349 = vmul.f32 %v398, %v3346
        %v3350 = vmul.f32 %v3348, 1.442695
        %v3351 = vpow.pop %v3350
        %v3352 = vmul.f32 %v3349, 1.442695
        %v3353 = vpow.pop %v3352
        %3354 = vset.pattern.permute.xlu0 99
        %3355 = vperm.xlu0 %3354, %v2245
        %v3356 = vpop.permute.xlu0 %3355
        %3358 = vset.pattern.permute.xlu0 99
        %3359 = vperm.xlu0 %3358, %v2246
        %v3360 = vpop.permute.xlu0 %3359
        %v3362 = vmul.f32 %v3356, %v3351
        %v3363 = vmul.f32 %v3360, %v3353
        %s3364 = scalar_lea.vmem %s366, 112 [#allocation4]
        %3365 = vst.msk [vmem:[%s3364] sm:$0xff] %vm616, %v3337
        %3366 = vst.msk [vmem:[%s3364 + $0x8] sm:$0xff] %vm616, %v3339
        %s3367 = scalar_lea.vmem %s373, 112 [#allocation6]
        %3368 = vst.msk [vmem:[%s3367] sm:$0xff] %vm616, %v3362
        %3369 = vst.msk [vmem:[%s3367 + $0x8] sm:$0xff] %vm616, %v3363
        %3370 = vset.pattern.permute.xlu0 99
        %3371 = vperm.xlu0 %3370, %v2241
        %v3372 = vpop.permute.xlu0 %3371
        %3374 = vset.pattern.permute.xlu0 99
        %3375 = vperm.xlu0 %3374, %v2242
        %v3376 = vpop.permute.xlu0 %3375
        %s3378 = scalar_lea.vmem %s380, 112 [#allocation7]
        %3379 = vst.msk [vmem:[%s3378] sm:$0xff] %vm616, %v3372
        %3380 = vst.msk [vmem:[%s3378 + $0x8] sm:$0xff] %vm616, %v3376
        %3381 = vrot.lane.b32.xlu0 %v2209, 40
        %v3382 = vpop.permute.xlu0 %3381
        %3383 = vrot.lane.b32.xlu0 %v2214, 40
        %v3384 = vpop.permute.xlu0 %3383
        %v3388 = vsel %vm616, %v3337, 0
        %v3391 = vsel %vm616, %v3339, 0
        %3393 = vmatprep.subr.mxu0 0.0
        %3394 = vmatpush1.msra.mxu0 %v3382
        %3395 = vmatprep.subr.mxu0 0.0
        %3396 = vmatpush1.msra.mxu0 %v3384
        %3397 = vmatprep.subr.mxu0 0.0
        %3398 = vmatpush1.msra.mxu0 0.0
        %3399 = vmatprep.subr.mxu0 0.0
        %3400 = vmatpush1.msra.mxu0 0.0
        %3401 = vmatprep.subr.mxu0 0.0
        %3402 = vmatpush1.msra.mxu0 0.0
        %3403 = vmatprep.subr.mxu0 0.0
        %3404 = vmatpush1.msra.mxu0 0.0
        %3405 = vmatprep.subr.mxu0 0.0
        %3406 = vmatpush1.msra.mxu0 0.0
        %3407 = vmatprep.subr.mxu0 0.0
        %3408 = vmatpush1.msra.mxu0 0.0
        %3409 = vmatprep.subr.mxu0 0.0
        %3410 = vmatpush1.msra.mxu0 0.0
        %3411 = vmatprep.subr.mxu0 0.0
        %3412 = vmatpush1.msra.mxu0 0.0
        %3413 = vmatprep.subr.mxu0 0.0
        %3414 = vmatpush1.msra.mxu0 0.0
        %3415 = vmatprep.subr.mxu0 0.0
        %3416 = vmatpush1.msra.mxu0 0.0
        %3417 = vmatprep.subr.mxu0 0.0
        %3418 = vmatpush1.msra.mxu0 0.0
        %3419 = vmatprep.subr.mxu0 0.0
        %3420 = vmatpush1.msra.mxu0 0.0
        %3421 = vmatprep.subr.mxu0 0.0
        %3422 = vmatpush1.msra.mxu0 0.0
        %3423 = vmatprep.subr.mxu0 0.0
        %3424 = vmatpush1.msra.mxu0 0.0
        %3425 = vmatprep.subr.mxu0 0.0
        %3426 = vmatpush1.msra.mxu0 0.0
        %3427 = vmatprep.subr.mxu0 0.0
        %3428 = vmatpush1.msra.mxu0 0.0
        %3429 = vmatprep.subr.mxu0 0.0
        %3430 = vmatpush1.msra.mxu0 0.0
        %3431 = vmatprep.subr.mxu0 0.0
        %3432 = vmatpush1.msra.mxu0 0.0
        %3433 = vmatprep.subr.mxu0 0.0
        %3434 = vmatpush1.msra.mxu0 0.0
        %3435 = vmatprep.subr.mxu0 0.0
        %3436 = vmatpush1.msra.mxu0 0.0
        %3437 = vmatprep.subr.mxu0 0.0
        %3438 = vmatpush1.msra.mxu0 0.0
        %3439 = vmatprep.subr.mxu0 0.0
        %3440 = vmatpush1.msra.mxu0 0.0
        %3441 = vmatprep.subr.mxu0 0.0
        %3442 = vmatpush1.msra.mxu0 0.0
        %3443 = vmatprep.subr.mxu0 0.0
        %3444 = vmatpush1.msra.mxu0 0.0
        %3445 = vmatprep.subr.mxu0 0.0
        %3446 = vmatpush1.msra.mxu0 0.0
        %3447 = vmatprep.subr.mxu0 0.0
        %3448 = vmatpush1.msra.mxu0 0.0
        %3449 = vmatprep.subr.mxu0 0.0
        %3450 = vmatpush1.msra.mxu0 0.0
        %3451 = vmatprep.subr.mxu0 0.0
        %3452 = vmatpush1.msra.mxu0 0.0
        %3453 = vmatprep.subr.mxu0 0.0
        %3454 = vmatpush1.msra.mxu0 0.0
        %3455 = vmatprep.subr.mxu0 0.0
        %3456 = vmatpush1.msra.mxu0 0.0
        %3457 = vmatprep.mubr.f32.mxu0 0.0
        %3458 = vmatmul.mubr.f32.gmra.mrb[0].mxu0 %v3388
        %v3459 = vpop.f32.mrb[0].mxu0
        %v3460 = vadd.f32 0.0, %v3459
        %v3461 = vpop.f32.mrb[0].mxu0
        %3462 = vmatprep.mubr.f32.mxu0 0.0
        %3463 = vmatmul.mubr.f32.gmra.mrb[0].mxu0 %v3391
        %v3464 = vpop.f32.mrb[0].mxu0
        %v3465 = vadd.f32 0.0, %v3464
        %v3466 = vpop.f32.mrb[0].mxu0
        %3467 = vdwg.mxu0
        %v3468 = vld [vmem:[%s2496 + $0x18] sm:$0xff]
        %v3470 = vsel %vm530, %v3460, 0
        %v3473 = vsel %vm530, %v3465, 0
        %3475 = vmatprep.subr.mxu0 0.0
        %3476 = vmatpush1.msra.mxu0 %v3468
        %3477 = vmatprep.subr.mxu0 0.0
        %3478 = vmatpush1.msra.mxu0 0.0
        %3479 = vmatprep.subr.mxu0 0.0
        %3480 = vmatpush1.msra.mxu0 0.0
        %3481 = vmatprep.subr.mxu0 0.0
        %3482 = vmatpush1.msra.mxu0 0.0
        %3483 = vmatprep.subr.mxu0 0.0
        %3484 = vmatpush1.msra.mxu0 0.0
        %3485 = vmatprep.subr.mxu0 0.0
        %3486 = vmatpush1.msra.mxu0 0.0
        %3487 = vmatprep.subr.mxu0 0.0
        %3488 = vmatpush1.msra.mxu0 0.0
        %3489 = vmatprep.subr.mxu0 0.0
        %3490 = vmatpush1.msra.mxu0 0.0
        %3491 = vmatprep.subr.mxu0 0.0
        %3492 = vmatpush1.msra.mxu0 0.0
        %3493 = vmatprep.subr.mxu0 0.0
        %3494 = vmatpush1.msra.mxu0 0.0
        %3495 = vmatprep.subr.mxu0 0.0
        %3496 = vmatpush1.msra.mxu0 0.0
        %3497 = vmatprep.subr.mxu0 0.0
        %3498 = vmatpush1.msra.mxu0 0.0
        %3499 = vmatprep.subr.mxu0 0.0
        %3500 = vmatpush1.msra.mxu0 0.0
        %3501 = vmatprep.subr.mxu0 0.0
        %3502 = vmatpush1.msra.mxu0 0.0
        %3503 = vmatprep.subr.mxu0 0.0
        %3504 = vmatpush1.msra.mxu0 0.0
        %3505 = vmatprep.subr.mxu0 0.0
        %3506 = vmatpush1.msra.mxu0 0.0
        %3507 = vmatprep.subr.mxu0 0.0
        %3508 = vmatpush1.msra.mxu0 0.0
        %3509 = vmatprep.subr.mxu0 0.0
        %3510 = vmatpush1.msra.mxu0 0.0
        %3511 = vmatprep.subr.mxu0 0.0
        %3512 = vmatpush1.msra.mxu0 0.0
        %3513 = vmatprep.subr.mxu0 0.0
        %3514 = vmatpush1.msra.mxu0 0.0
        %3515 = vmatprep.subr.mxu0 0.0
        %3516 = vmatpush1.msra.mxu0 0.0
        %3517 = vmatprep.subr.mxu0 0.0
        %3518 = vmatpush1.msra.mxu0 0.0
        %3519 = vmatprep.subr.mxu0 0.0
        %3520 = vmatpush1.msra.mxu0 0.0
        %3521 = vmatprep.subr.mxu0 0.0
        %3522 = vmatpush1.msra.mxu0 0.0
        %3523 = vmatprep.subr.mxu0 0.0
        %3524 = vmatpush1.msra.mxu0 0.0
        %3525 = vmatprep.subr.mxu0 0.0
        %3526 = vmatpush1.msra.mxu0 0.0
        %3527 = vmatprep.subr.mxu0 0.0
        %3528 = vmatpush1.msra.mxu0 0.0
        %3529 = vmatprep.subr.mxu0 0.0
        %3530 = vmatpush1.msra.mxu0 0.0
        %3531 = vmatprep.subr.mxu0 0.0
        %3532 = vmatpush1.msra.mxu0 0.0
        %3533 = vmatprep.subr.mxu0 0.0
        %3534 = vmatpush1.msra.mxu0 0.0
        %3535 = vmatprep.subr.mxu0 0.0
        %3536 = vmatpush1.msra.mxu0 0.0
        %3537 = vmatprep.subr.mxu0 0.0
        %3538 = vmatpush1.msra.mxu0 0.0
        %3539 = vmatprep.mubr.f32.mxu0 0.0
        %3540 = vmatmul.mubr.f32.gmra.mrb[0].mxu0 %v3470
        %v3541 = vpop.f32.mrb[0].mxu0
        %v3542 = vadd.f32 0.0, %v3541
        %v3543 = vpop.f32.mrb[0].mxu0
        %3544 = vmatprep.mubr.f32.mxu0 0.0
        %3545 = vmatmul.mubr.f32.gmra.mrb[0].mxu0 %v3473
        %v3546 = vpop.f32.mrb[0].mxu0
        %v3547 = vadd.f32 0.0, %v3546
        %v3548 = vpop.f32.mrb[0].mxu0
        %3549 = vdwg.mxu0
        %v3550 = vadd.f32 %v3225, %v3542
        %v3551 = vadd.f32 %v3226, %v3547
        %v3552 = vlaneseq
        %v3553 = vshrl.u32 %v3552, 7
        %v3554 = vsub.s32 1, %v3553
        %v3555 = vrot.slane %v2126, %v3554
        %v3556 = vadd.f32 %v3550, %v3555
        %v3557 = vadd.f32 %v3551, %v3555
        %v3558 = vadd.f32 %v2123, %v3556
        %v3559 = vadd.f32 %v2124, %v3557
        %v3560 = vsel %vm410, %v3558, 0.0
        %3561 = vadd.xlane.f32.xlu0 %v3560
        %v3562 = vpop.xlane.xlu0 %3561
        %v3563 = vsel %vm410, %v3559, 0.0
        %3564 = vadd.xlane.f32.xlu0 %v3563
        %v3565 = vpop.xlane.xlu0 %3564
        %v3566 = vmul.f32 %v3562, %v1839
        %v3567 = vmul.f32 %v3565, %v1839
        %v3568 = vsub.f32 %v3558, %v3566
        %v3569 = vsub.f32 %v3559, %v3567
        %v3570 = vmul.f32 %v3568, %v3568
        %v3571 = vmul.f32 %v3569, %v3569
        %v3572 = vsel %vm410, %v3570, 0.0
        %3573 = vadd.xlane.f32.xlu0 %v3572
        %v3574 = vpop.xlane.xlu0 %3573
        %v3575 = vsel %vm410, %v3571, 0.0
        %3576 = vadd.xlane.f32.xlu0 %v3575
        %v3577 = vpop.xlane.xlu0 %3576
        %v3578 = vmul.f32 %v3574, %v1839
        %v3579 = vmul.f32 %v3577, %v1839
        %v3580 = vadd.f32 %v3578, 1e-05
        %v3581 = vadd.f32 %v3579, 1e-05
        %v3582 = vrsqrt.pop %v3580
        %v3583 = vmul.f32 %v3580, %v3582
        %vm3584 = vcmp.eq.f32.partialorder %v3580, inf
        %v3585 = vsel %vm3584, %v3580, %v3583
        %vm3586 = vcmp.eq.f32.partialorder %v3580, 0.0
        %v3587 = vand.u32 %v3580, 2147483648
        %v3588 = vsel %vm3586, %v3587, %v3585
        %v3589 = vrsqrt.pop %v3581
        %v3590 = vmul.f32 %v3581, %v3589
        %vm3591 = vcmp.eq.f32.partialorder %v3581, inf
        %v3592 = vsel %vm3591, %v3581, %v3590
        %vm3593 = vcmp.eq.f32.partialorder %v3581, 0.0
        %v3594 = vand.u32 %v3581, 2147483648
        %v3595 = vsel %vm3593, %v3594, %v3592
        %v3596 = vrcp.pop %v3588
        %v3597 = vmul.f32 %v3568, %v3596
        %v3598 = vrcp.pop %v3595
        %v3599 = vmul.f32 %v3569, %v3598
        %v3600 = vlaneseq
        %v3601 = vshrl.u32 %v3600, 7
        %v3602 = vsub.s32 4, %v3601
        %v3603 = vrot.slane %v2126, %v3602
        %v3604 = vmul.f32 %v3597, %v3603
        %v3605 = vmul.f32 %v3599, %v3603
        %v3606 = vlaneseq
        %v3607 = vshrl.u32 %v3606, 7
        %v3608 = vsub.s32 5, %v3607
        %v3609 = vrot.slane %v2126, %v3608
        %v3610 = vadd.f32 %v3604, %v3609
        %v3611 = vadd.f32 %v3605, %v3609
        %s3612 = scalar_lea.vmem %s3, 32
        %v3613 = vld [vmem:[%s3612] sm:$0xff]
        %v3614 = vld [vmem:[%s3612 + $0x8] sm:$0xff]
        %v3615 = vld [vmem:[%s3612 + $0x10] sm:$0xff]
        %v3616 = vld [vmem:[%s3612 + $0x18] sm:$0xff]
        %v3617 = vlaneseq
        %v3618 = vshrl.u32 %v3617, 7
        %v3619 = vsub.s32 2, %v3618
        %v3620 = vrot.slane %v2126, %v3619
        %v3622 = vsel %vm410, %v3610, 0
        %v3625 = vsel %vm410, %v3611, 0
        %3627 = vmatprep.subr.mxu0 0.0
        %3628 = vmatpush1.msra.mxu0 %v3613
        %3629 = vmatprep.subr.mxu0 0.0
        %3630 = vmatpush1.msra.mxu0 %v3614
        %3631 = vmatprep.subr.mxu0 0.0
        %3632 = vmatpush1.msra.mxu0 %v3615
        %3633 = vmatprep.subr.mxu0 0.0
        %3634 = vmatpush1.msra.mxu0 %v3616
        %3635 = vmatprep.subr.mxu0 0.0
        %3636 = vmatpush1.msra.mxu0 0.0
        %3637 = vmatprep.subr.mxu0 0.0
        %3638 = vmatpush1.msra.mxu0 0.0
        %3639 = vmatprep.subr.mxu0 0.0
        %3640 = vmatpush1.msra.mxu0 0.0
        %3641 = vmatprep.subr.mxu0 0.0
        %3642 = vmatpush1.msra.mxu0 0.0
        %3643 = vmatprep.subr.mxu0 0.0
        %3644 = vmatpush1.msra.mxu0 0.0
        %3645 = vmatprep.subr.mxu0 0.0
        %3646 = vmatpush1.msra.mxu0 0.0
        %3647 = vmatprep.subr.mxu0 0.0
        %3648 = vmatpush1.msra.mxu0 0.0
        %3649 = vmatprep.subr.mxu0 0.0
        %3650 = vmatpush1.msra.mxu0 0.0
        %3651 = vmatprep.subr.mxu0 0.0
        %3652 = vmatpush1.msra.mxu0 0.0
        %3653 = vmatprep.subr.mxu0 0.0
        %3654 = vmatpush1.msra.mxu0 0.0
        %3655 = vmatprep.subr.mxu0 0.0
        %3656 = vmatpush1.msra.mxu0 0.0
        %3657 = vmatprep.subr.mxu0 0.0
        %3658 = vmatpush1.msra.mxu0 0.0
        %3659 = vmatprep.subr.mxu0 0.0
        %3660 = vmatpush1.msra.mxu0 0.0
        %3661 = vmatprep.subr.mxu0 0.0
        %3662 = vmatpush1.msra.mxu0 0.0
        %3663 = vmatprep.subr.mxu0 0.0
        %3664 = vmatpush1.msra.mxu0 0.0
        %3665 = vmatprep.subr.mxu0 0.0
        %3666 = vmatpush1.msra.mxu0 0.0
        %3667 = vmatprep.subr.mxu0 0.0
        %3668 = vmatpush1.msra.mxu0 0.0
        %3669 = vmatprep.subr.mxu0 0.0
        %3670 = vmatpush1.msra.mxu0 0.0
        %3671 = vmatprep.subr.mxu0 0.0
        %3672 = vmatpush1.msra.mxu0 0.0
        %3673 = vmatprep.subr.mxu0 0.0
        %3674 = vmatpush1.msra.mxu0 0.0
        %3675 = vmatprep.subr.mxu0 0.0
        %3676 = vmatpush1.msra.mxu0 0.0
        %3677 = vmatprep.subr.mxu0 0.0
        %3678 = vmatpush1.msra.mxu0 0.0
        %3679 = vmatprep.subr.mxu0 0.0
        %3680 = vmatpush1.msra.mxu0 0.0
        %3681 = vmatprep.subr.mxu0 0.0
        %3682 = vmatpush1.msra.mxu0 0.0
        %3683 = vmatprep.subr.mxu0 0.0
        %3684 = vmatpush1.msra.mxu0 0.0
        %3685 = vmatprep.subr.mxu0 0.0
        %3686 = vmatpush1.msra.mxu0 0.0
        %3687 = vmatprep.subr.mxu0 0.0
        %3688 = vmatpush1.msra.mxu0 0.0
        %3689 = vmatprep.subr.mxu0 0.0
        %3690 = vmatpush1.msra.mxu0 0.0
        %3691 = vmatprep.mubr.f32.mxu0 0.0
        %3692 = vmatmul.mubr.f32.gmra.mrb[0].mxu0 %v3622
        %v3693 = vpop.f32.mrb[0].mxu0
        %v3694 = vadd.f32 %v3620, %v3693
        %v3695 = vpop.f32.mrb[0].mxu0
        %3696 = vmatprep.mubr.f32.mxu0 0.0
        %3697 = vmatmul.mubr.f32.gmra.mrb[0].mxu0 %v3625
        %v3698 = vpop.f32.mrb[0].mxu0
        %v3699 = vadd.f32 %v3620, %v3698
        %v3700 = vpop.f32.mrb[0].mxu0
        %3701 = vdwg.mxu0
        %v3702 = vmax.f32 %v3694, 0.0
        %v3703 = vmax.f32 %v3699, 0.0
        %s3704 = scalar_lea.vmem %s4, 64
        %v3705 = vld [vmem:[%s3704] sm:$0xff]
        %v3706 = vld [vmem:[%s3704 + $0x8] sm:$0xff]
        %v3707 = vld [vmem:[%s3704 + $0x10] sm:$0xff]
        %v3708 = vld [vmem:[%s3704 + $0x18] sm:$0xff]
        %v3709 = vld [vmem:[%s3704 + $0x20] sm:$0xff]
        %v3710 = vld [vmem:[%s3704 + $0x28] sm:$0xff]
        %v3711 = vld [vmem:[%s3704 + $0x30] sm:$0xff]
        %v3712 = vld [vmem:[%s3704 + $0x38] sm:$0xff]
        %v3713 = vlaneseq
        %v3714 = vshrl.u32 %v3713, 7
        %v3715 = vsub.s32 3, %v3714
        %v3716 = vrot.slane %v2126, %v3715
        %v3718 = vsel %vm1989, %v3702, 0
        %v3721 = vsel %vm1989, %v3703, 0
        %3723 = vmatprep.subr.mxu0 0.0
        %3724 = vmatpush1.msra.mxu0 %v3705
        %3725 = vmatprep.subr.mxu0 0.0
        %3726 = vmatpush1.msra.mxu0 %v3706
        %3727 = vmatprep.subr.mxu0 0.0
        %3728 = vmatpush1.msra.mxu0 %v3707
        %3729 = vmatprep.subr.mxu0 0.0
        %3730 = vmatpush1.msra.mxu0 %v3708
        %3731 = vmatprep.subr.mxu0 0.0
        %3732 = vmatpush1.msra.mxu0 %v3709
        %3733 = vmatprep.subr.mxu0 0.0
        %3734 = vmatpush1.msra.mxu0 %v3710
        %3735 = vmatprep.subr.mxu0 0.0
        %3736 = vmatpush1.msra.mxu0 %v3711
        %3737 = vmatprep.subr.mxu0 0.0
        %3738 = vmatpush1.msra.mxu0 %v3712
        %3739 = vmatprep.subr.mxu0 0.0
        %3740 = vmatpush1.msra.mxu0 0.0
        %3741 = vmatprep.subr.mxu0 0.0
        %3742 = vmatpush1.msra.mxu0 0.0
        %3743 = vmatprep.subr.mxu0 0.0
        %3744 = vmatpush1.msra.mxu0 0.0
        %3745 = vmatprep.subr.mxu0 0.0
        %3746 = vmatpush1.msra.mxu0 0.0
        %3747 = vmatprep.subr.mxu0 0.0
        %3748 = vmatpush1.msra.mxu0 0.0
        %3749 = vmatprep.subr.mxu0 0.0
        %3750 = vmatpush1.msra.mxu0 0.0
        %3751 = vmatprep.subr.mxu0 0.0
        %3752 = vmatpush1.msra.mxu0 0.0
        %3753 = vmatprep.subr.mxu0 0.0
        %3754 = vmatpush1.msra.mxu0 0.0
        %3755 = vmatprep.subr.mxu0 0.0
        %3756 = vmatpush1.msra.mxu0 0.0
        %3757 = vmatprep.subr.mxu0 0.0
        %3758 = vmatpush1.msra.mxu0 0.0
        %3759 = vmatprep.subr.mxu0 0.0
        %3760 = vmatpush1.msra.mxu0 0.0
        %3761 = vmatprep.subr.mxu0 0.0
        %3762 = vmatpush1.msra.mxu0 0.0
        %3763 = vmatprep.subr.mxu0 0.0
        %3764 = vmatpush1.msra.mxu0 0.0
        %3765 = vmatprep.subr.mxu0 0.0
        %3766 = vmatpush1.msra.mxu0 0.0
        %3767 = vmatprep.subr.mxu0 0.0
        %3768 = vmatpush1.msra.mxu0 0.0
        %3769 = vmatprep.subr.mxu0 0.0
        %3770 = vmatpush1.msra.mxu0 0.0
        %3771 = vmatprep.subr.mxu0 0.0
        %3772 = vmatpush1.msra.mxu0 0.0
        %3773 = vmatprep.subr.mxu0 0.0
        %3774 = vmatpush1.msra.mxu0 0.0
        %3775 = vmatprep.subr.mxu0 0.0
        %3776 = vmatpush1.msra.mxu0 0.0
        %3777 = vmatprep.subr.mxu0 0.0
        %3778 = vmatpush1.msra.mxu0 0.0
        %3779 = vmatprep.subr.mxu0 0.0
        %3780 = vmatpush1.msra.mxu0 0.0
        %3781 = vmatprep.subr.mxu0 0.0
        %3782 = vmatpush1.msra.mxu0 0.0
        %3783 = vmatprep.subr.mxu0 0.0
        %3784 = vmatpush1.msra.mxu0 0.0
        %3785 = vmatprep.subr.mxu0 0.0
        %3786 = vmatpush1.msra.mxu0 0.0
        %3787 = vmatprep.mubr.f32.mxu0 0.0
        %3788 = vmatmul.mubr.f32.gmra.mrb[0].mxu0 %v3718
        %v3789 = vpop.f32.mrb[0].mxu0
        %v3790 = vadd.f32 %v3716, %v3789
        %v3791 = vpop.f32.mrb[0].mxu0
        %3792 = vmatprep.mubr.f32.mxu0 0.0
        %3793 = vmatmul.mubr.f32.gmra.mrb[0].mxu0 %v3721
        %v3794 = vpop.f32.mrb[0].mxu0
        %v3795 = vadd.f32 %v3716, %v3794
        %v3796 = vpop.f32.mrb[0].mxu0
        %3797 = vdwg.mxu0
        %v3798 = vadd.f32 %v3610, %v3790
        %v3799 = vadd.f32 %v3611, %v3795
        %v3800 = vsel %vm410, %v3798, 0.0
        %3801 = vadd.xlane.f32.xlu0 %v3800
        %v3802 = vpop.xlane.xlu0 %3801
        %v3803 = vsel %vm410, %v3799, 0.0
        %3804 = vadd.xlane.f32.xlu0 %v3803
        %v3805 = vpop.xlane.xlu0 %3804
        %v3806 = vmul.f32 %v3802, %v1839
        %v3807 = vmul.f32 %v3805, %v1839
        %v3808 = vsub.f32 %v3798, %v3806
        %v3809 = vsub.f32 %v3799, %v3807
        %v3810 = vmul.f32 %v3808, %v3808
        %v3811 = vmul.f32 %v3809, %v3809
        %v3812 = vsel %vm410, %v3810, 0.0
        %3813 = vadd.xlane.f32.xlu0 %v3812
        %v3814 = vpop.xlane.xlu0 %3813
        %v3815 = vsel %vm410, %v3811, 0.0
        %3816 = vadd.xlane.f32.xlu0 %v3815
        %v3817 = vpop.xlane.xlu0 %3816
        %v3818 = vmul.f32 %v3814, %v1839
        %v3819 = vmul.f32 %v3817, %v1839
        %v3820 = vadd.f32 %v3818, 1e-05
        %v3821 = vadd.f32 %v3819, 1e-05
        %v3822 = vrsqrt.pop %v3820
        %v3823 = vmul.f32 %v3820, %v3822
        %vm3824 = vcmp.eq.f32.partialorder %v3820, inf
        %v3825 = vsel %vm3824, %v3820, %v3823
        %vm3826 = vcmp.eq.f32.partialorder %v3820, 0.0
        %v3827 = vand.u32 %v3820, 2147483648
        %v3828 = vsel %vm3826, %v3827, %v3825
        %v3829 = vrsqrt.pop %v3821
        %v3830 = vmul.f32 %v3821, %v3829
        %vm3831 = vcmp.eq.f32.partialorder %v3821, inf
        %v3832 = vsel %vm3831, %v3821, %v3830
        %vm3833 = vcmp.eq.f32.partialorder %v3821, 0.0
        %v3834 = vand.u32 %v3821, 2147483648
        %v3835 = vsel %vm3833, %v3834, %v3832
        %v3836 = vrcp.pop %v3828
        %v3837 = vmul.f32 %v3808, %v3836
        %v3838 = vrcp.pop %v3835
        %v3839 = vmul.f32 %v3809, %v3838
        %v3840 = vlaneseq
        %v3841 = vshrl.u32 %v3840, 7
        %v3842 = vsub.s32 6, %v3841
        %v3843 = vrot.slane %v2126, %v3842
        %v3844 = vmul.f32 %v3837, %v3843
        %v3845 = vmul.f32 %v3839, %v3843
        %v3846 = vlaneseq
        %v3847 = vshrl.u32 %v3846, 7
        %v3848 = vsub.s32 7, %v3847
        %v3849 = vrot.slane %v2126, %v3848
        %v3850 = vadd.f32 %v3844, %v3849
        %v3851 = vadd.f32 %v3845, %v3849
        %v3852 = vld [vmem:[%s6] sm:$0x1]
        %v3853 = vld [vmem:[%s6 + $0x1] sm:$0x1]
        %v3854 = vsel %vm410, %v3850, 0.0
        %3855 = vadd.xlane.f32.xlu0 %v3854
        %v3856 = vpop.xlane.xlu0 %3855
        %v3857 = vsel %vm410, %v3851, 0.0
        %3858 = vadd.xlane.f32.xlu0 %v3857
        %v3859 = vpop.xlane.xlu0 %3858
        %v3860 = vmul.f32 %v3856, %v1839
        %v3861 = vmul.f32 %v3859, %v1839
        %v3862 = vsub.f32 %v3850, %v3860
        %v3863 = vsub.f32 %v3851, %v3861
        %v3864 = vmul.f32 %v3862, %v3862
        %v3865 = vmul.f32 %v3863, %v3863
        %v3866 = vsel %vm410, %v3864, 0.0
        %3867 = vadd.xlane.f32.xlu0 %v3866
        %v3868 = vpop.xlane.xlu0 %3867
        %v3869 = vsel %vm410, %v3865, 0.0
        %3870 = vadd.xlane.f32.xlu0 %v3869
        %v3871 = vpop.xlane.xlu0 %3870
        %v3872 = vmul.f32 %v3868, %v1839
        %v3873 = vmul.f32 %v3871, %v1839
        %v3874 = vadd.f32 %v3872, 1e-05
        %v3875 = vadd.f32 %v3873, 1e-05
        %v3876 = vrsqrt.pop %v3874
        %v3877 = vmul.f32 %v3874, %v3876
        %vm3878 = vcmp.eq.f32.partialorder %v3874, inf
        %v3879 = vsel %vm3878, %v3874, %v3877
        %vm3880 = vcmp.eq.f32.partialorder %v3874, 0.0
        %v3881 = vand.u32 %v3874, 2147483648
        %v3882 = vsel %vm3880, %v3881, %v3879
        %v3883 = vrsqrt.pop %v3875
        %v3884 = vmul.f32 %v3875, %v3883
        %vm3885 = vcmp.eq.f32.partialorder %v3875, inf
        %v3886 = vsel %vm3885, %v3875, %v3884
        %vm3887 = vcmp.eq.f32.partialorder %v3875, 0.0
        %v3888 = vand.u32 %v3875, 2147483648
        %v3889 = vsel %vm3887, %v3888, %v3886
        %v3890 = vrcp.pop %v3882
        %v3891 = vmul.f32 %v3862, %v3890
        %v3892 = vrcp.pop %v3889
        %v3893 = vmul.f32 %v3863, %v3892
        %v3894 = vlaneseq
        %v3895 = vshrl.u32 %v3894, 7
        %v3896 = vsub.s32 0, %v3895
        %v3897 = vrot.slane %v3852, %v3896
        %v3898 = vmul.f32 %v3891, %v3897
        %v3899 = vmul.f32 %v3893, %v3897
        %v3900 = vlaneseq
        %v3901 = vshrl.u32 %v3900, 7
        %v3902 = vsub.s32 0, %v3901
        %v3903 = vrot.slane %v3853, %v3902
        %v3904 = vadd.f32 %v3898, %v3903
        %v3905 = vadd.f32 %v3899, %v3903
        %3906 = vst.msk [vmem:[%s359] sm:$0xff] %vm410, %v3904
        %3907 = vst.msk [vmem:[%s359 + $0x8] sm:$0xff] %vm410, %v3905
        %s3908 = sand.u32 %s191, 1
        %s3909 = scalar_lea.sflag [#allocation3], %s3908
        %s3910 = sand.u32 %s191, 1
        %s3911 = smul.addr %s3910, 16
        %s3912 = scalar_lea.vmem [#allocation2], %s3911
        %s3913 = sand.u32 %s31, 1
        %s3914 = scalar_lea.sflag [#allocation5], %s3913
        %s3915 = sand.u32 %s217, 1
        %s3916 = smul.addr %s3915, 128
        %s3917 = scalar_lea.vmem [#allocation4], %s3916
        %s3918 = sand.u32 %s31, 1
        %s3919 = scalar_lea.sflag [#allocation5], %s3918
        %s3920 = sand.u32 %s243, 1
        %s3921 = smul.addr %s3920, 128
        %s3922 = scalar_lea.vmem [#allocation6], %s3921
        %s3923 = sand.u32 %s269, 1
        %s3924 = scalar_lea.sflag [#allocation8], %s3923
        %s3925 = sand.u32 %s269, 1
        %s3926 = smul.addr %s3925, 128
        %s3927 = scalar_lea.vmem [#allocation7], %s3926
        // Predicated region
        $region49: #{_run.1} parent=47 // pred_check
          %p3928 = pneg %p201
        $region50: #{_run.1} parent=47 // pred_check_branch
          %3930 = sbr.rel (%p3928) target = $region52
        $region51: #{_run.1} parent=47 // pred_region
          %s3932 = ssub.s32 256, 256
          %3933 = vsyncadd %s3909, %s3932
          %s3934 = smul.addr %s31, 2
          %s3935 = smul.addr %s3934, 128
          %s3936 = scalar_lea.hbm %s7, %s3935
          %s3937 = sshll.u32 %s3912, 4
          %s3938 = int_to_ptr.vmem [resolvable:$true] %s3937
          %3943 = dma.vmem_to_hbm [thread:$0]  %s3938, 256, %s3936, %s3909, 128, 128, 8
        $region52: #{_run.1} parent=47 // pred_fallthru
          _
        // Predicated region
        $region53: #{_run.1} parent=47 // pred_check
          %p3944 = pneg %p227
        $region54: #{_run.1} parent=47 // pred_check_branch
          %3946 = sbr.rel (%p3944) target = $region56
        $region55: #{_run.1} parent=47 // pred_region
          #allocation10 [shape = 'u32[6]{0}', space=smem, size = 0x18, scoped, tag = 'DMA stride descriptor']
          %s3948 = ssub.s32 2048, 2048
          %3949 = vsyncadd %s3914, %s3948
          %s3950 = smul.addr %s31, 8
          %s3951 = smul.addr %s3950, 128
          %s3952 = scalar_lea.hbm %s8, %s3951
          %s3954 = sshll.u32 1, 14
          %s3955 = sxor.u32 4294967295, %s3954
          %s3958 = sshll.u32 7, 18
          %s3959 = sxor.u32 4294967295, %s3958
          %s3960 = sand.u32 0, %s3959
          %s3962 = sor.u32 %s3960, 0
          %s3964 = sshll.u32 3, 24
          %s3965 = sxor.u32 4294967295, %s3964
          %s3966 = sand.u32 %s3962, %s3965
          %s3968 = sor.u32 %s3966, 0
          %s3969 = sshll.u32 %s3917, 4
          %s3970 = int_to_ptr.vmem [resolvable:$true] %s3969
          %3976 = sst [smem:[#allocation10]] 1024
          %s3977 = scalar_lea.smem [#allocation10], 1
          %3978 = sst [smem:[%s3977]] 2048
          %s3979 = scalar_lea.smem [#allocation10], 2
          %3980 = sst [smem:[%s3979]] 8
          %s3981 = scalar_lea.smem [#allocation10], 3
          %3982 = sst [smem:[%s3981]] 128
          %s3983 = scalar_lea.smem [#allocation10], 4
          %3984 = sst [smem:[%s3983]] 128
          %s3985 = scalar_lea.smem [#allocation10], 5
          %3986 = sst [smem:[%s3985]] 8
          %3988 = dma.general %s3970, 2048, %s3952, %s3914, [#allocation9], [#allocation10], %s3968, 0
        $region56: #{_run.1} parent=47 // pred_fallthru
          _
        // Predicated region
        $region57: #{_run.1} parent=47 // pred_check
          %p3989 = pneg %p253
        $region58: #{_run.1} parent=47 // pred_check_branch
          %3991 = sbr.rel (%p3989) target = $region60
        $region59: #{_run.1} parent=47 // pred_region
          #allocation12 [shape = 'u32[6]{0}', space=smem, size = 0x18, scoped, tag = 'DMA stride descriptor']
          %s3993 = ssub.s32 2048, 2048
          %3994 = vsyncadd %s3919, %s3993
          %s3995 = smul.addr %s31, 8
          %s3996 = smul.addr %s3995, 128
          %s3997 = scalar_lea.hbm %s9, %s3996
          %s3999 = sshll.u32 1, 14
          %s4000 = sxor.u32 4294967295, %s3999
          %s4003 = sshll.u32 7, 18
          %s4004 = sxor.u32 4294967295, %s4003
          %s4005 = sand.u32 0, %s4004
          %s4007 = sor.u32 %s4005, 0
          %s4009 = sshll.u32 3, 24
          %s4010 = sxor.u32 4294967295, %s4009
          %s4011 = sand.u32 %s4007, %s4010
          %s4013 = sor.u32 %s4011, 0
          %s4014 = sshll.u32 %s3922, 4
          %s4015 = int_to_ptr.vmem [resolvable:$true] %s4014
          %4021 = sst [smem:[#allocation12]] 1024
          %s4022 = scalar_lea.smem [#allocation12], 1
          %4023 = sst [smem:[%s4022]] 2048
          %s4024 = scalar_lea.smem [#allocation12], 2
          %4025 = sst [smem:[%s4024]] 8
          %s4026 = scalar_lea.smem [#allocation12], 3
          %4027 = sst [smem:[%s4026]] 128
          %s4028 = scalar_lea.smem [#allocation12], 4
          %4029 = sst [smem:[%s4028]] 128
          %s4030 = scalar_lea.smem [#allocation12], 5
          %4031 = sst [smem:[%s4030]] 8
          %4033 = dma.general %s4015, 2048, %s3997, %s3919, [#allocation11], [#allocation12], %s4013, 0
        $region60: #{_run.1} parent=47 // pred_fallthru
          _
        // Predicated region
        $region61: #{_run.1} parent=47 // pred_check
          %p4034 = pneg %p279
        $region62: #{_run.1} parent=47 // pred_check_branch
          %4036 = sbr.rel (%p4034) target = $region64
        $region63: #{_run.1} parent=47 // pred_region
          #allocation14 [shape = 'u32[6]{0}', space=smem, size = 0x18, scoped, tag = 'DMA stride descriptor']
          %s4038 = ssub.s32 2048, 2048
          %4039 = vsyncadd %s3924, %s4038
          %s4040 = smul.addr %s31, 8
          %s4041 = smul.addr %s4040, 128
          %s4042 = scalar_lea.hbm %s10, %s4041
          %s4044 = sshll.u32 1, 14
          %s4045 = sxor.u32 4294967295, %s4044
          %s4048 = sshll.u32 7, 18
          %s4049 = sxor.u32 4294967295, %s4048
          %s4050 = sand.u32 0, %s4049
          %s4052 = sor.u32 %s4050, 0
          %s4054 = sshll.u32 3, 24
          %s4055 = sxor.u32 4294967295, %s4054
          %s4056 = sand.u32 %s4052, %s4055
          %s4058 = sor.u32 %s4056, 0
          %s4059 = sshll.u32 %s3927, 4
          %s4060 = int_to_ptr.vmem [resolvable:$true] %s4059
          %4066 = sst [smem:[#allocation14]] 1024
          %s4067 = scalar_lea.smem [#allocation14], 1
          %4068 = sst [smem:[%s4067]] 2048
          %s4069 = scalar_lea.smem [#allocation14], 2
          %4070 = sst [smem:[%s4069]] 8
          %s4071 = scalar_lea.smem [#allocation14], 3
          %4072 = sst [smem:[%s4071]] 128
          %s4073 = scalar_lea.smem [#allocation14], 4
          %4074 = sst [smem:[%s4073]] 128
          %s4075 = scalar_lea.smem [#allocation14], 5
          %4076 = sst [smem:[%s4075]] 8
          %4078 = dma.general %s4060, 2048, %s4042, %s3924, [#allocation13], [#allocation14], %s4058, 0
        $region64: #{_run.1} parent=47 // pred_fallthru
          _
      $region48: #{_run.1} parent=5 // pred_fallthru
        _
      %p4079 = scmp.le.s32.totalorder 2, %s26
      // Predicated region
      $region65: #{_run.1} parent=5 // pred_check
        %p4080 = pneg %p4079
      $region66: #{_run.1} parent=5 // pred_check_branch
        %4082 = sbr.rel (%p4080) target = $region68
      $region67: #{_run.1} parent=5 // pred_region
        %s4083 = ssub.s32 %s26, 2
        // Predicated region
        $region69: #{_run.1} parent=67 // pred_check
          %p4084 = pneg %p207
        $region70: #{_run.1} parent=67 // pred_check_branch
          %4086 = sbr.rel (%p4084) target = $region72
        $region71: #{_run.1} parent=67 // pred_region
          %s4087 = sand.u32 %s192, 1
          %s4088 = scalar_lea.sflag [#allocation3], %s4087
          %s4089 = sand.u32 %s192, 1
          %s4090 = smul.addr %s4089, 16
          %s4091 = scalar_lea.vmem [#allocation2], %s4090
          %4092 = dma.done %s4088, 256
        $region72: #{_run.1} parent=67 // pred_fallthru
          _
        // Predicated region
        $region73: #{_run.1} parent=67 // pred_check
          %p4093 = pneg %p233
        $region74: #{_run.1} parent=67 // pred_check_branch
          %4095 = sbr.rel (%p4093) target = $region76
        $region75: #{_run.1} parent=67 // pred_region
          %s4096 = sand.u32 %s32, 1
          %s4097 = scalar_lea.sflag [#allocation5], %s4096
          %s4098 = sand.u32 %s218, 1
          %s4099 = smul.addr %s4098, 128
          %s4100 = scalar_lea.vmem [#allocation4], %s4099
          %4101 = dma.done %s4097, 2048
        $region76: #{_run.1} parent=67 // pred_fallthru
          _
        // Predicated region
        $region77: #{_run.1} parent=67 // pred_check
          %p4102 = pneg %p259
        $region78: #{_run.1} parent=67 // pred_check_branch
          %4104 = sbr.rel (%p4102) target = $region80
        $region79: #{_run.1} parent=67 // pred_region
          %s4105 = sand.u32 %s32, 1
          %s4106 = scalar_lea.sflag [#allocation5], %s4105
          %s4107 = sand.u32 %s244, 1
          %s4108 = smul.addr %s4107, 128
          %s4109 = scalar_lea.vmem [#allocation6], %s4108
          %4110 = dma.done %s4106, 2048
        $region80: #{_run.1} parent=67 // pred_fallthru
          _
        // Predicated region
        $region81: #{_run.1} parent=67 // pred_check
          %p4111 = pneg %p285
        $region82: #{_run.1} parent=67 // pred_check_branch
          %4113 = sbr.rel (%p4111) target = $region84
        $region83: #{_run.1} parent=67 // pred_region
          %s4114 = sand.u32 %s270, 1
          %s4115 = scalar_lea.sflag [#allocation8], %s4114
          %s4116 = sand.u32 %s270, 1
          %s4117 = smul.addr %s4116, 128
          %s4118 = scalar_lea.vmem [#allocation7], %s4117
          %4119 = dma.done %s4115, 2048
        $region84: #{_run.1} parent=67 // pred_fallthru
          _
      $region68: #{_run.1} parent=5 // pred_fallthru
        _
    $region6: #{_run.1} parent=1 // loop_footer
      %s30 = sadd.s32 1, %s26
    $region7: #{_run.1} parent=1 // loop_footer_branch
      %25 = sbr.rel target = $region3
    $region8: #{_run.1} parent=1 // loop_exit
      _
    %4120 = vsyncpa [#allocation3], 1
    %s4121 = scalar_lea.sflag [#allocation3], 1
    %4122 = vsyncpa %s4121, 1
    %4123 = vsyncpa [#allocation5], 1
    %s4124 = scalar_lea.sflag [#allocation5], 1
    %4125 = vsyncpa %s4124, 1
    %4126 = vsyncpa [#allocation8], 1
    %s4127 = scalar_lea.sflag [#allocation8], 1
    %4128 = vsyncpa %s4127, 1

</llo_original>
